<compile_context>
chip_gen: v5e
topology: v5e:2x2
jax: 0.10.0
libtpu: 0.0.40
codegen_flags: <defaults>
</compile_context>

<pallas_src>
import functools
import math

import jax
import jax.numpy as jnp
import numpy as np
from jax.experimental import pallas as pl
from jax.experimental.pallas import tpu as pltpu


# ----------------------------- SPP window parameters ------------------------
def spp_level_params(h, w, num_levels):
    """PyTorch SPPLayer max_pool2d window geometry, split into H / W windows."""
    levels = []
    for i in range(num_levels):
        level = i + 1
        kh, kw = math.ceil(h / level), math.ceil(w / level)
        ph = (kh * level - h + 1) // 2
        pw = (kw * level - w + 1) // 2
        oh = (h + 2 * ph - kh) // kh + 1
        ow = (w + 2 * pw - kw) // kw + 1
        hwins = [(max(ih * kh - ph, 0), min(ih * kh - ph + kh, h))
                 for ih in range(oh)]
        wwins = [(max(iw * kw - pw, 0), min(iw * kw - pw + kw, w))
                 for iw in range(ow)]
        levels.append(dict(kh=kh, kw=kw, ph=ph, pw=pw, oh=oh, ow=ow,
                           hwins=hwins, wwins=wwins))
    return levels


# ----------------------------- fused forward kernel -------------------------
def _self_fused_kernel(x_ref, w1_ref, b1_ref, w2_ref, b2_ref,
                       lw1_ref, lb1_ref, lw2_ref, lb2_ref, o_ref,
                       *, nbatch, width, nchan, levels):
    f32 = jnp.float32

    # conv1 / conv2 as banded matmuls on the (N*W, H*C) slab.
    # layout: a[n*width + w, h*C + c] == y[n, c, h, w]
    a1 = (jnp.dot(x_ref[...], w1_ref[...].astype(f32),
                  preferred_element_type=f32) + b1_ref[...])        # (N*W, H1*C1)
    a2 = (jnp.dot(a1, w2_ref[...].astype(f32),
                  preferred_element_type=f32) + b2_ref[...])        # (N*W, H2*C2)

    lw1 = lw1_ref[...].astype(f32)                                  # (448, 1024)

    # SPP max pooling fused with lin1 accumulation.
    hacc = None
    g = 0
    for lv in levels:
        # max over the W-extent of each pooling column (all (h, c) lanes at once)
        wmaxes = []
        for (ws, we) in lv["wwins"]:
            rows = []
            for n in range(nbatch):
                r = a2[n * width + ws: n * width + ws + 1, :]
                for w in range(ws + 1, we):
                    r = jnp.maximum(r, a2[n * width + w: n * width + w + 1, :])
                rows.append(r)
            wmaxes.append(jnp.concatenate(rows, axis=0) if nbatch > 1 else rows[0])
        # max over the H-extent (32-wide lane blocks), then accumulate into lin1
        for (hs, he) in lv["hwins"]:
            for wm in wmaxes:
                m = wm[:, hs * nchan:(hs + 1) * nchan]
                for h in range(hs + 1, he):
                    m = jnp.maximum(m, wm[:, h * nchan:(h + 1) * nchan])
                part = jnp.dot(m, lw1[g * nchan:(g + 1) * nchan, :],
                               preferred_element_type=f32)
                hacc = part if hacc is None else hacc + part
                g += 1

    # TODO(synk): nn.Dropout is treated as identity (inference / eval mode).
    hvec = hacc + lb1_ref[...]                                      # (N, 1024)
    o_ref[...] = (jnp.dot(hvec, lw2_ref[...], preferred_element_type=f32)
                  + lb2_ref[...])                                   # (N, 5)


# ----------------------------- init-time weight preparation -----------------
def prepare_kernel_params(params, h_in, w_in, num_levels=3):
    """Banded conv weights, permuted/padded/bf16 linear weights, SPP geometry."""
    c2 = params["cnn2_w"].shape[0]                 # 32
    kh1 = params["cnn1_w"].shape[2]                # 10
    kh2 = params["cnn2_w"].shape[2]                # 10
    h1 = h_in - kh1 + 1                            # 19
    h2 = h1 - kh2 + 1                              # 10

    def band(w, h_src, h_dst):
        co, ci, kh, kw = w.shape
        assert kw == 1
        wnp = np.asarray(w)[:, :, :, 0]            # (co, ci, kh)
        wb = np.zeros((h_src * ci, h_dst * co), np.float32)
        for ho in range(h_dst):
            for k in range(kh):
                hi = ho + k
                wb[hi * ci:(hi + 1) * ci, ho * co:(ho + 1) * co] = wnp[:, :, k].T
        return wb

    levels = spp_level_params(h2, w_in, num_levels)

    # lin1 row permutation: kernel feature order (level, ih, iw, c)
    #                    -> PyTorch feature order (level, c, ih, iw)
    perm, off = [], 0
    for lv in levels:
        nwin = lv["oh"] * lv["ow"]
        for widx in range(nwin):
            for c in range(c2):
                perm.append(off + c * nwin + widx)
        off += c2 * nwin
    assert off == params["lin1_w"].shape[1], (off, params["lin1_w"].shape)
    perm = np.asarray(perm)

    d1 = params["lin1_w"].shape[0]                 # 1000
    d1p = ((d1 + 127) // 128) * 128                # 1024 (lane-dense hidden)
    lw1 = np.asarray(params["lin1_w"]).T[perm, :]
    lw1 = np.pad(lw1, ((0, 0), (0, d1p - d1)))
    lb1 = np.pad(np.asarray(params["lin1_b"]), (0, d1p - d1))[None, :]
    lw2 = np.pad(np.asarray(params["lin2_w"]).T, ((0, d1p - d1), (0, 0)))
    lb2 = np.asarray(params["lin2_b"])[None, :]

    kparams = dict(
        w1b=jnp.asarray(band(params["cnn1_w"], h_in, h1), jnp.bfloat16),
        b1b=jnp.asarray(np.tile(np.asarray(params["cnn1_b"]), h1)[None, :]),
        w2b=jnp.asarray(band(params["cnn2_w"], h1, h2), jnp.bfloat16),
        b2b=jnp.asarray(np.tile(np.asarray(params["cnn2_b"]), h2)[None, :]),
        lw1=jnp.asarray(lw1, jnp.bfloat16),
        lb1=jnp.asarray(lb1, jnp.float32),
        lw2=jnp.asarray(lw2, jnp.float32),
        lb2=jnp.asarray(lb2, jnp.float32),
    )
    cfg = dict(width=w_in, nchan=c2, levels=levels)
    return kparams, cfg


# ----------------------------- SELF forward (single pallas_call) ------------
def self_forward(kparams, cfg, x):
    n, c, h, w = x.shape
    assert w == cfg["width"]
    # tiny layout plumbing: NCHW -> (N*W, H*C) slab expected by the kernel
    x2 = jnp.transpose(x, (0, 3, 2, 1)).reshape(n * w, h * c)
    kernel = functools.partial(_self_fused_kernel, nbatch=n, width=cfg["width"],
                               nchan=cfg["nchan"], levels=cfg["levels"])
    vmem = lambda: pl.BlockSpec(memory_space=pltpu.MemorySpace.VMEM)
    out = pl.pallas_call(
        kernel,
        out_shape=jax.ShapeDtypeStruct((n, kparams["lw2"].shape[1]), jnp.float32),
        in_specs=[vmem() for _ in range(9)],
        out_specs=vmem(),
    )(x2, kparams["w1b"], kparams["b1b"], kparams["w2b"], kparams["b2b"],
      kparams["lw1"], kparams["lb1"], kparams["lw2"], kparams["lb2"])
    return out.reshape(n, 1, -1)


# ----------------------------- params (deterministic) -----------------------
def init_params(key):
    def uniform(k, shape, bound):
        return jax.random.uniform(k, shape, jnp.float32, -bound, bound)

    ks = jax.random.split(key, 8)
    p = {}
    bnd = 1.0 / math.sqrt(3 * 10 * 1)
    p["cnn1_w"] = uniform(ks[0], (16, 3, 10, 1), bnd)
    p["cnn1_b"] = uniform(ks[1], (16,), bnd)
    bnd = 1.0 / math.sqrt(16 * 10 * 1)
    p["cnn2_w"] = uniform(ks[2], (32, 16, 10, 1), bnd)
    p["cnn2_b"] = uniform(ks[3], (32,), bnd)
    bnd = 1.0 / math.sqrt(448)
    p["lin1_w"] = uniform(ks[4], (1000, 448), bnd)
    p["lin1_b"] = uniform(ks[5], (1000,), bnd)
    bnd = 1.0 / math.sqrt(1000)
    p["lin2_w"] = uniform(ks[6], (5, 1000), bnd)
    p["lin2_b"] = uniform(ks[7], (5,), bnd)
    return p


# ----------------------------- pure-JAX reference ---------------------------
def ref_forward(params, x):
    # conv and lin1 weights are stored in bf16 by the kernel; apply the same
    # rounding here so both paths run identical (f32) math on identical values.
    q = lambda a: a.astype(jnp.bfloat16).astype(jnp.float32)
    hi = jax.lax.Precision.HIGHEST

    def conv(xx, w, b):
        y = jax.lax.conv_general_dilated(
            xx, q(w), window_strides=(1, 1), padding="VALID",
            dimension_numbers=("NCHW", "OIHW", "NCHW"), precision=hi)
        return y + b[None, :, None, None]

    y = conv(x, params["cnn1_w"], params["cnn1_b"])
    y = conv(y, params["cnn2_w"], params["cnn2_b"])
    n, c, h, w = y.shape
    feats = []
    for lv in spp_level_params(h, w, 3):
        pooled = jax.lax.reduce_window(
            y, -jnp.inf, jax.lax.max,
            window_dimensions=(1, 1, lv["kh"], lv["kw"]),
            window_strides=(1, 1, lv["kh"], lv["kw"]),
            padding=((0, 0), (0, 0), (lv["ph"], lv["ph"]), (lv["pw"], lv["pw"])))
        feats.append(pooled.reshape(n, -1))
    f = jnp.concatenate(feats, axis=1)
    hvec = jnp.dot(f, q(params["lin1_w"]).T, precision=hi) + params["lin1_b"]
    o = jnp.dot(hvec, params["lin2_w"].T, precision=hi) + params["lin2_b"]
    return o.reshape(n, 1, -1)


if __name__ == "__main__":
    key = jax.random.PRNGKey(0)
    kx, kp = jax.random.split(key)
    # After two (10,1) convs: H 28->19->10, W stays 4; SPP gives 32*(1+4+9)=448.
    x = jax.random.normal(kx, (2, 3, 28, 4), jnp.float32)  # NCHW
    params = init_params(kp)
    kparams, cfg = prepare_kernel_params(params, h_in=28, w_in=4, num_levels=3)

    fwd = jax.jit(lambda kprm, xx: self_forward(kprm, cfg, xx))
    out = jax.block_until_ready(fwd(kparams, x))
    assert out.shape == (2, 1, 5), out.shape

    ref = jax.block_until_ready(ref_forward(params, x))
    # 1e-2 (tightened from 3e-2): covers possible reduced-precision MXU passes
    # for f32 matmuls in either path; exact-f32 agreement is typically ~1e-6.
    np.testing.assert_allclose(np.asarray(out), np.asarray(ref),
                               rtol=1e-2, atol=1e-2)
    print("KERNEL_OK")
</pallas_src>

<mosaic_0001>
module attributes {stable_mosaic.version = 11 : i64} {
  func.func @_self_fused_kernel(%arg0: memref<8x84xf32, #tpu.memory_space<vmem>>, %arg1: memref<84x304xbf16, #tpu.memory_space<vmem>>, %arg2: memref<1x304xf32, #tpu.memory_space<vmem>>, %arg3: memref<304x320xbf16, #tpu.memory_space<vmem>>, %arg4: memref<1x320xf32, #tpu.memory_space<vmem>>, %arg5: memref<448x1024xbf16, #tpu.memory_space<vmem>>, %arg6: memref<1x1024xf32, #tpu.memory_space<vmem>>, %arg7: memref<1024x5xf32, #tpu.memory_space<vmem>>, %arg8: memref<1x5xf32, #tpu.memory_space<vmem>>, %arg9: memref<2x5xf32, #tpu.memory_space<vmem>>) attributes {dimension_semantics = [], scalar_prefetch = 0 : i64, scratch_operands = 0 : i64, tpu.core_type = #tpu.core_type<tc>} {
    %c0 = arith.constant 0 : index
    %c0_0 = arith.constant 0 : index
    %0 = vector.load %arg0[%c0, %c0_0] : memref<8x84xf32, #tpu.memory_space<vmem>>, vector<8x84xf32>
    %c0_1 = arith.constant 0 : index
    %c0_2 = arith.constant 0 : index
    %1 = vector.load %arg1[%c0_1, %c0_2] : memref<84x304xbf16, #tpu.memory_space<vmem>>, vector<84x304xbf16>
    %2 = arith.extf %1 : vector<84x304xbf16> to vector<84x304xf32>
    %cst = arith.constant dense<0.000000e+00> : vector<8x304xf32>
    %3 = tpu.matmul %0, %2, %cst {dimension_numbers = #tpu.dot_dimension_numbers<[1], [0], [0], [1], [0, 0, 1, 1], [], []>} : vector<8x84xf32>, vector<84x304xf32>, vector<8x304xf32> -> vector<8x304xf32>
    %c0_3 = arith.constant 0 : index
    %c0_4 = arith.constant 0 : index
    %4 = vector.load %arg2[%c0_3, %c0_4] : memref<1x304xf32, #tpu.memory_space<vmem>>, vector<1x304xf32>
    %5 = vector.broadcast %4 : vector<1x304xf32> to vector<8x304xf32>
    %6 = arith.addf %3, %5 : vector<8x304xf32>
    %c0_5 = arith.constant 0 : index
    %c0_6 = arith.constant 0 : index
    %7 = vector.load %arg3[%c0_5, %c0_6] : memref<304x320xbf16, #tpu.memory_space<vmem>>, vector<304x320xbf16>
    %8 = arith.extf %7 : vector<304x320xbf16> to vector<304x320xf32>
    %cst_7 = arith.constant dense<0.000000e+00> : vector<8x320xf32>
    %9 = tpu.matmul %6, %8, %cst_7 {dimension_numbers = #tpu.dot_dimension_numbers<[1], [0], [0], [1], [0, 0, 1, 1], [], []>} : vector<8x304xf32>, vector<304x320xf32>, vector<8x320xf32> -> vector<8x320xf32>
    %c0_8 = arith.constant 0 : index
    %c0_9 = arith.constant 0 : index
    %10 = vector.load %arg4[%c0_8, %c0_9] : memref<1x320xf32, #tpu.memory_space<vmem>>, vector<1x320xf32>
    %11 = vector.broadcast %10 : vector<1x320xf32> to vector<8x320xf32>
    %12 = arith.addf %9, %11 : vector<8x320xf32>
    %c0_10 = arith.constant 0 : index
    %c0_11 = arith.constant 0 : index
    %13 = vector.load %arg5[%c0_10, %c0_11] : memref<448x1024xbf16, #tpu.memory_space<vmem>>, vector<448x1024xbf16>
    %14 = arith.extf %13 : vector<448x1024xbf16> to vector<448x1024xf32>
    %15 = vector.extract_strided_slice %12 {offsets = [0, 0], sizes = [1, 320], strides = [1, 1]} : vector<8x320xf32> to vector<1x320xf32>
    %16 = vector.extract_strided_slice %12 {offsets = [1, 0], sizes = [1, 320], strides = [1, 1]} : vector<8x320xf32> to vector<1x320xf32>
    %17 = arith.maximumf %15, %16 : vector<1x320xf32>
    %18 = vector.extract_strided_slice %12 {offsets = [2, 0], sizes = [1, 320], strides = [1, 1]} : vector<8x320xf32> to vector<1x320xf32>
    %19 = arith.maximumf %17, %18 : vector<1x320xf32>
    %20 = vector.extract_strided_slice %12 {offsets = [3, 0], sizes = [1, 320], strides = [1, 1]} : vector<8x320xf32> to vector<1x320xf32>
    %21 = arith.maximumf %19, %20 : vector<1x320xf32>
    %22 = vector.extract_strided_slice %12 {offsets = [4, 0], sizes = [1, 320], strides = [1, 1]} : vector<8x320xf32> to vector<1x320xf32>
    %23 = vector.extract_strided_slice %12 {offsets = [5, 0], sizes = [1, 320], strides = [1, 1]} : vector<8x320xf32> to vector<1x320xf32>
    %24 = arith.maximumf %22, %23 : vector<1x320xf32>
    %25 = vector.extract_strided_slice %12 {offsets = [6, 0], sizes = [1, 320], strides = [1, 1]} : vector<8x320xf32> to vector<1x320xf32>
    %26 = arith.maximumf %24, %25 : vector<1x320xf32>
    %27 = vector.extract_strided_slice %12 {offsets = [7, 0], sizes = [1, 320], strides = [1, 1]} : vector<8x320xf32> to vector<1x320xf32>
    %28 = arith.maximumf %26, %27 : vector<1x320xf32>
    %29 = tpu.concatenate %21, %28 in 0 : vector<1x320xf32>, vector<1x320xf32> -> vector<2x320xf32>
    %30 = vector.extract_strided_slice %29 {offsets = [0, 0], sizes = [2, 32], strides = [1, 1]} : vector<2x320xf32> to vector<2x32xf32>
    %31 = vector.extract_strided_slice %29 {offsets = [0, 32], sizes = [2, 32], strides = [1, 1]} : vector<2x320xf32> to vector<2x32xf32>
    %32 = arith.maximumf %30, %31 : vector<2x32xf32>
    %33 = vector.extract_strided_slice %29 {offsets = [0, 64], sizes = [2, 32], strides = [1, 1]} : vector<2x320xf32> to vector<2x32xf32>
    %34 = arith.maximumf %32, %33 : vector<2x32xf32>
    %35 = vector.extract_strided_slice %29 {offsets = [0, 96], sizes = [2, 32], strides = [1, 1]} : vector<2x320xf32> to vector<2x32xf32>
    %36 = arith.maximumf %34, %35 : vector<2x32xf32>
    %37 = vector.extract_strided_slice %29 {offsets = [0, 128], sizes = [2, 32], strides = [1, 1]} : vector<2x320xf32> to vector<2x32xf32>
    %38 = arith.maximumf %36, %37 : vector<2x32xf32>
    %39 = vector.extract_strided_slice %29 {offsets = [0, 160], sizes = [2, 32], strides = [1, 1]} : vector<2x320xf32> to vector<2x32xf32>
    %40 = arith.maximumf %38, %39 : vector<2x32xf32>
    %41 = vector.extract_strided_slice %29 {offsets = [0, 192], sizes = [2, 32], strides = [1, 1]} : vector<2x320xf32> to vector<2x32xf32>
    %42 = arith.maximumf %40, %41 : vector<2x32xf32>
    %43 = vector.extract_strided_slice %29 {offsets = [0, 224], sizes = [2, 32], strides = [1, 1]} : vector<2x320xf32> to vector<2x32xf32>
    %44 = arith.maximumf %42, %43 : vector<2x32xf32>
    %45 = vector.extract_strided_slice %29 {offsets = [0, 256], sizes = [2, 32], strides = [1, 1]} : vector<2x320xf32> to vector<2x32xf32>
    %46 = arith.maximumf %44, %45 : vector<2x32xf32>
    %47 = vector.extract_strided_slice %29 {offsets = [0, 288], sizes = [2, 32], strides = [1, 1]} : vector<2x320xf32> to vector<2x32xf32>
    %48 = arith.maximumf %46, %47 : vector<2x32xf32>
    %49 = vector.extract_strided_slice %14 {offsets = [0, 0], sizes = [32, 1024], strides = [1, 1]} : vector<448x1024xf32> to vector<32x1024xf32>
    %cst_12 = arith.constant dense<0.000000e+00> : vector<2x1024xf32>
    %50 = tpu.matmul %48, %49, %cst_12 {dimension_numbers = #tpu.dot_dimension_numbers<[1], [0], [0], [1], [0, 0, 1, 1], [], []>} : vector<2x32xf32>, vector<32x1024xf32>, vector<2x1024xf32> -> vector<2x1024xf32>
    %51 = vector.extract_strided_slice %12 {offsets = [0, 0], sizes = [1, 320], strides = [1, 1]} : vector<8x320xf32> to vector<1x320xf32>
    %52 = vector.extract_strided_slice %12 {offsets = [1, 0], sizes = [1, 320], strides = [1, 1]} : vector<8x320xf32> to vector<1x320xf32>
    %53 = arith.maximumf %51, %52 : vector<1x320xf32>
    %54 = vector.extract_strided_slice %12 {offsets = [4, 0], sizes = [1, 320], strides = [1, 1]} : vector<8x320xf32> to vector<1x320xf32>
    %55 = vector.extract_strided_slice %12 {offsets = [5, 0], sizes = [1, 320], strides = [1, 1]} : vector<8x320xf32> to vector<1x320xf32>
    %56 = arith.maximumf %54, %55 : vector<1x320xf32>
    %57 = tpu.concatenate %53, %56 in 0 : vector<1x320xf32>, vector<1x320xf32> -> vector<2x320xf32>
    %58 = vector.extract_strided_slice %12 {offsets = [2, 0], sizes = [1, 320], strides = [1, 1]} : vector<8x320xf32> to vector<1x320xf32>
    %59 = vector.extract_strided_slice %12 {offsets = [3, 0], sizes = [1, 320], strides = [1, 1]} : vector<8x320xf32> to vector<1x320xf32>
    %60 = arith.maximumf %58, %59 : vector<1x320xf32>
    %61 = vector.extract_strided_slice %12 {offsets = [6, 0], sizes = [1, 320], strides = [1, 1]} : vector<8x320xf32> to vector<1x320xf32>
    %62 = vector.extract_strided_slice %12 {offsets = [7, 0], sizes = [1, 320], strides = [1, 1]} : vector<8x320xf32> to vector<1x320xf32>
    %63 = arith.maximumf %61, %62 : vector<1x320xf32>
    %64 = tpu.concatenate %60, %63 in 0 : vector<1x320xf32>, vector<1x320xf32> -> vector<2x320xf32>
    %65 = vector.extract_strided_slice %57 {offsets = [0, 0], sizes = [2, 32], strides = [1, 1]} : vector<2x320xf32> to vector<2x32xf32>
    %66 = vector.extract_strided_slice %57 {offsets = [0, 32], sizes = [2, 32], strides = [1, 1]} : vector<2x320xf32> to vector<2x32xf32>
    %67 = arith.maximumf %65, %66 : vector<2x32xf32>
    %68 = vector.extract_strided_slice %57 {offsets = [0, 64], sizes = [2, 32], strides = [1, 1]} : vector<2x320xf32> to vector<2x32xf32>
    %69 = arith.maximumf %67, %68 : vector<2x32xf32>
    %70 = vector.extract_strided_slice %57 {offsets = [0, 96], sizes = [2, 32], strides = [1, 1]} : vector<2x320xf32> to vector<2x32xf32>
    %71 = arith.maximumf %69, %70 : vector<2x32xf32>
    %72 = vector.extract_strided_slice %57 {offsets = [0, 128], sizes = [2, 32], strides = [1, 1]} : vector<2x320xf32> to vector<2x32xf32>
    %73 = arith.maximumf %71, %72 : vector<2x32xf32>
    %74 = vector.extract_strided_slice %14 {offsets = [32, 0], sizes = [32, 1024], strides = [1, 1]} : vector<448x1024xf32> to vector<32x1024xf32>
    %cst_13 = arith.constant dense<0.000000e+00> : vector<2x1024xf32>
    %75 = tpu.matmul %73, %74, %cst_13 {dimension_numbers = #tpu.dot_dimension_numbers<[1], [0], [0], [1], [0, 0, 1, 1], [], []>} : vector<2x32xf32>, vector<32x1024xf32>, vector<2x1024xf32> -> vector<2x1024xf32>
    %76 = arith.addf %50, %75 : vector<2x1024xf32>
    %77 = vector.extract_strided_slice %64 {offsets = [0, 0], sizes = [2, 32], strides = [1, 1]} : vector<2x320xf32> to vector<2x32xf32>
    %78 = vector.extract_strided_slice %64 {offsets = [0, 32], sizes = [2, 32], strides = [1, 1]} : vector<2x320xf32> to vector<2x32xf32>
    %79 = arith.maximumf %77, %78 : vector<2x32xf32>
    %80 = vector.extract_strided_slice %64 {offsets = [0, 64], sizes = [2, 32], strides = [1, 1]} : vector<2x320xf32> to vector<2x32xf32>
    %81 = arith.maximumf %79, %80 : vector<2x32xf32>
    %82 = vector.extract_strided_slice %64 {offsets = [0, 96], sizes = [2, 32], strides = [1, 1]} : vector<2x320xf32> to vector<2x32xf32>
    %83 = arith.maximumf %81, %82 : vector<2x32xf32>
    %84 = vector.extract_strided_slice %64 {offsets = [0, 128], sizes = [2, 32], strides = [1, 1]} : vector<2x320xf32> to vector<2x32xf32>
    %85 = arith.maximumf %83, %84 : vector<2x32xf32>
    %86 = vector.extract_strided_slice %14 {offsets = [64, 0], sizes = [32, 1024], strides = [1, 1]} : vector<448x1024xf32> to vector<32x1024xf32>
    %cst_14 = arith.constant dense<0.000000e+00> : vector<2x1024xf32>
    %87 = tpu.matmul %85, %86, %cst_14 {dimension_numbers = #tpu.dot_dimension_numbers<[1], [0], [0], [1], [0, 0, 1, 1], [], []>} : vector<2x32xf32>, vector<32x1024xf32>, vector<2x1024xf32> -> vector<2x1024xf32>
    %88 = arith.addf %76, %87 : vector<2x1024xf32>
    %89 = vector.extract_strided_slice %57 {offsets = [0, 160], sizes = [2, 32], strides = [1, 1]} : vector<2x320xf32> to vector<2x32xf32>
    %90 = vector.extract_strided_slice %57 {offsets = [0, 192], sizes = [2, 32], strides = [1, 1]} : vector<2x320xf32> to vector<2x32xf32>
    %91 = arith.maximumf %89, %90 : vector<2x32xf32>
    %92 = vector.extract_strided_slice %57 {offsets = [0, 224], sizes = [2, 32], strides = [1, 1]} : vector<2x320xf32> to vector<2x32xf32>
    %93 = arith.maximumf %91, %92 : vector<2x32xf32>
    %94 = vector.extract_strided_slice %57 {offsets = [0, 256], sizes = [2, 32], strides = [1, 1]} : vector<2x320xf32> to vector<2x32xf32>
    %95 = arith.maximumf %93, %94 : vector<2x32xf32>
    %96 = vector.extract_strided_slice %57 {offsets = [0, 288], sizes = [2, 32], strides = [1, 1]} : vector<2x320xf32> to vector<2x32xf32>
    %97 = arith.maximumf %95, %96 : vector<2x32xf32>
    %98 = vector.extract_strided_slice %14 {offsets = [96, 0], sizes = [32, 1024], strides = [1, 1]} : vector<448x1024xf32> to vector<32x1024xf32>
    %cst_15 = arith.constant dense<0.000000e+00> : vector<2x1024xf32>
    %99 = tpu.matmul %97, %98, %cst_15 {dimension_numbers = #tpu.dot_dimension_numbers<[1], [0], [0], [1], [0, 0, 1, 1], [], []>} : vector<2x32xf32>, vector<32x1024xf32>, vector<2x1024xf32> -> vector<2x1024xf32>
    %100 = arith.addf %88, %99 : vector<2x1024xf32>
    %101 = vector.extract_strided_slice %64 {offsets = [0, 160], sizes = [2, 32], strides = [1, 1]} : vector<2x320xf32> to vector<2x32xf32>
    %102 = vector.extract_strided_slice %64 {offsets = [0, 192], sizes = [2, 32], strides = [1, 1]} : vector<2x320xf32> to vector<2x32xf32>
    %103 = arith.maximumf %101, %102 : vector<2x32xf32>
    %104 = vector.extract_strided_slice %64 {offsets = [0, 224], sizes = [2, 32], strides = [1, 1]} : vector<2x320xf32> to vector<2x32xf32>
    %105 = arith.maximumf %103, %104 : vector<2x32xf32>
    %106 = vector.extract_strided_slice %64 {offsets = [0, 256], sizes = [2, 32], strides = [1, 1]} : vector<2x320xf32> to vector<2x32xf32>
    %107 = arith.maximumf %105, %106 : vector<2x32xf32>
    %108 = vector.extract_strided_slice %64 {offsets = [0, 288], sizes = [2, 32], strides = [1, 1]} : vector<2x320xf32> to vector<2x32xf32>
    %109 = arith.maximumf %107, %108 : vector<2x32xf32>
    %110 = vector.extract_strided_slice %14 {offsets = [128, 0], sizes = [32, 1024], strides = [1, 1]} : vector<448x1024xf32> to vector<32x1024xf32>
    %cst_16 = arith.constant dense<0.000000e+00> : vector<2x1024xf32>
    %111 = tpu.matmul %109, %110, %cst_16 {dimension_numbers = #tpu.dot_dimension_numbers<[1], [0], [0], [1], [0, 0, 1, 1], [], []>} : vector<2x32xf32>, vector<32x1024xf32>, vector<2x1024xf32> -> vector<2x1024xf32>
    %112 = arith.addf %100, %111 : vector<2x1024xf32>
    %113 = vector.extract_strided_slice %12 {offsets = [0, 0], sizes = [1, 320], strides = [1, 1]} : vector<8x320xf32> to vector<1x320xf32>
    %114 = vector.extract_strided_slice %12 {offsets = [4, 0], sizes = [1, 320], strides = [1, 1]} : vector<8x320xf32> to vector<1x320xf32>
    %115 = tpu.concatenate %113, %114 in 0 : vector<1x320xf32>, vector<1x320xf32> -> vector<2x320xf32>
    %116 = vector.extract_strided_slice %12 {offsets = [1, 0], sizes = [1, 320], strides = [1, 1]} : vector<8x320xf32> to vector<1x320xf32>
    %117 = vector.extract_strided_slice %12 {offsets = [2, 0], sizes = [1, 320], strides = [1, 1]} : vector<8x320xf32> to vector<1x320xf32>
    %118 = arith.maximumf %116, %117 : vector<1x320xf32>
    %119 = vector.extract_strided_slice %12 {offsets = [5, 0], sizes = [1, 320], strides = [1, 1]} : vector<8x320xf32> to vector<1x320xf32>
    %120 = vector.extract_strided_slice %12 {offsets = [6, 0], sizes = [1, 320], strides = [1, 1]} : vector<8x320xf32> to vector<1x320xf32>
    %121 = arith.maximumf %119, %120 : vector<1x320xf32>
    %122 = tpu.concatenate %118, %121 in 0 : vector<1x320xf32>, vector<1x320xf32> -> vector<2x320xf32>
    %123 = vector.extract_strided_slice %12 {offsets = [3, 0], sizes = [1, 320], strides = [1, 1]} : vector<8x320xf32> to vector<1x320xf32>
    %124 = vector.extract_strided_slice %12 {offsets = [7, 0], sizes = [1, 320], strides = [1, 1]} : vector<8x320xf32> to vector<1x320xf32>
    %125 = tpu.concatenate %123, %124 in 0 : vector<1x320xf32>, vector<1x320xf32> -> vector<2x320xf32>
    %126 = vector.extract_strided_slice %115 {offsets = [0, 0], sizes = [2, 32], strides = [1, 1]} : vector<2x320xf32> to vector<2x32xf32>
    %127 = vector.extract_strided_slice %115 {offsets = [0, 32], sizes = [2, 32], strides = [1, 1]} : vector<2x320xf32> to vector<2x32xf32>
    %128 = arith.maximumf %126, %127 : vector<2x32xf32>
    %129 = vector.extract_strided_slice %115 {offsets = [0, 64], sizes = [2, 32], strides = [1, 1]} : vector<2x320xf32> to vector<2x32xf32>
    %130 = arith.maximumf %128, %129 : vector<2x32xf32>
    %131 = vector.extract_strided_slice %14 {offsets = [160, 0], sizes = [32, 1024], strides = [1, 1]} : vector<448x1024xf32> to vector<32x1024xf32>
    %cst_17 = arith.constant dense<0.000000e+00> : vector<2x1024xf32>
    %132 = tpu.matmul %130, %131, %cst_17 {dimension_numbers = #tpu.dot_dimension_numbers<[1], [0], [0], [1], [0, 0, 1, 1], [], []>} : vector<2x32xf32>, vector<32x1024xf32>, vector<2x1024xf32> -> vector<2x1024xf32>
    %133 = arith.addf %112, %132 : vector<2x1024xf32>
    %134 = vector.extract_strided_slice %122 {offsets = [0, 0], sizes = [2, 32], strides = [1, 1]} : vector<2x320xf32> to vector<2x32xf32>
    %135 = vector.extract_strided_slice %122 {offsets = [0, 32], sizes = [2, 32], strides = [1, 1]} : vector<2x320xf32> to vector<2x32xf32>
    %136 = arith.maximumf %134, %135 : vector<2x32xf32>
    %137 = vector.extract_strided_slice %122 {offsets = [0, 64], sizes = [2, 32], strides = [1, 1]} : vector<2x320xf32> to vector<2x32xf32>
    %138 = arith.maximumf %136, %137 : vector<2x32xf32>
    %139 = vector.extract_strided_slice %14 {offsets = [192, 0], sizes = [32, 1024], strides = [1, 1]} : vector<448x1024xf32> to vector<32x1024xf32>
    %cst_18 = arith.constant dense<0.000000e+00> : vector<2x1024xf32>
    %140 = tpu.matmul %138, %139, %cst_18 {dimension_numbers = #tpu.dot_dimension_numbers<[1], [0], [0], [1], [0, 0, 1, 1], [], []>} : vector<2x32xf32>, vector<32x1024xf32>, vector<2x1024xf32> -> vector<2x1024xf32>
    %141 = arith.addf %133, %140 : vector<2x1024xf32>
    %142 = vector.extract_strided_slice %125 {offsets = [0, 0], sizes = [2, 32], strides = [1, 1]} : vector<2x320xf32> to vector<2x32xf32>
    %143 = vector.extract_strided_slice %125 {offsets = [0, 32], sizes = [2, 32], strides = [1, 1]} : vector<2x320xf32> to vector<2x32xf32>
    %144 = arith.maximumf %142, %143 : vector<2x32xf32>
    %145 = vector.extract_strided_slice %125 {offsets = [0, 64], sizes = [2, 32], strides = [1, 1]} : vector<2x320xf32> to vector<2x32xf32>
    %146 = arith.maximumf %144, %145 : vector<2x32xf32>
    %147 = vector.extract_strided_slice %14 {offsets = [224, 0], sizes = [32, 1024], strides = [1, 1]} : vector<448x1024xf32> to vector<32x1024xf32>
    %cst_19 = arith.constant dense<0.000000e+00> : vector<2x1024xf32>
    %148 = tpu.matmul %146, %147, %cst_19 {dimension_numbers = #tpu.dot_dimension_numbers<[1], [0], [0], [1], [0, 0, 1, 1], [], []>} : vector<2x32xf32>, vector<32x1024xf32>, vector<2x1024xf32> -> vector<2x1024xf32>
    %149 = arith.addf %141, %148 : vector<2x1024xf32>
    %150 = vector.extract_strided_slice %115 {offsets = [0, 96], sizes = [2, 32], strides = [1, 1]} : vector<2x320xf32> to vector<2x32xf32>
    %151 = vector.extract_strided_slice %115 {offsets = [0, 128], sizes = [2, 32], strides = [1, 1]} : vector<2x320xf32> to vector<2x32xf32>
    %152 = arith.maximumf %150, %151 : vector<2x32xf32>
    %153 = vector.extract_strided_slice %115 {offsets = [0, 160], sizes = [2, 32], strides = [1, 1]} : vector<2x320xf32> to vector<2x32xf32>
    %154 = arith.maximumf %152, %153 : vector<2x32xf32>
    %155 = vector.extract_strided_slice %115 {offsets = [0, 192], sizes = [2, 32], strides = [1, 1]} : vector<2x320xf32> to vector<2x32xf32>
    %156 = arith.maximumf %154, %155 : vector<2x32xf32>
    %157 = vector.extract_strided_slice %14 {offsets = [256, 0], sizes = [32, 1024], strides = [1, 1]} : vector<448x1024xf32> to vector<32x1024xf32>
    %cst_20 = arith.constant dense<0.000000e+00> : vector<2x1024xf32>
    %158 = tpu.matmul %156, %157, %cst_20 {dimension_numbers = #tpu.dot_dimension_numbers<[1], [0], [0], [1], [0, 0, 1, 1], [], []>} : vector<2x32xf32>, vector<32x1024xf32>, vector<2x1024xf32> -> vector<2x1024xf32>
    %159 = arith.addf %149, %158 : vector<2x1024xf32>
    %160 = vector.extract_strided_slice %122 {offsets = [0, 96], sizes = [2, 32], strides = [1, 1]} : vector<2x320xf32> to vector<2x32xf32>
    %161 = vector.extract_strided_slice %122 {offsets = [0, 128], sizes = [2, 32], strides = [1, 1]} : vector<2x320xf32> to vector<2x32xf32>
    %162 = arith.maximumf %160, %161 : vector<2x32xf32>
    %163 = vector.extract_strided_slice %122 {offsets = [0, 160], sizes = [2, 32], strides = [1, 1]} : vector<2x320xf32> to vector<2x32xf32>
    %164 = arith.maximumf %162, %163 : vector<2x32xf32>
    %165 = vector.extract_strided_slice %122 {offsets = [0, 192], sizes = [2, 32], strides = [1, 1]} : vector<2x320xf32> to vector<2x32xf32>
    %166 = arith.maximumf %164, %165 : vector<2x32xf32>
    %167 = vector.extract_strided_slice %14 {offsets = [288, 0], sizes = [32, 1024], strides = [1, 1]} : vector<448x1024xf32> to vector<32x1024xf32>
    %cst_21 = arith.constant dense<0.000000e+00> : vector<2x1024xf32>
    %168 = tpu.matmul %166, %167, %cst_21 {dimension_numbers = #tpu.dot_dimension_numbers<[1], [0], [0], [1], [0, 0, 1, 1], [], []>} : vector<2x32xf32>, vector<32x1024xf32>, vector<2x1024xf32> -> vector<2x1024xf32>
    %169 = arith.addf %159, %168 : vector<2x1024xf32>
    %170 = vector.extract_strided_slice %125 {offsets = [0, 96], sizes = [2, 32], strides = [1, 1]} : vector<2x320xf32> to vector<2x32xf32>
    %171 = vector.extract_strided_slice %125 {offsets = [0, 128], sizes = [2, 32], strides = [1, 1]} : vector<2x320xf32> to vector<2x32xf32>
    %172 = arith.maximumf %170, %171 : vector<2x32xf32>
    %173 = vector.extract_strided_slice %125 {offsets = [0, 160], sizes = [2, 32], strides = [1, 1]} : vector<2x320xf32> to vector<2x32xf32>
    %174 = arith.maximumf %172, %173 : vector<2x32xf32>
    %175 = vector.extract_strided_slice %125 {offsets = [0, 192], sizes = [2, 32], strides = [1, 1]} : vector<2x320xf32> to vector<2x32xf32>
    %176 = arith.maximumf %174, %175 : vector<2x32xf32>
    %177 = vector.extract_strided_slice %14 {offsets = [320, 0], sizes = [32, 1024], strides = [1, 1]} : vector<448x1024xf32> to vector<32x1024xf32>
    %cst_22 = arith.constant dense<0.000000e+00> : vector<2x1024xf32>
    %178 = tpu.matmul %176, %177, %cst_22 {dimension_numbers = #tpu.dot_dimension_numbers<[1], [0], [0], [1], [0, 0, 1, 1], [], []>} : vector<2x32xf32>, vector<32x1024xf32>, vector<2x1024xf32> -> vector<2x1024xf32>
    %179 = arith.addf %169, %178 : vector<2x1024xf32>
    %180 = vector.extract_strided_slice %115 {offsets = [0, 224], sizes = [2, 32], strides = [1, 1]} : vector<2x320xf32> to vector<2x32xf32>
    %181 = vector.extract_strided_slice %115 {offsets = [0, 256], sizes = [2, 32], strides = [1, 1]} : vector<2x320xf32> to vector<2x32xf32>
    %182 = arith.maximumf %180, %181 : vector<2x32xf32>
    %183 = vector.extract_strided_slice %115 {offsets = [0, 288], sizes = [2, 32], strides = [1, 1]} : vector<2x320xf32> to vector<2x32xf32>
    %184 = arith.maximumf %182, %183 : vector<2x32xf32>
    %185 = vector.extract_strided_slice %14 {offsets = [352, 0], sizes = [32, 1024], strides = [1, 1]} : vector<448x1024xf32> to vector<32x1024xf32>
    %cst_23 = arith.constant dense<0.000000e+00> : vector<2x1024xf32>
    %186 = tpu.matmul %184, %185, %cst_23 {dimension_numbers = #tpu.dot_dimension_numbers<[1], [0], [0], [1], [0, 0, 1, 1], [], []>} : vector<2x32xf32>, vector<32x1024xf32>, vector<2x1024xf32> -> vector<2x1024xf32>
    %187 = arith.addf %179, %186 : vector<2x1024xf32>
    %188 = vector.extract_strided_slice %122 {offsets = [0, 224], sizes = [2, 32], strides = [1, 1]} : vector<2x320xf32> to vector<2x32xf32>
    %189 = vector.extract_strided_slice %122 {offsets = [0, 256], sizes = [2, 32], strides = [1, 1]} : vector<2x320xf32> to vector<2x32xf32>
    %190 = arith.maximumf %188, %189 : vector<2x32xf32>
    %191 = vector.extract_strided_slice %122 {offsets = [0, 288], sizes = [2, 32], strides = [1, 1]} : vector<2x320xf32> to vector<2x32xf32>
    %192 = arith.maximumf %190, %191 : vector<2x32xf32>
    %193 = vector.extract_strided_slice %14 {offsets = [384, 0], sizes = [32, 1024], strides = [1, 1]} : vector<448x1024xf32> to vector<32x1024xf32>
    %cst_24 = arith.constant dense<0.000000e+00> : vector<2x1024xf32>
    %194 = tpu.matmul %192, %193, %cst_24 {dimension_numbers = #tpu.dot_dimension_numbers<[1], [0], [0], [1], [0, 0, 1, 1], [], []>} : vector<2x32xf32>, vector<32x1024xf32>, vector<2x1024xf32> -> vector<2x1024xf32>
    %195 = arith.addf %187, %194 : vector<2x1024xf32>
    %196 = vector.extract_strided_slice %125 {offsets = [0, 224], sizes = [2, 32], strides = [1, 1]} : vector<2x320xf32> to vector<2x32xf32>
    %197 = vector.extract_strided_slice %125 {offsets = [0, 256], sizes = [2, 32], strides = [1, 1]} : vector<2x320xf32> to vector<2x32xf32>
    %198 = arith.maximumf %196, %197 : vector<2x32xf32>
    %199 = vector.extract_strided_slice %125 {offsets = [0, 288], sizes = [2, 32], strides = [1, 1]} : vector<2x320xf32> to vector<2x32xf32>
    %200 = arith.maximumf %198, %199 : vector<2x32xf32>
    %201 = vector.extract_strided_slice %14 {offsets = [416, 0], sizes = [32, 1024], strides = [1, 1]} : vector<448x1024xf32> to vector<32x1024xf32>
    %cst_25 = arith.constant dense<0.000000e+00> : vector<2x1024xf32>
    %202 = tpu.matmul %200, %201, %cst_25 {dimension_numbers = #tpu.dot_dimension_numbers<[1], [0], [0], [1], [0, 0, 1, 1], [], []>} : vector<2x32xf32>, vector<32x1024xf32>, vector<2x1024xf32> -> vector<2x1024xf32>
    %203 = arith.addf %195, %202 : vector<2x1024xf32>
    %c0_26 = arith.constant 0 : index
    %c0_27 = arith.constant 0 : index
    %204 = vector.load %arg6[%c0_26, %c0_27] : memref<1x1024xf32, #tpu.memory_space<vmem>>, vector<1x1024xf32>
    %205 = vector.broadcast %204 : vector<1x1024xf32> to vector<2x1024xf32>
    %206 = arith.addf %203, %205 : vector<2x1024xf32>
    %c0_28 = arith.constant 0 : index
    %c0_29 = arith.constant 0 : index
    %207 = vector.load %arg7[%c0_28, %c0_29] : memref<1024x5xf32, #tpu.memory_space<vmem>>, vector<1024x5xf32>
    %cst_30 = arith.constant dense<0.000000e+00> : vector<2x5xf32>
    %208 = tpu.matmul %206, %207, %cst_30 {dimension_numbers = #tpu.dot_dimension_numbers<[1], [0], [0], [1], [0, 0, 1, 1], [], []>} : vector<2x1024xf32>, vector<1024x5xf32>, vector<2x5xf32> -> vector<2x5xf32>
    %c0_31 = arith.constant 0 : index
    %c0_32 = arith.constant 0 : index
    %209 = vector.load %arg8[%c0_31, %c0_32] : memref<1x5xf32, #tpu.memory_space<vmem>>, vector<1x5xf32>
    %210 = vector.broadcast %209 : vector<1x5xf32> to vector<2x5xf32>
    %211 = arith.addf %208, %210 : vector<2x5xf32>
    %c0_33 = arith.constant 0 : index
    %c0_34 = arith.constant 0 : index
    %212 = vector.load %arg9[%c0_33, %c0_34] : memref<2x5xf32, #tpu.memory_space<vmem>>, vector<2x5xf32>
    tpu.vector_store %arg9[%c0_33, %c0_34], %211 {strides = array<i32>} : memref<2x5xf32, #tpu.memory_space<vmem>>, vector<2x5xf32>,
    return
  }
}

</mosaic_0001>

<llo_original>
// kernel: _lambda_.1
$region0: #{_lambda_.1}
  #allocation0 [shape = 'u32[]', space=smem, size = 0x4, offset = 0x4, fixed_abs, tag = 'smem constant byte address 0x4 - core index']
  #allocation1 [shape = 'u32[72,128]{1,0:T(1,128)}', space=vmem, size = 0x9000, scoped, tag = 'internal scratch']
  %s0 = inlined_call_operand.vmem [shape: f32[8,84], index: 0, kind: input, shape index: {}]
  %s1 = inlined_call_operand.vmem [shape: bf16[84,304], index: 1, kind: input, shape index: {}]
  %s2 = inlined_call_operand.vmem [shape: f32[1,304], index: 2, kind: input, shape index: {}]
  %s3 = inlined_call_operand.vmem [shape: bf16[304,320], index: 3, kind: input, shape index: {}]
  %s4 = inlined_call_operand.vmem [shape: f32[1,320], index: 4, kind: input, shape index: {}]
  %s5 = inlined_call_operand.hbm [shape: bf16[448,1024], index: 5, kind: input, shape index: {}]
  %s6 = inlined_call_operand.vmem [shape: f32[1,1024], index: 6, kind: input, shape index: {}]
  %s7 = inlined_call_operand.vmem [shape: f32[1024,5], index: 7, kind: input, shape index: {}]
  %s8 = inlined_call_operand.vmem [shape: f32[1,5], index: 8, kind: input, shape index: {}]
  %s9 = inlined_call_operand.hbm [shape: f32[2,5], index: 9, kind: output, shape index: {}]
  %s10 = sld [smem:[#allocation0]]
  $region50: #{_lambda_.1} parent=0
    _
  %s12 = ssub.s32 1, %s10
  %s13 = scalar_select 0, %s12, %s10
  $region1: #{_lambda_.1} parent=0
    #allocation2 [shape = 'u8[917504]{0}', space=vmem, size = 0xe0000, scoped, tag = 'input window, operand 5, single buffered']
    #allocation3 [shape = 's32[1]{0}', space=sflag, size = 0x4, scoped, tag = 'scoped memory for _lambda_.1']
    #allocation4 [shape = 's32[1]{0}', space=sflag, size = 0x4, scoped, tag = 'scoped memory for _lambda_.1']
    #allocation5 [shape = 'u8[1024]{0}', space=vmem, size = 0x400, scoped, tag = 'output window, operand 0, single buffered']
    %14 = vsyncpa [#allocation3], 0
    %15 = vsyncpa [#allocation4], 0
    // Predicated region
    $region2: #{_lambda_.1} parent=1 // pred_check
      _
    $region3: #{_lambda_.1} parent=1 // pred_check_branch
      %17 = sbr.rel (0) target = $region5
    $region4: #{_lambda_.1} parent=1 // pred_region
      _
    $region5: #{_lambda_.1} parent=1 // pred_fallthru
      _
    // Predicated region
    $region6: #{_lambda_.1} parent=1 // pred_check
      _
    $region7: #{_lambda_.1} parent=1 // pred_check_branch
      %19 = sbr.rel (0) target = $region9
    $region8: #{_lambda_.1} parent=1 // pred_region
      _
    $region9: #{_lambda_.1} parent=1 // pred_fallthru
      _
    // Predicated region
    $region10: #{_lambda_.1} parent=1 // pred_check
      _
    $region11: #{_lambda_.1} parent=1 // pred_check_branch
      %21 = sbr.rel (0) target = $region13
    $region12: #{_lambda_.1} parent=1 // pred_region
      _
    $region13: #{_lambda_.1} parent=1 // pred_fallthru
      _
    // Predicated region
    $region14: #{_lambda_.1} parent=1 // pred_check
      _
    $region15: #{_lambda_.1} parent=1 // pred_check_branch
      %23 = sbr.rel (0) target = $region17
    $region16: #{_lambda_.1} parent=1 // pred_region
      _
    $region17: #{_lambda_.1} parent=1 // pred_fallthru
      _
    // Predicated region
    $region18: #{_lambda_.1} parent=1 // pred_check
      _
    $region19: #{_lambda_.1} parent=1 // pred_check_branch
      %25 = sbr.rel (0) target = $region21
    $region20: #{_lambda_.1} parent=1 // pred_region
      _
    $region21: #{_lambda_.1} parent=1 // pred_fallthru
      _
    // Predicated region
    $region22: #{_lambda_.1} parent=1 // pred_check
      _
    $region23: #{_lambda_.1} parent=1 // pred_check_branch
      %27 = sbr.rel (0) target = $region25
    $region24: #{_lambda_.1} parent=1 // pred_region
      %29 = vsyncadd [#allocation3], 0
      %s30 = sshll.u32 %s5, 4
      %s31 = int_to_ptr.hbm [resolvable:$true] %s30
      %s32 = sshll.u32 [#allocation2], 4
      %s33 = int_to_ptr.vmem [resolvable:$true] %s32
      %38 = dma.hbm_to_vmem [thread:$0]  %s31, 28672, %s33, [#allocation3], 512, 512, 32
    $region25: #{_lambda_.1} parent=1 // pred_fallthru
      _
    // Predicated region
    $region26: #{_lambda_.1} parent=1 // pred_check
      _
    $region27: #{_lambda_.1} parent=1 // pred_check_branch
      %40 = sbr.rel (0) target = $region29
    $region28: #{_lambda_.1} parent=1 // pred_region
      _
    $region29: #{_lambda_.1} parent=1 // pred_fallthru
      _
    // Predicated region
    $region30: #{_lambda_.1} parent=1 // pred_check
      _
    $region31: #{_lambda_.1} parent=1 // pred_check_branch
      %42 = sbr.rel (0) target = $region33
    $region32: #{_lambda_.1} parent=1 // pred_region
      _
    $region33: #{_lambda_.1} parent=1 // pred_fallthru
      _
    // Predicated region
    $region34: #{_lambda_.1} parent=1 // pred_check
      _
    $region35: #{_lambda_.1} parent=1 // pred_check_branch
      %44 = sbr.rel (0) target = $region37
    $region36: #{_lambda_.1} parent=1 // pred_region
      _
    $region37: #{_lambda_.1} parent=1 // pred_fallthru
      _
    // Predicated region
    $region38: #{_lambda_.1} parent=1 // pred_check
      _
    $region39: #{_lambda_.1} parent=1 // pred_check_branch
      %46 = sbr.rel (0) target = $region41
    $region40: #{_lambda_.1} parent=1 // pred_region
      %48 = dma.done [#allocation3], 28672
    $region41: #{_lambda_.1} parent=1 // pred_fallthru
      _
    %v49 = vld [vmem:[%s0] sm:$0xff]
    %v50 = vld [vmem:[%s1] sm:$0xff]
    %v51 = vld [vmem:[%s1 + $0x8] sm:$0xf]
    %v52 = vld [vmem:[%s1 + $0xc] sm:$0xff]
    %v53 = vld [vmem:[%s1 + $0x14] sm:$0xf]
    %v54 = vld [vmem:[%s1 + $0x18] sm:$0xff]
    %v55 = vld [vmem:[%s1 + $0x20] sm:$0xf]
    %v56 = vld [vmem:[%s1 + $0x24] sm:$0xff]
    %v57 = vld [vmem:[%s1 + $0x2c] sm:$0xf]
    %v58 = vld [vmem:[%s1 + $0x30] sm:$0xff]
    %v59 = vld [vmem:[%s1 + $0x38] sm:$0xf]
    %v60 = vld [vmem:[%s1 + $0x3c] sm:$0xff]
    %v61 = vld [vmem:[%s1 + $0x44] sm:$0xf]
    %v62 = vld [vmem:[%s1 + $0x48] sm:$0xff]
    %v63 = vld [vmem:[%s1 + $0x50] sm:$0xf]
    %v64 = vld [vmem:[%s1 + $0x54] sm:$0xff]
    %v65 = vld [vmem:[%s1 + $0x5c] sm:$0xf]
    %v66 = vld [vmem:[%s1 + $0x60] sm:$0xff]
    %v67 = vld [vmem:[%s1 + $0x68] sm:$0xf]
    %v68 = vld [vmem:[%s1 + $0x6c] sm:$0xff]
    %v69 = vld [vmem:[%s1 + $0x74] sm:$0xf]
    %v70 = vld [vmem:[%s1 + $0x78] sm:$0x33]
    %v71 = vld [vmem:[%s1 + $0x80] sm:$0x3]
    %v72 = vunpack.c.l.bf16 %v50
    %v73 = vunpack.c.h.bf16 %v50
    %v74 = vunpack.c.l.bf16 %v51
    %v75 = vunpack.c.l.bf16 %v52
    %v76 = vunpack.c.h.bf16 %v52
    %v77 = vunpack.c.l.bf16 %v53
    %v78 = vunpack.c.l.bf16 %v54
    %v79 = vunpack.c.h.bf16 %v54
    %v80 = vunpack.c.l.bf16 %v55
    %v81 = vunpack.c.l.bf16 %v56
    %v82 = vunpack.c.h.bf16 %v56
    %v83 = vunpack.c.l.bf16 %v57
    %v84 = vunpack.c.l.bf16 %v58
    %v85 = vunpack.c.h.bf16 %v58
    %v86 = vunpack.c.l.bf16 %v59
    %v87 = vunpack.c.l.bf16 %v60
    %v88 = vunpack.c.h.bf16 %v60
    %v89 = vunpack.c.l.bf16 %v61
    %v90 = vunpack.c.l.bf16 %v62
    %v91 = vunpack.c.h.bf16 %v62
    %v92 = vunpack.c.l.bf16 %v63
    %v93 = vunpack.c.l.bf16 %v64
    %v94 = vunpack.c.h.bf16 %v64
    %v95 = vunpack.c.l.bf16 %v65
    %v96 = vunpack.c.l.bf16 %v66
    %v97 = vunpack.c.h.bf16 %v66
    %v98 = vunpack.c.l.bf16 %v67
    %v99 = vunpack.c.l.bf16 %v68
    %v100 = vunpack.c.h.bf16 %v68
    %v101 = vunpack.c.l.bf16 %v69
    %v102 = vunpack.c.l.bf16 %v70
    %v103 = vunpack.c.h.bf16 %v70
    %v104 = vunpack.c.l.bf16 %v71
    %v105 = vld [vmem:[%s2] sm:$0x7]
    %v107 = vperm.slane %v105, 0
    %v108 = vperm.slane %v105, 1
    %v109 = vperm.slane %v105, 2
    %vm113 = vcmask 687104
    %v115 = vsel %vm113, %v49, 0
    %vm117 = vcmask 1043456
    %v119 = vsel %vm117, %v102, 0
    %v122 = vsel %vm117, %v103, 0
    %v125 = vsel %vm117, %v104, 0
    %127 = vmatpush.msra.mxu0 0.0
    %128 = vmatpush.msra.mxu0 0.0
    %129 = vmatpush.msra.mxu0 0.0
    %130 = vmatpush.msra.mxu0 0.0
    %131 = vmatpush.msra.mxu0 0.0
    %132 = vmatpush.msra.mxu0 %v119
    %133 = vmatpush.msra.mxu0 %v99
    %134 = vmatpush.msra.mxu0 %v96
    %135 = vmatpush.msra.mxu0 %v93
    %136 = vmatpush.msra.mxu0 %v90
    %137 = vmatpush.msra.mxu0 %v87
    %138 = vmatpush.msra.mxu0 %v84
    %139 = vmatpush.msra.mxu0 %v81
    %140 = vmatpush.msra.mxu0 %v78
    %141 = vmatpush.msra.mxu0 %v75
    %142 = vmatpush.msra.mxu0 %v72
    %143 = vmatmul.f32.gmra.mxu0 %v115
    %v144 = vpop.f32.mrf.mxu0
    %v145 = vadd.f32 %v107, %v144
    %146 = vdwg.mxu0
    %147 = vmatpush.msra.mxu0 0.0
    %148 = vmatpush.msra.mxu0 0.0
    %149 = vmatpush.msra.mxu0 0.0
    %150 = vmatpush.msra.mxu0 0.0
    %151 = vmatpush.msra.mxu0 0.0
    %152 = vmatpush.msra.mxu0 %v122
    %153 = vmatpush.msra.mxu0 %v100
    %154 = vmatpush.msra.mxu0 %v97
    %155 = vmatpush.msra.mxu0 %v94
    %156 = vmatpush.msra.mxu0 %v91
    %157 = vmatpush.msra.mxu0 %v88
    %158 = vmatpush.msra.mxu0 %v85
    %159 = vmatpush.msra.mxu0 %v82
    %160 = vmatpush.msra.mxu0 %v79
    %161 = vmatpush.msra.mxu0 %v76
    %162 = vmatpush.msra.mxu0 %v73
    %163 = vmatmul.f32.gmra.mxu0 %v115
    %v164 = vpop.f32.mrf.mxu0
    %v165 = vadd.f32 %v108, %v164
    %166 = vdwg.mxu0
    %167 = vmatpush.msra.mxu0 0.0
    %168 = vmatpush.msra.mxu0 0.0
    %169 = vmatpush.msra.mxu0 0.0
    %170 = vmatpush.msra.mxu0 0.0
    %171 = vmatpush.msra.mxu0 0.0
    %172 = vmatpush.msra.mxu0 %v125
    %173 = vmatpush.msra.mxu0 %v101
    %174 = vmatpush.msra.mxu0 %v98
    %175 = vmatpush.msra.mxu0 %v95
    %176 = vmatpush.msra.mxu0 %v92
    %177 = vmatpush.msra.mxu0 %v89
    %178 = vmatpush.msra.mxu0 %v86
    %179 = vmatpush.msra.mxu0 %v83
    %180 = vmatpush.msra.mxu0 %v80
    %181 = vmatpush.msra.mxu0 %v77
    %182 = vmatpush.msra.mxu0 %v74
    %183 = vmatmul.f32.gmra.mxu0 %v115
    %v184 = vpop.f32.mrf.mxu0
    %v185 = vadd.f32 %v109, %v184
    %186 = vdwg.mxu0
    %v187 = vld [vmem:[%s3] sm:$0xff]
    %v188 = vld [vmem:[%s3 + $0x8] sm:$0xf]
    %v189 = vld [vmem:[%s3 + $0xc] sm:$0xff]
    %v190 = vld [vmem:[%s3 + $0x14] sm:$0xf]
    %v191 = vld [vmem:[%s3 + $0x18] sm:$0xff]
    %v192 = vld [vmem:[%s3 + $0x20] sm:$0xf]
    %v193 = vld [vmem:[%s3 + $0x24] sm:$0xff]
    %v194 = vld [vmem:[%s3 + $0x2c] sm:$0xf]
    %v195 = vld [vmem:[%s3 + $0x30] sm:$0xff]
    %v196 = vld [vmem:[%s3 + $0x38] sm:$0xf]
    %v197 = vld [vmem:[%s3 + $0x3c] sm:$0xff]
    %v198 = vld [vmem:[%s3 + $0x44] sm:$0xf]
    %v199 = vld [vmem:[%s3 + $0x48] sm:$0xff]
    %v200 = vld [vmem:[%s3 + $0x50] sm:$0xf]
    %v201 = vld [vmem:[%s3 + $0x54] sm:$0xff]
    %v202 = vld [vmem:[%s3 + $0x5c] sm:$0xf]
    %v203 = vld [vmem:[%s3 + $0x60] sm:$0xff]
    %v204 = vld [vmem:[%s3 + $0x68] sm:$0xf]
    %v205 = vld [vmem:[%s3 + $0x6c] sm:$0xff]
    %v206 = vld [vmem:[%s3 + $0x74] sm:$0xf]
    %v207 = vld [vmem:[%s3 + $0x78] sm:$0xff]
    %v208 = vld [vmem:[%s3 + $0x80] sm:$0xf]
    %v209 = vld [vmem:[%s3 + $0x84] sm:$0xff]
    %v210 = vld [vmem:[%s3 + $0x8c] sm:$0xf]
    %v211 = vld [vmem:[%s3 + $0x90] sm:$0xff]
    %v212 = vld [vmem:[%s3 + $0x98] sm:$0xf]
    %v213 = vld [vmem:[%s3 + $0x9c] sm:$0xff]
    %v214 = vld [vmem:[%s3 + $0xa4] sm:$0xf]
    %v215 = vld [vmem:[%s3 + $0xa8] sm:$0xff]
    %v216 = vld [vmem:[%s3 + $0xb0] sm:$0xf]
    %v217 = vld [vmem:[%s3 + $0xb4] sm:$0xff]
    %v218 = vld [vmem:[%s3 + $0xbc] sm:$0xf]
    %v219 = vld [vmem:[%s3 + $0xc0] sm:$0xff]
    %v220 = vld [vmem:[%s3 + $0xc8] sm:$0xf]
    %v221 = vld [vmem:[%s3 + $0xcc] sm:$0xff]
    %v222 = vld [vmem:[%s3 + $0xd4] sm:$0xf]
    %v223 = vld [vmem:[%s3 + $0xd8] sm:$0xff]
    %v224 = vld [vmem:[%s3 + $0xe0] sm:$0xf]
    %v225 = vld [vmem:[%s3 + $0xe4] sm:$0xff]
    %v226 = vld [vmem:[%s3 + $0xec] sm:$0xf]
    %v227 = vld [vmem:[%s3 + $0xf0] sm:$0xff]
    %v228 = vld [vmem:[%s3 + $0xf8] sm:$0xf]
    %v229 = vld [vmem:[%s3 + $0xfc] sm:$0xff]
    %v230 = vld [vmem:[%s3 + $0x104] sm:$0xf]
    %v231 = vld [vmem:[%s3 + $0x108] sm:$0xff]
    %v232 = vld [vmem:[%s3 + $0x110] sm:$0xf]
    %v233 = vld [vmem:[%s3 + $0x114] sm:$0xff]
    %v234 = vld [vmem:[%s3 + $0x11c] sm:$0xf]
    %v235 = vld [vmem:[%s3 + $0x120] sm:$0xff]
    %v236 = vld [vmem:[%s3 + $0x128] sm:$0xf]
    %v237 = vld [vmem:[%s3 + $0x12c] sm:$0xff]
    %v238 = vld [vmem:[%s3 + $0x134] sm:$0xf]
    %v239 = vld [vmem:[%s3 + $0x138] sm:$0xff]
    %v240 = vld [vmem:[%s3 + $0x140] sm:$0xf]
    %v241 = vld [vmem:[%s3 + $0x144] sm:$0xff]
    %v242 = vld [vmem:[%s3 + $0x14c] sm:$0xf]
    %v243 = vld [vmem:[%s3 + $0x150] sm:$0xff]
    %v244 = vld [vmem:[%s3 + $0x158] sm:$0xf]
    %v245 = vld [vmem:[%s3 + $0x15c] sm:$0xff]
    %v246 = vld [vmem:[%s3 + $0x164] sm:$0xf]
    %v247 = vld [vmem:[%s3 + $0x168] sm:$0xff]
    %v248 = vld [vmem:[%s3 + $0x170] sm:$0xf]
    %v249 = vld [vmem:[%s3 + $0x174] sm:$0xff]
    %v250 = vld [vmem:[%s3 + $0x17c] sm:$0xf]
    %v251 = vld [vmem:[%s3 + $0x180] sm:$0xff]
    %v252 = vld [vmem:[%s3 + $0x188] sm:$0xf]
    %v253 = vld [vmem:[%s3 + $0x18c] sm:$0xff]
    %v254 = vld [vmem:[%s3 + $0x194] sm:$0xf]
    %v255 = vld [vmem:[%s3 + $0x198] sm:$0xff]
    %v256 = vld [vmem:[%s3 + $0x1a0] sm:$0xf]
    %v257 = vld [vmem:[%s3 + $0x1a4] sm:$0xff]
    %v258 = vld [vmem:[%s3 + $0x1ac] sm:$0xf]
    %v259 = vld [vmem:[%s3 + $0x1b0] sm:$0xff]
    %v260 = vld [vmem:[%s3 + $0x1b8] sm:$0xf]
    %v261 = vld [vmem:[%s3 + $0x1bc] sm:$0xff]
    %v262 = vld [vmem:[%s3 + $0x1c4] sm:$0xf]
    %v263 = vunpack.c.l.bf16 %v187
    %v264 = vunpack.c.h.bf16 %v187
    %v265 = vunpack.c.l.bf16 %v188
    %v266 = vunpack.c.l.bf16 %v189
    %v267 = vunpack.c.h.bf16 %v189
    %v268 = vunpack.c.l.bf16 %v190
    %v269 = vunpack.c.l.bf16 %v191
    %v270 = vunpack.c.h.bf16 %v191
    %v271 = vunpack.c.l.bf16 %v192
    %v272 = vunpack.c.l.bf16 %v193
    %v273 = vunpack.c.h.bf16 %v193
    %v274 = vunpack.c.l.bf16 %v194
    %v275 = vunpack.c.l.bf16 %v195
    %v276 = vunpack.c.h.bf16 %v195
    %v277 = vunpack.c.l.bf16 %v196
    %v278 = vunpack.c.l.bf16 %v197
    %v279 = vunpack.c.h.bf16 %v197
    %v280 = vunpack.c.l.bf16 %v198
    %v281 = vunpack.c.l.bf16 %v199
    %v282 = vunpack.c.h.bf16 %v199
    %v283 = vunpack.c.l.bf16 %v200
    %v284 = vunpack.c.l.bf16 %v201
    %v285 = vunpack.c.h.bf16 %v201
    %v286 = vunpack.c.l.bf16 %v202
    %v287 = vunpack.c.l.bf16 %v203
    %v288 = vunpack.c.h.bf16 %v203
    %v289 = vunpack.c.l.bf16 %v204
    %v290 = vunpack.c.l.bf16 %v205
    %v291 = vunpack.c.h.bf16 %v205
    %v292 = vunpack.c.l.bf16 %v206
    %v293 = vunpack.c.l.bf16 %v207
    %v294 = vunpack.c.h.bf16 %v207
    %v295 = vunpack.c.l.bf16 %v208
    %v296 = vunpack.c.l.bf16 %v209
    %v297 = vunpack.c.h.bf16 %v209
    %v298 = vunpack.c.l.bf16 %v210
    %v299 = vunpack.c.l.bf16 %v211
    %v300 = vunpack.c.h.bf16 %v211
    %v301 = vunpack.c.l.bf16 %v212
    %v302 = vunpack.c.l.bf16 %v213
    %v303 = vunpack.c.h.bf16 %v213
    %v304 = vunpack.c.l.bf16 %v214
    %v305 = vunpack.c.l.bf16 %v215
    %v306 = vunpack.c.h.bf16 %v215
    %v307 = vunpack.c.l.bf16 %v216
    %v308 = vunpack.c.l.bf16 %v217
    %v309 = vunpack.c.h.bf16 %v217
    %v310 = vunpack.c.l.bf16 %v218
    %v311 = vunpack.c.l.bf16 %v219
    %v312 = vunpack.c.h.bf16 %v219
    %v313 = vunpack.c.l.bf16 %v220
    %v314 = vunpack.c.l.bf16 %v221
    %v315 = vunpack.c.h.bf16 %v221
    %v316 = vunpack.c.l.bf16 %v222
    %v317 = vunpack.c.l.bf16 %v223
    %v318 = vunpack.c.h.bf16 %v223
    %v319 = vunpack.c.l.bf16 %v224
    %v320 = vunpack.c.l.bf16 %v225
    %v321 = vunpack.c.h.bf16 %v225
    %v322 = vunpack.c.l.bf16 %v226
    %v323 = vunpack.c.l.bf16 %v227
    %v324 = vunpack.c.h.bf16 %v227
    %v325 = vunpack.c.l.bf16 %v228
    %v326 = vunpack.c.l.bf16 %v229
    %v327 = vunpack.c.h.bf16 %v229
    %v328 = vunpack.c.l.bf16 %v230
    %v329 = vunpack.c.l.bf16 %v231
    %v330 = vunpack.c.h.bf16 %v231
    %v331 = vunpack.c.l.bf16 %v232
    %v332 = vunpack.c.l.bf16 %v233
    %v333 = vunpack.c.h.bf16 %v233
    %v334 = vunpack.c.l.bf16 %v234
    %v335 = vunpack.c.l.bf16 %v235
    %v336 = vunpack.c.h.bf16 %v235
    %v337 = vunpack.c.l.bf16 %v236
    %v338 = vunpack.c.l.bf16 %v237
    %v339 = vunpack.c.h.bf16 %v237
    %v340 = vunpack.c.l.bf16 %v238
    %v341 = vunpack.c.l.bf16 %v239
    %v342 = vunpack.c.h.bf16 %v239
    %v343 = vunpack.c.l.bf16 %v240
    %v344 = vunpack.c.l.bf16 %v241
    %v345 = vunpack.c.h.bf16 %v241
    %v346 = vunpack.c.l.bf16 %v242
    %v347 = vunpack.c.l.bf16 %v243
    %v348 = vunpack.c.h.bf16 %v243
    %v349 = vunpack.c.l.bf16 %v244
    %v350 = vunpack.c.l.bf16 %v245
    %v351 = vunpack.c.h.bf16 %v245
    %v352 = vunpack.c.l.bf16 %v246
    %v353 = vunpack.c.l.bf16 %v247
    %v354 = vunpack.c.h.bf16 %v247
    %v355 = vunpack.c.l.bf16 %v248
    %v356 = vunpack.c.l.bf16 %v249
    %v357 = vunpack.c.h.bf16 %v249
    %v358 = vunpack.c.l.bf16 %v250
    %v359 = vunpack.c.l.bf16 %v251
    %v360 = vunpack.c.h.bf16 %v251
    %v361 = vunpack.c.l.bf16 %v252
    %v362 = vunpack.c.l.bf16 %v253
    %v363 = vunpack.c.h.bf16 %v253
    %v364 = vunpack.c.l.bf16 %v254
    %v365 = vunpack.c.l.bf16 %v255
    %v366 = vunpack.c.h.bf16 %v255
    %v367 = vunpack.c.l.bf16 %v256
    %v368 = vunpack.c.l.bf16 %v257
    %v369 = vunpack.c.h.bf16 %v257
    %v370 = vunpack.c.l.bf16 %v258
    %v371 = vunpack.c.l.bf16 %v259
    %v372 = vunpack.c.h.bf16 %v259
    %v373 = vunpack.c.l.bf16 %v260
    %v374 = vunpack.c.l.bf16 %v261
    %v375 = vunpack.c.h.bf16 %v261
    %v376 = vunpack.c.l.bf16 %v262
    %v377 = vld [vmem:[%s4] sm:$0x7]
    %v379 = vperm.slane %v377, 0
    %v380 = vperm.slane %v377, 1
    %v381 = vperm.slane %v377, 2
    %vm385 = vcmask 392192
    %v387 = vsel %vm385, %v185, 0
    %389 = vmatpush.msra.mxu0 %v308
    %390 = vmatpush.msra.mxu0 %v305
    %391 = vmatpush.msra.mxu0 %v302
    %392 = vmatpush.msra.mxu0 %v299
    %393 = vmatpush.msra.mxu0 %v296
    %394 = vmatpush.msra.mxu0 %v293
    %395 = vmatpush.msra.mxu0 %v290
    %396 = vmatpush.msra.mxu0 %v287
    %397 = vmatpush.msra.mxu0 %v284
    %398 = vmatpush.msra.mxu0 %v281
    %399 = vmatpush.msra.mxu0 %v278
    %400 = vmatpush.msra.mxu0 %v275
    %401 = vmatpush.msra.mxu0 %v272
    %402 = vmatpush.msra.mxu0 %v269
    %403 = vmatpush.msra.mxu0 %v266
    %404 = vmatpush.msra.mxu0 %v263
    %405 = vmatmul.f32.gmra.mxu0 %v145
    %v406 = vpop.f32.mrf.mxu0
    %v407 = vadd.f32 %v379, %v406
    %408 = vdwg.mxu0
    %409 = vmatpush.msra.mxu0 %v356
    %410 = vmatpush.msra.mxu0 %v353
    %411 = vmatpush.msra.mxu0 %v350
    %412 = vmatpush.msra.mxu0 %v347
    %413 = vmatpush.msra.mxu0 %v344
    %414 = vmatpush.msra.mxu0 %v341
    %415 = vmatpush.msra.mxu0 %v338
    %416 = vmatpush.msra.mxu0 %v335
    %417 = vmatpush.msra.mxu0 %v332
    %418 = vmatpush.msra.mxu0 %v329
    %419 = vmatpush.msra.mxu0 %v326
    %420 = vmatpush.msra.mxu0 %v323
    %421 = vmatpush.msra.mxu0 %v320
    %422 = vmatpush.msra.mxu0 %v317
    %423 = vmatpush.msra.mxu0 %v314
    %424 = vmatpush.msra.mxu0 %v311
    %425 = vmatmul.f32.gmra.mxu0 %v165
    %v426 = vpop.f32.mrf.mxu0
    %v427 = vadd.f32 %v407, %v426
    %428 = vdwg.mxu0
    %429 = vmatpush.msra.mxu0 0.0
    %430 = vmatpush.msra.mxu0 0.0
    %431 = vmatpush.msra.mxu0 0.0
    %432 = vmatpush.msra.mxu0 0.0
    %433 = vmatpush.msra.mxu0 0.0
    %434 = vmatpush.msra.mxu0 0.0
    %435 = vmatpush.msra.mxu0 0.0
    %436 = vmatpush.msra.mxu0 0.0
    %437 = vmatpush.msra.mxu0 0.0
    %438 = vmatpush.msra.mxu0 0.0
    %439 = vmatpush.msra.mxu0 %v374
    %440 = vmatpush.msra.mxu0 %v371
    %441 = vmatpush.msra.mxu0 %v368
    %442 = vmatpush.msra.mxu0 %v365
    %443 = vmatpush.msra.mxu0 %v362
    %444 = vmatpush.msra.mxu0 %v359
    %445 = vmatmul.f32.gmra.mxu0 %v387
    %v446 = vpop.f32.mrf.mxu0
    %v447 = vadd.f32 %v427, %v446
    %448 = vdwg.mxu0
    %449 = vmatpush.msra.mxu0 %v309
    %450 = vmatpush.msra.mxu0 %v306
    %451 = vmatpush.msra.mxu0 %v303
    %452 = vmatpush.msra.mxu0 %v300
    %453 = vmatpush.msra.mxu0 %v297
    %454 = vmatpush.msra.mxu0 %v294
    %455 = vmatpush.msra.mxu0 %v291
    %456 = vmatpush.msra.mxu0 %v288
    %457 = vmatpush.msra.mxu0 %v285
    %458 = vmatpush.msra.mxu0 %v282
    %459 = vmatpush.msra.mxu0 %v279
    %460 = vmatpush.msra.mxu0 %v276
    %461 = vmatpush.msra.mxu0 %v273
    %462 = vmatpush.msra.mxu0 %v270
    %463 = vmatpush.msra.mxu0 %v267
    %464 = vmatpush.msra.mxu0 %v264
    %465 = vmatmul.f32.gmra.mxu0 %v145
    %v466 = vpop.f32.mrf.mxu0
    %v467 = vadd.f32 %v380, %v466
    %468 = vdwg.mxu0
    %469 = vmatpush.msra.mxu0 %v357
    %470 = vmatpush.msra.mxu0 %v354
    %471 = vmatpush.msra.mxu0 %v351
    %472 = vmatpush.msra.mxu0 %v348
    %473 = vmatpush.msra.mxu0 %v345
    %474 = vmatpush.msra.mxu0 %v342
    %475 = vmatpush.msra.mxu0 %v339
    %476 = vmatpush.msra.mxu0 %v336
    %477 = vmatpush.msra.mxu0 %v333
    %478 = vmatpush.msra.mxu0 %v330
    %479 = vmatpush.msra.mxu0 %v327
    %480 = vmatpush.msra.mxu0 %v324
    %481 = vmatpush.msra.mxu0 %v321
    %482 = vmatpush.msra.mxu0 %v318
    %483 = vmatpush.msra.mxu0 %v315
    %484 = vmatpush.msra.mxu0 %v312
    %485 = vmatmul.f32.gmra.mxu0 %v165
    %v486 = vpop.f32.mrf.mxu0
    %v487 = vadd.f32 %v467, %v486
    %488 = vdwg.mxu0
    %489 = vmatpush.msra.mxu0 0.0
    %490 = vmatpush.msra.mxu0 0.0
    %491 = vmatpush.msra.mxu0 0.0
    %492 = vmatpush.msra.mxu0 0.0
    %493 = vmatpush.msra.mxu0 0.0
    %494 = vmatpush.msra.mxu0 0.0
    %495 = vmatpush.msra.mxu0 0.0
    %496 = vmatpush.msra.mxu0 0.0
    %497 = vmatpush.msra.mxu0 0.0
    %498 = vmatpush.msra.mxu0 0.0
    %499 = vmatpush.msra.mxu0 %v375
    %500 = vmatpush.msra.mxu0 %v372
    %501 = vmatpush.msra.mxu0 %v369
    %502 = vmatpush.msra.mxu0 %v366
    %503 = vmatpush.msra.mxu0 %v363
    %504 = vmatpush.msra.mxu0 %v360
    %505 = vmatmul.f32.gmra.mxu0 %v387
    %v506 = vpop.f32.mrf.mxu0
    %v507 = vadd.f32 %v487, %v506
    %508 = vdwg.mxu0
    %509 = vmatpush.msra.mxu0 %v310
    %510 = vmatpush.msra.mxu0 %v307
    %511 = vmatpush.msra.mxu0 %v304
    %512 = vmatpush.msra.mxu0 %v301
    %513 = vmatpush.msra.mxu0 %v298
    %514 = vmatpush.msra.mxu0 %v295
    %515 = vmatpush.msra.mxu0 %v292
    %516 = vmatpush.msra.mxu0 %v289
    %517 = vmatpush.msra.mxu0 %v286
    %518 = vmatpush.msra.mxu0 %v283
    %519 = vmatpush.msra.mxu0 %v280
    %520 = vmatpush.msra.mxu0 %v277
    %521 = vmatpush.msra.mxu0 %v274
    %522 = vmatpush.msra.mxu0 %v271
    %523 = vmatpush.msra.mxu0 %v268
    %524 = vmatpush.msra.mxu0 %v265
    %525 = vmatmul.f32.gmra.mxu0 %v145
    %v526 = vpop.f32.mrf.mxu0
    %v527 = vadd.f32 %v381, %v526
    %528 = vdwg.mxu0
    %529 = vmatpush.msra.mxu0 %v358
    %530 = vmatpush.msra.mxu0 %v355
    %531 = vmatpush.msra.mxu0 %v352
    %532 = vmatpush.msra.mxu0 %v349
    %533 = vmatpush.msra.mxu0 %v346
    %534 = vmatpush.msra.mxu0 %v343
    %535 = vmatpush.msra.mxu0 %v340
    %536 = vmatpush.msra.mxu0 %v337
    %537 = vmatpush.msra.mxu0 %v334
    %538 = vmatpush.msra.mxu0 %v331
    %539 = vmatpush.msra.mxu0 %v328
    %540 = vmatpush.msra.mxu0 %v325
    %541 = vmatpush.msra.mxu0 %v322
    %542 = vmatpush.msra.mxu0 %v319
    %543 = vmatpush.msra.mxu0 %v316
    %544 = vmatpush.msra.mxu0 %v313
    %545 = vmatmul.f32.gmra.mxu0 %v165
    %v546 = vpop.f32.mrf.mxu0
    %v547 = vadd.f32 %v527, %v546
    %548 = vdwg.mxu0
    %549 = vmatpush.msra.mxu0 0.0
    %550 = vmatpush.msra.mxu0 0.0
    %551 = vmatpush.msra.mxu0 0.0
    %552 = vmatpush.msra.mxu0 0.0
    %553 = vmatpush.msra.mxu0 0.0
    %554 = vmatpush.msra.mxu0 0.0
    %555 = vmatpush.msra.mxu0 0.0
    %556 = vmatpush.msra.mxu0 0.0
    %557 = vmatpush.msra.mxu0 0.0
    %558 = vmatpush.msra.mxu0 0.0
    %559 = vmatpush.msra.mxu0 %v376
    %560 = vmatpush.msra.mxu0 %v373
    %561 = vmatpush.msra.mxu0 %v370
    %562 = vmatpush.msra.mxu0 %v367
    %563 = vmatpush.msra.mxu0 %v364
    %564 = vmatpush.msra.mxu0 %v361
    %565 = vmatmul.f32.gmra.mxu0 %v387
    %v566 = vpop.f32.mrf.mxu0
    %v567 = vadd.f32 %v547, %v566
    %568 = vdwg.mxu0
    %v569 = vld [vmem:[#allocation2] sm:$0xff]
    %v570 = vld [vmem:[#allocation2 + $0x8] sm:$0xff]
    %v571 = vld [vmem:[#allocation2 + $0x10] sm:$0xff]
    %v572 = vld [vmem:[#allocation2 + $0x18] sm:$0xff]
    %v573 = vld [vmem:[#allocation2 + $0x20] sm:$0xff]
    %v574 = vld [vmem:[#allocation2 + $0x28] sm:$0xff]
    %v575 = vld [vmem:[#allocation2 + $0x30] sm:$0xff]
    %v576 = vld [vmem:[#allocation2 + $0x38] sm:$0xff]
    %v577 = vld [vmem:[#allocation2 + $0x40] sm:$0xff]
    %v578 = vld [vmem:[#allocation2 + $0x48] sm:$0xff]
    %v579 = vld [vmem:[#allocation2 + $0x50] sm:$0xff]
    %v580 = vld [vmem:[#allocation2 + $0x58] sm:$0xff]
    %v581 = vld [vmem:[#allocation2 + $0x60] sm:$0xff]
    %v582 = vld [vmem:[#allocation2 + $0x68] sm:$0xff]
    %v583 = vld [vmem:[#allocation2 + $0x70] sm:$0xff]
    %v584 = vld [vmem:[#allocation2 + $0x78] sm:$0xff]
    %v585 = vld [vmem:[#allocation2 + $0x80] sm:$0xff]
    %v586 = vld [vmem:[#allocation2 + $0x88] sm:$0xff]
    %v587 = vld [vmem:[#allocation2 + $0x90] sm:$0xff]
    %v588 = vld [vmem:[#allocation2 + $0x98] sm:$0xff]
    %v589 = vld [vmem:[#allocation2 + $0xa0] sm:$0xff]
    %v590 = vld [vmem:[#allocation2 + $0xa8] sm:$0xff]
    %v591 = vld [vmem:[#allocation2 + $0xb0] sm:$0xff]
    %v592 = vld [vmem:[#allocation2 + $0xb8] sm:$0xff]
    %v593 = vld [vmem:[#allocation2 + $0xc0] sm:$0xff]
    %v594 = vld [vmem:[#allocation2 + $0xc8] sm:$0xff]
    %v595 = vld [vmem:[#allocation2 + $0xd0] sm:$0xff]
    %v596 = vld [vmem:[#allocation2 + $0xd8] sm:$0xff]
    %v597 = vld [vmem:[#allocation2 + $0xe0] sm:$0xff]
    %v598 = vld [vmem:[#allocation2 + $0xe8] sm:$0xff]
    %v599 = vld [vmem:[#allocation2 + $0xf0] sm:$0xff]
    %v600 = vld [vmem:[#allocation2 + $0xf8] sm:$0xff]
    %v601 = vld [vmem:[#allocation2 + $0x100] sm:$0xff]
    %v602 = vld [vmem:[#allocation2 + $0x108] sm:$0xff]
    %v603 = vld [vmem:[#allocation2 + $0x110] sm:$0xff]
    %v604 = vld [vmem:[#allocation2 + $0x118] sm:$0xff]
    %v605 = vld [vmem:[#allocation2 + $0x120] sm:$0xff]
    %v606 = vld [vmem:[#allocation2 + $0x128] sm:$0xff]
    %v607 = vld [vmem:[#allocation2 + $0x130] sm:$0xff]
    %v608 = vld [vmem:[#allocation2 + $0x138] sm:$0xff]
    %v609 = vld [vmem:[#allocation2 + $0x140] sm:$0xff]
    %v610 = vld [vmem:[#allocation2 + $0x148] sm:$0xff]
    %v611 = vld [vmem:[#allocation2 + $0x150] sm:$0xff]
    %v612 = vld [vmem:[#allocation2 + $0x158] sm:$0xff]
    %v613 = vld [vmem:[#allocation2 + $0x160] sm:$0xff]
    %v614 = vld [vmem:[#allocation2 + $0x168] sm:$0xff]
    %v615 = vld [vmem:[#allocation2 + $0x170] sm:$0xff]
    %v616 = vld [vmem:[#allocation2 + $0x178] sm:$0xff]
    %v617 = vld [vmem:[#allocation2 + $0x180] sm:$0xff]
    %v618 = vld [vmem:[#allocation2 + $0x188] sm:$0xff]
    %v619 = vld [vmem:[#allocation2 + $0x190] sm:$0xff]
    %v620 = vld [vmem:[#allocation2 + $0x198] sm:$0xff]
    %v621 = vld [vmem:[#allocation2 + $0x1a0] sm:$0xff]
    %v622 = vld [vmem:[#allocation2 + $0x1a8] sm:$0xff]
    %v623 = vld [vmem:[#allocation2 + $0x1b0] sm:$0xff]
    %v624 = vld [vmem:[#allocation2 + $0x1b8] sm:$0xff]
    %v625 = vld [vmem:[#allocation2 + $0x1c0] sm:$0xff]
    %v626 = vld [vmem:[#allocation2 + $0x1c8] sm:$0xff]
    %v627 = vld [vmem:[#allocation2 + $0x1d0] sm:$0xff]
    %v628 = vld [vmem:[#allocation2 + $0x1d8] sm:$0xff]
    %v629 = vld [vmem:[#allocation2 + $0x1e0] sm:$0xff]
    %v630 = vld [vmem:[#allocation2 + $0x1e8] sm:$0xff]
    %v631 = vld [vmem:[#allocation2 + $0x1f0] sm:$0xff]
    %v632 = vld [vmem:[#allocation2 + $0x1f8] sm:$0xff]
    %v633 = vld [vmem:[#allocation2 + $0x200] sm:$0xff]
    %v634 = vld [vmem:[#allocation2 + $0x208] sm:$0xff]
    %v635 = vld [vmem:[#allocation2 + $0x210] sm:$0xff]
    %v636 = vld [vmem:[#allocation2 + $0x218] sm:$0xff]
    %v637 = vld [vmem:[#allocation2 + $0x220] sm:$0xff]
    %v638 = vld [vmem:[#allocation2 + $0x228] sm:$0xff]
    %v639 = vld [vmem:[#allocation2 + $0x230] sm:$0xff]
    %v640 = vld [vmem:[#allocation2 + $0x238] sm:$0xff]
    %v641 = vld [vmem:[#allocation2 + $0x240] sm:$0xff]
    %v642 = vld [vmem:[#allocation2 + $0x248] sm:$0xff]
    %v643 = vld [vmem:[#allocation2 + $0x250] sm:$0xff]
    %v644 = vld [vmem:[#allocation2 + $0x258] sm:$0xff]
    %v645 = vld [vmem:[#allocation2 + $0x260] sm:$0xff]
    %v646 = vld [vmem:[#allocation2 + $0x268] sm:$0xff]
    %v647 = vld [vmem:[#allocation2 + $0x270] sm:$0xff]
    %v648 = vld [vmem:[#allocation2 + $0x278] sm:$0xff]
    %v649 = vld [vmem:[#allocation2 + $0x280] sm:$0xff]
    %v650 = vld [vmem:[#allocation2 + $0x288] sm:$0xff]
    %v651 = vld [vmem:[#allocation2 + $0x290] sm:$0xff]
    %v652 = vld [vmem:[#allocation2 + $0x298] sm:$0xff]
    %v653 = vld [vmem:[#allocation2 + $0x2a0] sm:$0xff]
    %v654 = vld [vmem:[#allocation2 + $0x2a8] sm:$0xff]
    %v655 = vld [vmem:[#allocation2 + $0x2b0] sm:$0xff]
    %v656 = vld [vmem:[#allocation2 + $0x2b8] sm:$0xff]
    %v657 = vld [vmem:[#allocation2 + $0x2c0] sm:$0xff]
    %v658 = vld [vmem:[#allocation2 + $0x2c8] sm:$0xff]
    %v659 = vld [vmem:[#allocation2 + $0x2d0] sm:$0xff]
    %v660 = vld [vmem:[#allocation2 + $0x2d8] sm:$0xff]
    %v661 = vld [vmem:[#allocation2 + $0x2e0] sm:$0xff]
    %v662 = vld [vmem:[#allocation2 + $0x2e8] sm:$0xff]
    %v663 = vld [vmem:[#allocation2 + $0x2f0] sm:$0xff]
    %v664 = vld [vmem:[#allocation2 + $0x2f8] sm:$0xff]
    %v665 = vld [vmem:[#allocation2 + $0x300] sm:$0xff]
    %v666 = vld [vmem:[#allocation2 + $0x308] sm:$0xff]
    %v667 = vld [vmem:[#allocation2 + $0x310] sm:$0xff]
    %v668 = vld [vmem:[#allocation2 + $0x318] sm:$0xff]
    %v669 = vld [vmem:[#allocation2 + $0x320] sm:$0xff]
    %v670 = vld [vmem:[#allocation2 + $0x328] sm:$0xff]
    %v671 = vld [vmem:[#allocation2 + $0x330] sm:$0xff]
    %v672 = vld [vmem:[#allocation2 + $0x338] sm:$0xff]
    %v673 = vld [vmem:[#allocation2 + $0x340] sm:$0xff]
    %v674 = vld [vmem:[#allocation2 + $0x348] sm:$0xff]
    %v675 = vld [vmem:[#allocation2 + $0x350] sm:$0xff]
    %v676 = vld [vmem:[#allocation2 + $0x358] sm:$0xff]
    %v677 = vld [vmem:[#allocation2 + $0x360] sm:$0xff]
    %v678 = vld [vmem:[#allocation2 + $0x368] sm:$0xff]
    %v679 = vld [vmem:[#allocation2 + $0x370] sm:$0xff]
    %v680 = vld [vmem:[#allocation2 + $0x378] sm:$0xff]
    %v681 = vld [vmem:[#allocation2 + $0x380] sm:$0xff]
    %v682 = vld [vmem:[#allocation2 + $0x388] sm:$0xff]
    %v683 = vld [vmem:[#allocation2 + $0x390] sm:$0xff]
    %v684 = vld [vmem:[#allocation2 + $0x398] sm:$0xff]
    %v685 = vld [vmem:[#allocation2 + $0x3a0] sm:$0xff]
    %v686 = vld [vmem:[#allocation2 + $0x3a8] sm:$0xff]
    %v687 = vld [vmem:[#allocation2 + $0x3b0] sm:$0xff]
    %v688 = vld [vmem:[#allocation2 + $0x3b8] sm:$0xff]
    %v689 = vld [vmem:[#allocation2 + $0x3c0] sm:$0xff]
    %v690 = vld [vmem:[#allocation2 + $0x3c8] sm:$0xff]
    %v691 = vld [vmem:[#allocation2 + $0x3d0] sm:$0xff]
    %v692 = vld [vmem:[#allocation2 + $0x3d8] sm:$0xff]
    %v693 = vld [vmem:[#allocation2 + $0x3e0] sm:$0xff]
    %v694 = vld [vmem:[#allocation2 + $0x3e8] sm:$0xff]
    %v695 = vld [vmem:[#allocation2 + $0x3f0] sm:$0xff]
    %v696 = vld [vmem:[#allocation2 + $0x3f8] sm:$0xff]
    %v697 = vld [vmem:[#allocation2 + $0x400] sm:$0xff]
    %v698 = vld [vmem:[#allocation2 + $0x408] sm:$0xff]
    %v699 = vld [vmem:[#allocation2 + $0x410] sm:$0xff]
    %v700 = vld [vmem:[#allocation2 + $0x418] sm:$0xff]
    %v701 = vld [vmem:[#allocation2 + $0x420] sm:$0xff]
    %v702 = vld [vmem:[#allocation2 + $0x428] sm:$0xff]
    %v703 = vld [vmem:[#allocation2 + $0x430] sm:$0xff]
    %v704 = vld [vmem:[#allocation2 + $0x438] sm:$0xff]
    %v705 = vld [vmem:[#allocation2 + $0x440] sm:$0xff]
    %v706 = vld [vmem:[#allocation2 + $0x448] sm:$0xff]
    %v707 = vld [vmem:[#allocation2 + $0x450] sm:$0xff]
    %v708 = vld [vmem:[#allocation2 + $0x458] sm:$0xff]
    %v709 = vld [vmem:[#allocation2 + $0x460] sm:$0xff]
    %v710 = vld [vmem:[#allocation2 + $0x468] sm:$0xff]
    %v711 = vld [vmem:[#allocation2 + $0x470] sm:$0xff]
    %v712 = vld [vmem:[#allocation2 + $0x478] sm:$0xff]
    %v713 = vld [vmem:[#allocation2 + $0x480] sm:$0xff]
    %v714 = vld [vmem:[#allocation2 + $0x488] sm:$0xff]
    %v715 = vld [vmem:[#allocation2 + $0x490] sm:$0xff]
    %v716 = vld [vmem:[#allocation2 + $0x498] sm:$0xff]
    %v717 = vld [vmem:[#allocation2 + $0x4a0] sm:$0xff]
    %v718 = vld [vmem:[#allocation2 + $0x4a8] sm:$0xff]
    %v719 = vld [vmem:[#allocation2 + $0x4b0] sm:$0xff]
    %v720 = vld [vmem:[#allocation2 + $0x4b8] sm:$0xff]
    %v721 = vld [vmem:[#allocation2 + $0x4c0] sm:$0xff]
    %v722 = vld [vmem:[#allocation2 + $0x4c8] sm:$0xff]
    %v723 = vld [vmem:[#allocation2 + $0x4d0] sm:$0xff]
    %v724 = vld [vmem:[#allocation2 + $0x4d8] sm:$0xff]
    %v725 = vld [vmem:[#allocation2 + $0x4e0] sm:$0xff]
    %v726 = vld [vmem:[#allocation2 + $0x4e8] sm:$0xff]
    %v727 = vld [vmem:[#allocation2 + $0x4f0] sm:$0xff]
    %v728 = vld [vmem:[#allocation2 + $0x4f8] sm:$0xff]
    %v729 = vld [vmem:[#allocation2 + $0x500] sm:$0xff]
    %v730 = vld [vmem:[#allocation2 + $0x508] sm:$0xff]
    %v731 = vld [vmem:[#allocation2 + $0x510] sm:$0xff]
    %v732 = vld [vmem:[#allocation2 + $0x518] sm:$0xff]
    %v733 = vld [vmem:[#allocation2 + $0x520] sm:$0xff]
    %v734 = vld [vmem:[#allocation2 + $0x528] sm:$0xff]
    %v735 = vld [vmem:[#allocation2 + $0x530] sm:$0xff]
    %v736 = vld [vmem:[#allocation2 + $0x538] sm:$0xff]
    %v737 = vld [vmem:[#allocation2 + $0x540] sm:$0xff]
    %v738 = vld [vmem:[#allocation2 + $0x548] sm:$0xff]
    %v739 = vld [vmem:[#allocation2 + $0x550] sm:$0xff]
    %v740 = vld [vmem:[#allocation2 + $0x558] sm:$0xff]
    %v741 = vld [vmem:[#allocation2 + $0x560] sm:$0xff]
    %v742 = vld [vmem:[#allocation2 + $0x568] sm:$0xff]
    %v743 = vld [vmem:[#allocation2 + $0x570] sm:$0xff]
    %v744 = vld [vmem:[#allocation2 + $0x578] sm:$0xff]
    %v745 = vld [vmem:[#allocation2 + $0x580] sm:$0xff]
    %v746 = vld [vmem:[#allocation2 + $0x588] sm:$0xff]
    %v747 = vld [vmem:[#allocation2 + $0x590] sm:$0xff]
    %v748 = vld [vmem:[#allocation2 + $0x598] sm:$0xff]
    %v749 = vld [vmem:[#allocation2 + $0x5a0] sm:$0xff]
    %v750 = vld [vmem:[#allocation2 + $0x5a8] sm:$0xff]
    %v751 = vld [vmem:[#allocation2 + $0x5b0] sm:$0xff]
    %v752 = vld [vmem:[#allocation2 + $0x5b8] sm:$0xff]
    %v753 = vld [vmem:[#allocation2 + $0x5c0] sm:$0xff]
    %v754 = vld [vmem:[#allocation2 + $0x5c8] sm:$0xff]
    %v755 = vld [vmem:[#allocation2 + $0x5d0] sm:$0xff]
    %v756 = vld [vmem:[#allocation2 + $0x5d8] sm:$0xff]
    %v757 = vld [vmem:[#allocation2 + $0x5e0] sm:$0xff]
    %v758 = vld [vmem:[#allocation2 + $0x5e8] sm:$0xff]
    %v759 = vld [vmem:[#allocation2 + $0x5f0] sm:$0xff]
    %v760 = vld [vmem:[#allocation2 + $0x5f8] sm:$0xff]
    %v761 = vld [vmem:[#allocation2 + $0x600] sm:$0xff]
    %v762 = vld [vmem:[#allocation2 + $0x608] sm:$0xff]
    %v763 = vld [vmem:[#allocation2 + $0x610] sm:$0xff]
    %v764 = vld [vmem:[#allocation2 + $0x618] sm:$0xff]
    %v765 = vld [vmem:[#allocation2 + $0x620] sm:$0xff]
    %v766 = vld [vmem:[#allocation2 + $0x628] sm:$0xff]
    %v767 = vld [vmem:[#allocation2 + $0x630] sm:$0xff]
    %v768 = vld [vmem:[#allocation2 + $0x638] sm:$0xff]
    %v769 = vld [vmem:[#allocation2 + $0x640] sm:$0xff]
    %v770 = vld [vmem:[#allocation2 + $0x648] sm:$0xff]
    %v771 = vld [vmem:[#allocation2 + $0x650] sm:$0xff]
    %v772 = vld [vmem:[#allocation2 + $0x658] sm:$0xff]
    %v773 = vld [vmem:[#allocation2 + $0x660] sm:$0xff]
    %v774 = vld [vmem:[#allocation2 + $0x668] sm:$0xff]
    %v775 = vld [vmem:[#allocation2 + $0x670] sm:$0xff]
    %v776 = vld [vmem:[#allocation2 + $0x678] sm:$0xff]
    %v777 = vld [vmem:[#allocation2 + $0x680] sm:$0xff]
    %v778 = vld [vmem:[#allocation2 + $0x688] sm:$0xff]
    %v779 = vld [vmem:[#allocation2 + $0x690] sm:$0xff]
    %v780 = vld [vmem:[#allocation2 + $0x698] sm:$0xff]
    %v781 = vld [vmem:[#allocation2 + $0x6a0] sm:$0xff]
    %v782 = vld [vmem:[#allocation2 + $0x6a8] sm:$0xff]
    %v783 = vld [vmem:[#allocation2 + $0x6b0] sm:$0xff]
    %v784 = vld [vmem:[#allocation2 + $0x6b8] sm:$0xff]
    %v785 = vld [vmem:[#allocation2 + $0x6c0] sm:$0xff]
    %v786 = vld [vmem:[#allocation2 + $0x6c8] sm:$0xff]
    %v787 = vld [vmem:[#allocation2 + $0x6d0] sm:$0xff]
    %v788 = vld [vmem:[#allocation2 + $0x6d8] sm:$0xff]
    %v789 = vld [vmem:[#allocation2 + $0x6e0] sm:$0xff]
    %v790 = vld [vmem:[#allocation2 + $0x6e8] sm:$0xff]
    %v791 = vld [vmem:[#allocation2 + $0x6f0] sm:$0xff]
    %v792 = vld [vmem:[#allocation2 + $0x6f8] sm:$0xff]
    %v793 = vunpack.c.l.bf16 %v569
    %v794 = vunpack.c.h.bf16 %v569
    %v795 = vunpack.c.l.bf16 %v570
    %v796 = vunpack.c.h.bf16 %v570
    %v797 = vunpack.c.l.bf16 %v571
    %v798 = vunpack.c.h.bf16 %v571
    %v799 = vunpack.c.l.bf16 %v572
    %v800 = vunpack.c.h.bf16 %v572
    %v801 = vunpack.c.l.bf16 %v573
    %v802 = vunpack.c.h.bf16 %v573
    %v803 = vunpack.c.l.bf16 %v574
    %v804 = vunpack.c.h.bf16 %v574
    %v805 = vunpack.c.l.bf16 %v575
    %v806 = vunpack.c.h.bf16 %v575
    %v807 = vunpack.c.l.bf16 %v576
    %v808 = vunpack.c.h.bf16 %v576
    %v809 = vunpack.c.l.bf16 %v577
    %v810 = vunpack.c.h.bf16 %v577
    %v811 = vunpack.c.l.bf16 %v578
    %v812 = vunpack.c.h.bf16 %v578
    %v813 = vunpack.c.l.bf16 %v579
    %v814 = vunpack.c.h.bf16 %v579
    %v815 = vunpack.c.l.bf16 %v580
    %v816 = vunpack.c.h.bf16 %v580
    %v817 = vunpack.c.l.bf16 %v581
    %v818 = vunpack.c.h.bf16 %v581
    %v819 = vunpack.c.l.bf16 %v582
    %v820 = vunpack.c.h.bf16 %v582
    %v821 = vunpack.c.l.bf16 %v583
    %v822 = vunpack.c.h.bf16 %v583
    %v823 = vunpack.c.l.bf16 %v584
    %v824 = vunpack.c.h.bf16 %v584
    %v825 = vunpack.c.l.bf16 %v585
    %v826 = vunpack.c.h.bf16 %v585
    %v827 = vunpack.c.l.bf16 %v586
    %v828 = vunpack.c.h.bf16 %v586
    %v829 = vunpack.c.l.bf16 %v587
    %v830 = vunpack.c.h.bf16 %v587
    %v831 = vunpack.c.l.bf16 %v588
    %v832 = vunpack.c.h.bf16 %v588
    %v833 = vunpack.c.l.bf16 %v589
    %v834 = vunpack.c.h.bf16 %v589
    %v835 = vunpack.c.l.bf16 %v590
    %v836 = vunpack.c.h.bf16 %v590
    %v837 = vunpack.c.l.bf16 %v591
    %v838 = vunpack.c.h.bf16 %v591
    %v839 = vunpack.c.l.bf16 %v592
    %v840 = vunpack.c.h.bf16 %v592
    %v841 = vunpack.c.l.bf16 %v593
    %v842 = vunpack.c.h.bf16 %v593
    %v843 = vunpack.c.l.bf16 %v594
    %v844 = vunpack.c.h.bf16 %v594
    %v845 = vunpack.c.l.bf16 %v595
    %v846 = vunpack.c.h.bf16 %v595
    %v847 = vunpack.c.l.bf16 %v596
    %v848 = vunpack.c.h.bf16 %v596
    %v849 = vunpack.c.l.bf16 %v597
    %v850 = vunpack.c.h.bf16 %v597
    %v851 = vunpack.c.l.bf16 %v598
    %v852 = vunpack.c.h.bf16 %v598
    %v853 = vunpack.c.l.bf16 %v599
    %v854 = vunpack.c.h.bf16 %v599
    %v855 = vunpack.c.l.bf16 %v600
    %v856 = vunpack.c.h.bf16 %v600
    %v857 = vunpack.c.l.bf16 %v601
    %v858 = vunpack.c.h.bf16 %v601
    %v859 = vunpack.c.l.bf16 %v602
    %v860 = vunpack.c.h.bf16 %v602
    %v861 = vunpack.c.l.bf16 %v603
    %v862 = vunpack.c.h.bf16 %v603
    %v863 = vunpack.c.l.bf16 %v604
    %v864 = vunpack.c.h.bf16 %v604
    %v865 = vunpack.c.l.bf16 %v605
    %v866 = vunpack.c.h.bf16 %v605
    %v867 = vunpack.c.l.bf16 %v606
    %v868 = vunpack.c.h.bf16 %v606
    %v869 = vunpack.c.l.bf16 %v607
    %v870 = vunpack.c.h.bf16 %v607
    %v871 = vunpack.c.l.bf16 %v608
    %v872 = vunpack.c.h.bf16 %v608
    %v873 = vunpack.c.l.bf16 %v609
    %v874 = vunpack.c.h.bf16 %v609
    %v875 = vunpack.c.l.bf16 %v610
    %v876 = vunpack.c.h.bf16 %v610
    %v877 = vunpack.c.l.bf16 %v611
    %v878 = vunpack.c.h.bf16 %v611
    %v879 = vunpack.c.l.bf16 %v612
    %v880 = vunpack.c.h.bf16 %v612
    %v881 = vunpack.c.l.bf16 %v613
    %v882 = vunpack.c.h.bf16 %v613
    %v883 = vunpack.c.l.bf16 %v614
    %v884 = vunpack.c.h.bf16 %v614
    %v885 = vunpack.c.l.bf16 %v615
    %v886 = vunpack.c.h.bf16 %v615
    %v887 = vunpack.c.l.bf16 %v616
    %v888 = vunpack.c.h.bf16 %v616
    %v889 = vunpack.c.l.bf16 %v617
    %v890 = vunpack.c.h.bf16 %v617
    %v891 = vunpack.c.l.bf16 %v618
    %v892 = vunpack.c.h.bf16 %v618
    %v893 = vunpack.c.l.bf16 %v619
    %v894 = vunpack.c.h.bf16 %v619
    %v895 = vunpack.c.l.bf16 %v620
    %v896 = vunpack.c.h.bf16 %v620
    %v897 = vunpack.c.l.bf16 %v621
    %v898 = vunpack.c.h.bf16 %v621
    %v899 = vunpack.c.l.bf16 %v622
    %v900 = vunpack.c.h.bf16 %v622
    %v901 = vunpack.c.l.bf16 %v623
    %v902 = vunpack.c.h.bf16 %v623
    %v903 = vunpack.c.l.bf16 %v624
    %v904 = vunpack.c.h.bf16 %v624
    %v905 = vunpack.c.l.bf16 %v625
    %v906 = vunpack.c.h.bf16 %v625
    %v907 = vunpack.c.l.bf16 %v626
    %v908 = vunpack.c.h.bf16 %v626
    %v909 = vunpack.c.l.bf16 %v627
    %v910 = vunpack.c.h.bf16 %v627
    %v911 = vunpack.c.l.bf16 %v628
    %v912 = vunpack.c.h.bf16 %v628
    %v913 = vunpack.c.l.bf16 %v629
    %v914 = vunpack.c.h.bf16 %v629
    %v915 = vunpack.c.l.bf16 %v630
    %v916 = vunpack.c.h.bf16 %v630
    %v917 = vunpack.c.l.bf16 %v631
    %v918 = vunpack.c.h.bf16 %v631
    %v919 = vunpack.c.l.bf16 %v632
    %v920 = vunpack.c.h.bf16 %v632
    %v921 = vunpack.c.l.bf16 %v633
    %v922 = vunpack.c.h.bf16 %v633
    %v923 = vunpack.c.l.bf16 %v634
    %v924 = vunpack.c.h.bf16 %v634
    %v925 = vunpack.c.l.bf16 %v635
    %v926 = vunpack.c.h.bf16 %v635
    %v927 = vunpack.c.l.bf16 %v636
    %v928 = vunpack.c.h.bf16 %v636
    %v929 = vunpack.c.l.bf16 %v637
    %v930 = vunpack.c.h.bf16 %v637
    %v931 = vunpack.c.l.bf16 %v638
    %v932 = vunpack.c.h.bf16 %v638
    %v933 = vunpack.c.l.bf16 %v639
    %v934 = vunpack.c.h.bf16 %v639
    %v935 = vunpack.c.l.bf16 %v640
    %v936 = vunpack.c.h.bf16 %v640
    %v937 = vunpack.c.l.bf16 %v641
    %v938 = vunpack.c.h.bf16 %v641
    %v939 = vunpack.c.l.bf16 %v642
    %v940 = vunpack.c.h.bf16 %v642
    %v941 = vunpack.c.l.bf16 %v643
    %v942 = vunpack.c.h.bf16 %v643
    %v943 = vunpack.c.l.bf16 %v644
    %v944 = vunpack.c.h.bf16 %v644
    %v945 = vunpack.c.l.bf16 %v645
    %v946 = vunpack.c.h.bf16 %v645
    %v947 = vunpack.c.l.bf16 %v646
    %v948 = vunpack.c.h.bf16 %v646
    %v949 = vunpack.c.l.bf16 %v647
    %v950 = vunpack.c.h.bf16 %v647
    %v951 = vunpack.c.l.bf16 %v648
    %v952 = vunpack.c.h.bf16 %v648
    %v953 = vunpack.c.l.bf16 %v649
    %v954 = vunpack.c.h.bf16 %v649
    %v955 = vunpack.c.l.bf16 %v650
    %v956 = vunpack.c.h.bf16 %v650
    %v957 = vunpack.c.l.bf16 %v651
    %v958 = vunpack.c.h.bf16 %v651
    %v959 = vunpack.c.l.bf16 %v652
    %v960 = vunpack.c.h.bf16 %v652
    %v961 = vunpack.c.l.bf16 %v653
    %v962 = vunpack.c.h.bf16 %v653
    %v963 = vunpack.c.l.bf16 %v654
    %v964 = vunpack.c.h.bf16 %v654
    %v965 = vunpack.c.l.bf16 %v655
    %v966 = vunpack.c.h.bf16 %v655
    %v967 = vunpack.c.l.bf16 %v656
    %v968 = vunpack.c.h.bf16 %v656
    %v969 = vunpack.c.l.bf16 %v657
    %v970 = vunpack.c.h.bf16 %v657
    %v971 = vunpack.c.l.bf16 %v658
    %v972 = vunpack.c.h.bf16 %v658
    %v973 = vunpack.c.l.bf16 %v659
    %v974 = vunpack.c.h.bf16 %v659
    %v975 = vunpack.c.l.bf16 %v660
    %v976 = vunpack.c.h.bf16 %v660
    %v977 = vunpack.c.l.bf16 %v661
    %v978 = vunpack.c.h.bf16 %v661
    %v979 = vunpack.c.l.bf16 %v662
    %v980 = vunpack.c.h.bf16 %v662
    %v981 = vunpack.c.l.bf16 %v663
    %v982 = vunpack.c.h.bf16 %v663
    %v983 = vunpack.c.l.bf16 %v664
    %v984 = vunpack.c.h.bf16 %v664
    %v985 = vunpack.c.l.bf16 %v665
    %v986 = vunpack.c.h.bf16 %v665
    %v987 = vunpack.c.l.bf16 %v666
    %v988 = vunpack.c.h.bf16 %v666
    %v989 = vunpack.c.l.bf16 %v667
    %v990 = vunpack.c.h.bf16 %v667
    %v991 = vunpack.c.l.bf16 %v668
    %v992 = vunpack.c.h.bf16 %v668
    %v993 = vunpack.c.l.bf16 %v669
    %v994 = vunpack.c.h.bf16 %v669
    %v995 = vunpack.c.l.bf16 %v670
    %v996 = vunpack.c.h.bf16 %v670
    %v997 = vunpack.c.l.bf16 %v671
    %v998 = vunpack.c.h.bf16 %v671
    %v999 = vunpack.c.l.bf16 %v672
    %v1000 = vunpack.c.h.bf16 %v672
    %v1001 = vunpack.c.l.bf16 %v673
    %v1002 = vunpack.c.h.bf16 %v673
    %v1003 = vunpack.c.l.bf16 %v674
    %v1004 = vunpack.c.h.bf16 %v674
    %v1005 = vunpack.c.l.bf16 %v675
    %v1006 = vunpack.c.h.bf16 %v675
    %v1007 = vunpack.c.l.bf16 %v676
    %v1008 = vunpack.c.h.bf16 %v676
    %v1009 = vunpack.c.l.bf16 %v677
    %v1010 = vunpack.c.h.bf16 %v677
    %v1011 = vunpack.c.l.bf16 %v678
    %v1012 = vunpack.c.h.bf16 %v678
    %v1013 = vunpack.c.l.bf16 %v679
    %v1014 = vunpack.c.h.bf16 %v679
    %v1015 = vunpack.c.l.bf16 %v680
    %v1016 = vunpack.c.h.bf16 %v680
    %v1017 = vunpack.c.l.bf16 %v681
    %v1018 = vunpack.c.h.bf16 %v681
    %v1019 = vunpack.c.l.bf16 %v682
    %v1020 = vunpack.c.h.bf16 %v682
    %v1021 = vunpack.c.l.bf16 %v683
    %v1022 = vunpack.c.h.bf16 %v683
    %v1023 = vunpack.c.l.bf16 %v684
    %v1024 = vunpack.c.h.bf16 %v684
    %v1025 = vunpack.c.l.bf16 %v685
    %v1026 = vunpack.c.h.bf16 %v685
    %v1027 = vunpack.c.l.bf16 %v686
    %v1028 = vunpack.c.h.bf16 %v686
    %v1029 = vunpack.c.l.bf16 %v687
    %v1030 = vunpack.c.h.bf16 %v687
    %v1031 = vunpack.c.l.bf16 %v688
    %v1032 = vunpack.c.h.bf16 %v688
    %v1033 = vunpack.c.l.bf16 %v689
    %v1034 = vunpack.c.h.bf16 %v689
    %v1035 = vunpack.c.l.bf16 %v690
    %v1036 = vunpack.c.h.bf16 %v690
    %v1037 = vunpack.c.l.bf16 %v691
    %v1038 = vunpack.c.h.bf16 %v691
    %v1039 = vunpack.c.l.bf16 %v692
    %v1040 = vunpack.c.h.bf16 %v692
    %v1041 = vunpack.c.l.bf16 %v693
    %v1042 = vunpack.c.h.bf16 %v693
    %v1043 = vunpack.c.l.bf16 %v694
    %v1044 = vunpack.c.h.bf16 %v694
    %v1045 = vunpack.c.l.bf16 %v695
    %v1046 = vunpack.c.h.bf16 %v695
    %v1047 = vunpack.c.l.bf16 %v696
    %v1048 = vunpack.c.h.bf16 %v696
    %v1049 = vunpack.c.l.bf16 %v697
    %v1050 = vunpack.c.h.bf16 %v697
    %v1051 = vunpack.c.l.bf16 %v698
    %v1052 = vunpack.c.h.bf16 %v698
    %v1053 = vunpack.c.l.bf16 %v699
    %v1054 = vunpack.c.h.bf16 %v699
    %v1055 = vunpack.c.l.bf16 %v700
    %v1056 = vunpack.c.h.bf16 %v700
    %v1057 = vunpack.c.l.bf16 %v701
    %v1058 = vunpack.c.h.bf16 %v701
    %v1059 = vunpack.c.l.bf16 %v702
    %v1060 = vunpack.c.h.bf16 %v702
    %v1061 = vunpack.c.l.bf16 %v703
    %v1062 = vunpack.c.h.bf16 %v703
    %v1063 = vunpack.c.l.bf16 %v704
    %v1064 = vunpack.c.h.bf16 %v704
    %v1065 = vunpack.c.l.bf16 %v705
    %v1066 = vunpack.c.h.bf16 %v705
    %v1067 = vunpack.c.l.bf16 %v706
    %v1068 = vunpack.c.h.bf16 %v706
    %v1069 = vunpack.c.l.bf16 %v707
    %v1070 = vunpack.c.h.bf16 %v707
    %v1071 = vunpack.c.l.bf16 %v708
    %v1072 = vunpack.c.h.bf16 %v708
    %v1073 = vunpack.c.l.bf16 %v709
    %v1074 = vunpack.c.h.bf16 %v709
    %v1075 = vunpack.c.l.bf16 %v710
    %v1076 = vunpack.c.h.bf16 %v710
    %v1077 = vunpack.c.l.bf16 %v711
    %v1078 = vunpack.c.h.bf16 %v711
    %v1079 = vunpack.c.l.bf16 %v712
    %v1080 = vunpack.c.h.bf16 %v712
    %v1081 = vunpack.c.l.bf16 %v713
    %v1082 = vunpack.c.h.bf16 %v713
    %v1083 = vunpack.c.l.bf16 %v714
    %v1084 = vunpack.c.h.bf16 %v714
    %v1085 = vunpack.c.l.bf16 %v715
    %v1086 = vunpack.c.h.bf16 %v715
    %v1087 = vunpack.c.l.bf16 %v716
    %v1088 = vunpack.c.h.bf16 %v716
    %v1089 = vunpack.c.l.bf16 %v717
    %v1090 = vunpack.c.h.bf16 %v717
    %v1091 = vunpack.c.l.bf16 %v718
    %v1092 = vunpack.c.h.bf16 %v718
    %v1093 = vunpack.c.l.bf16 %v719
    %v1094 = vunpack.c.h.bf16 %v719
    %v1095 = vunpack.c.l.bf16 %v720
    %v1096 = vunpack.c.h.bf16 %v720
    %v1097 = vunpack.c.l.bf16 %v721
    %v1098 = vunpack.c.h.bf16 %v721
    %v1099 = vunpack.c.l.bf16 %v722
    %v1100 = vunpack.c.h.bf16 %v722
    %v1101 = vunpack.c.l.bf16 %v723
    %v1102 = vunpack.c.h.bf16 %v723
    %v1103 = vunpack.c.l.bf16 %v724
    %v1104 = vunpack.c.h.bf16 %v724
    %v1105 = vunpack.c.l.bf16 %v725
    %v1106 = vunpack.c.h.bf16 %v725
    %v1107 = vunpack.c.l.bf16 %v726
    %v1108 = vunpack.c.h.bf16 %v726
    %v1109 = vunpack.c.l.bf16 %v727
    %v1110 = vunpack.c.h.bf16 %v727
    %v1111 = vunpack.c.l.bf16 %v728
    %v1112 = vunpack.c.h.bf16 %v728
    %v1113 = vunpack.c.l.bf16 %v729
    %v1114 = vunpack.c.h.bf16 %v729
    %v1115 = vunpack.c.l.bf16 %v730
    %v1116 = vunpack.c.h.bf16 %v730
    %v1117 = vunpack.c.l.bf16 %v731
    %v1118 = vunpack.c.h.bf16 %v731
    %v1119 = vunpack.c.l.bf16 %v732
    %v1120 = vunpack.c.h.bf16 %v732
    %v1121 = vunpack.c.l.bf16 %v733
    %v1122 = vunpack.c.h.bf16 %v733
    %v1123 = vunpack.c.l.bf16 %v734
    %v1124 = vunpack.c.h.bf16 %v734
    %v1125 = vunpack.c.l.bf16 %v735
    %v1126 = vunpack.c.h.bf16 %v735
    %v1127 = vunpack.c.l.bf16 %v736
    %v1128 = vunpack.c.h.bf16 %v736
    %v1129 = vunpack.c.l.bf16 %v737
    %v1130 = vunpack.c.h.bf16 %v737
    %v1131 = vunpack.c.l.bf16 %v738
    %v1132 = vunpack.c.h.bf16 %v738
    %v1133 = vunpack.c.l.bf16 %v739
    %v1134 = vunpack.c.h.bf16 %v739
    %v1135 = vunpack.c.l.bf16 %v740
    %v1136 = vunpack.c.h.bf16 %v740
    %v1137 = vunpack.c.l.bf16 %v741
    %v1138 = vunpack.c.h.bf16 %v741
    %v1139 = vunpack.c.l.bf16 %v742
    %v1140 = vunpack.c.h.bf16 %v742
    %v1141 = vunpack.c.l.bf16 %v743
    %v1142 = vunpack.c.h.bf16 %v743
    %v1143 = vunpack.c.l.bf16 %v744
    %v1144 = vunpack.c.h.bf16 %v744
    %v1145 = vunpack.c.l.bf16 %v745
    %v1146 = vunpack.c.h.bf16 %v745
    %v1147 = vunpack.c.l.bf16 %v746
    %v1148 = vunpack.c.h.bf16 %v746
    %v1149 = vunpack.c.l.bf16 %v747
    %v1150 = vunpack.c.h.bf16 %v747
    %v1151 = vunpack.c.l.bf16 %v748
    %v1152 = vunpack.c.h.bf16 %v748
    %v1153 = vunpack.c.l.bf16 %v749
    %v1154 = vunpack.c.h.bf16 %v749
    %v1155 = vunpack.c.l.bf16 %v750
    %v1156 = vunpack.c.h.bf16 %v750
    %v1157 = vunpack.c.l.bf16 %v751
    %v1158 = vunpack.c.h.bf16 %v751
    %v1159 = vunpack.c.l.bf16 %v752
    %v1160 = vunpack.c.h.bf16 %v752
    %v1161 = vunpack.c.l.bf16 %v753
    %v1162 = vunpack.c.h.bf16 %v753
    %v1163 = vunpack.c.l.bf16 %v754
    %v1164 = vunpack.c.h.bf16 %v754
    %v1165 = vunpack.c.l.bf16 %v755
    %v1166 = vunpack.c.h.bf16 %v755
    %v1167 = vunpack.c.l.bf16 %v756
    %v1168 = vunpack.c.h.bf16 %v756
    %v1169 = vunpack.c.l.bf16 %v757
    %v1170 = vunpack.c.h.bf16 %v757
    %v1171 = vunpack.c.l.bf16 %v758
    %v1172 = vunpack.c.h.bf16 %v758
    %v1173 = vunpack.c.l.bf16 %v759
    %v1174 = vunpack.c.h.bf16 %v759
    %v1175 = vunpack.c.l.bf16 %v760
    %v1176 = vunpack.c.h.bf16 %v760
    %v1177 = vunpack.c.l.bf16 %v761
    %v1178 = vunpack.c.h.bf16 %v761
    %v1179 = vunpack.c.l.bf16 %v762
    %v1180 = vunpack.c.h.bf16 %v762
    %v1181 = vunpack.c.l.bf16 %v763
    %v1182 = vunpack.c.h.bf16 %v763
    %v1183 = vunpack.c.l.bf16 %v764
    %v1184 = vunpack.c.h.bf16 %v764
    %v1185 = vunpack.c.l.bf16 %v765
    %v1186 = vunpack.c.h.bf16 %v765
    %v1187 = vunpack.c.l.bf16 %v766
    %v1188 = vunpack.c.h.bf16 %v766
    %v1189 = vunpack.c.l.bf16 %v767
    %v1190 = vunpack.c.h.bf16 %v767
    %v1191 = vunpack.c.l.bf16 %v768
    %v1192 = vunpack.c.h.bf16 %v768
    %v1193 = vunpack.c.l.bf16 %v769
    %v1194 = vunpack.c.h.bf16 %v769
    %v1195 = vunpack.c.l.bf16 %v770
    %v1196 = vunpack.c.h.bf16 %v770
    %v1197 = vunpack.c.l.bf16 %v771
    %v1198 = vunpack.c.h.bf16 %v771
    %v1199 = vunpack.c.l.bf16 %v772
    %v1200 = vunpack.c.h.bf16 %v772
    %v1201 = vunpack.c.l.bf16 %v773
    %v1202 = vunpack.c.h.bf16 %v773
    %v1203 = vunpack.c.l.bf16 %v774
    %v1204 = vunpack.c.h.bf16 %v774
    %v1205 = vunpack.c.l.bf16 %v775
    %v1206 = vunpack.c.h.bf16 %v775
    %v1207 = vunpack.c.l.bf16 %v776
    %v1208 = vunpack.c.h.bf16 %v776
    %v1209 = vunpack.c.l.bf16 %v777
    %v1210 = vunpack.c.h.bf16 %v777
    %v1211 = vunpack.c.l.bf16 %v778
    %v1212 = vunpack.c.h.bf16 %v778
    %v1213 = vunpack.c.l.bf16 %v779
    %v1214 = vunpack.c.h.bf16 %v779
    %v1215 = vunpack.c.l.bf16 %v780
    %v1216 = vunpack.c.h.bf16 %v780
    %v1217 = vunpack.c.l.bf16 %v781
    %v1218 = vunpack.c.h.bf16 %v781
    %v1219 = vunpack.c.l.bf16 %v782
    %v1220 = vunpack.c.h.bf16 %v782
    %v1221 = vunpack.c.l.bf16 %v783
    %v1222 = vunpack.c.h.bf16 %v783
    %v1223 = vunpack.c.l.bf16 %v784
    %v1224 = vunpack.c.h.bf16 %v784
    %v1225 = vunpack.c.l.bf16 %v785
    %v1226 = vunpack.c.h.bf16 %v785
    %v1227 = vunpack.c.l.bf16 %v786
    %v1228 = vunpack.c.h.bf16 %v786
    %v1229 = vunpack.c.l.bf16 %v787
    %v1230 = vunpack.c.h.bf16 %v787
    %v1231 = vunpack.c.l.bf16 %v788
    %v1232 = vunpack.c.h.bf16 %v788
    %v1233 = vunpack.c.l.bf16 %v789
    %v1234 = vunpack.c.h.bf16 %v789
    %v1235 = vunpack.c.l.bf16 %v790
    %v1236 = vunpack.c.h.bf16 %v790
    %v1237 = vunpack.c.l.bf16 %v791
    %v1238 = vunpack.c.h.bf16 %v791
    %v1239 = vunpack.c.l.bf16 %v792
    %v1240 = vunpack.c.h.bf16 %v792
    %v1244 = vrot.slane %v447, 1
    %v1245 = vrot.slane %v507, 1
    %v1246 = vrot.slane %v567, 1
    %v1250 = vmax.f32 %v447, %v1244
    %v1251 = vmax.f32 %v507, %v1245
    %v1252 = vmax.f32 %v567, %v1246
    %v1253 = vrot.slane %v447, 2
    %v1254 = vrot.slane %v507, 2
    %v1255 = vrot.slane %v567, 2
    %v1259 = vmax.f32 %v1250, %v1253
    %v1260 = vmax.f32 %v1251, %v1254
    %v1261 = vmax.f32 %v1252, %v1255
    %v1262 = vrot.slane %v447, 3
    %v1263 = vrot.slane %v507, 3
    %v1264 = vrot.slane %v567, 3
    %v1268 = vmax.f32 %v1259, %v1262
    %v1269 = vmax.f32 %v1260, %v1263
    %v1270 = vmax.f32 %v1261, %v1264
    %v1274 = vrot.slane %v1268, 3
    %v1275 = vrot.slane %v1269, 3
    %v1276 = vrot.slane %v1270, 3
    %vm1280 = vcmask 1040384
    %v1281 = vsel %vm1280, %v1268, %v1274
    %v1282 = vsel %vm1280, %v1269, %v1275
    %v1283 = vsel %vm1280, %v1270, %v1276
    %1285 = vrot.lane.b32.xlu0 %v1281, 96
    %v1286 = vpop.permute.xlu0 %1285
    %v1288 = vmax.f32 %v1281, %v1286
    %1289 = vrot.lane.b32.xlu0 %v1281, 64
    %v1290 = vpop.permute.xlu0 %1289
    %v1292 = vmax.f32 %v1288, %v1290
    %1293 = vrot.lane.b32.xlu0 %v1281, 32
    %v1294 = vpop.permute.xlu0 %1293
    %v1296 = vmax.f32 %v1292, %v1294
    %v1297 = vmax.f32 %v1296, %v1282
    %1299 = vrot.lane.b32.xlu0 %v1282, 96
    %v1300 = vpop.permute.xlu0 %1299
    %v1302 = vmax.f32 %v1297, %v1300
    %1303 = vrot.lane.b32.xlu0 %v1282, 64
    %v1304 = vpop.permute.xlu0 %1303
    %v1306 = vmax.f32 %v1302, %v1304
    %1307 = vrot.lane.b32.xlu0 %v1282, 32
    %v1308 = vpop.permute.xlu0 %1307
    %v1310 = vmax.f32 %v1306, %v1308
    %v1311 = vmax.f32 %v1310, %v1283
    %1313 = vrot.lane.b32.xlu0 %v1283, 96
    %v1314 = vpop.permute.xlu0 %1313
    %v1316 = vmax.f32 %v1311, %v1314
    %v1320 = vrot.slane %v1250, 3
    %v1321 = vrot.slane %v1251, 3
    %v1322 = vrot.slane %v1252, 3
    %v1326 = vsel %vm1280, %v1250, %v1320
    %v1327 = vsel %vm1280, %v1251, %v1321
    %v1328 = vsel %vm1280, %v1252, %v1322
    %v1329 = vrot.slane %v1250, 2
    %v1330 = vrot.slane %v1251, 2
    %v1331 = vrot.slane %v1252, 2
    %v1335 = vrot.slane %v1250, 5
    %v1336 = vrot.slane %v1251, 5
    %v1337 = vrot.slane %v1252, 5
    %v1341 = vsel %vm1280, %v1329, %v1335
    %v1342 = vsel %vm1280, %v1330, %v1336
    %v1343 = vsel %vm1280, %v1331, %v1337
    %1345 = vrot.lane.b32.xlu0 %v1326, 96
    %v1346 = vpop.permute.xlu0 %1345
    %v1348 = vmax.f32 %v1326, %v1346
    %1349 = vrot.lane.b32.xlu0 %v1326, 64
    %v1350 = vpop.permute.xlu0 %1349
    %v1352 = vmax.f32 %v1348, %v1350
    %1353 = vrot.lane.b32.xlu0 %v1326, 32
    %v1354 = vpop.permute.xlu0 %1353
    %v1356 = vmax.f32 %v1352, %v1354
    %v1357 = vmax.f32 %v1356, %v1327
    %vm1358 = vcmask 261120
    %v1360 = vsel %vm1358, %v1357, 0
    %1362 = vmatpush.msra.mxu0 0.0
    %1363 = vmatpush.msra.mxu0 0.0
    %1364 = vmatpush.msra.mxu0 0.0
    %1365 = vmatpush.msra.mxu0 0.0
    %1366 = vmatpush.msra.mxu0 0.0
    %1367 = vmatpush.msra.mxu0 0.0
    %1368 = vmatpush.msra.mxu0 0.0
    %1369 = vmatpush.msra.mxu0 0.0
    %1370 = vmatpush.msra.mxu0 0.0
    %1371 = vmatpush.msra.mxu0 0.0
    %1372 = vmatpush.msra.mxu0 0.0
    %1373 = vmatpush.msra.mxu0 0.0
    %1374 = vmatpush.msra.mxu0 %v849
    %1375 = vmatpush.msra.mxu0 %v841
    %1376 = vmatpush.msra.mxu0 %v833
    %1377 = vmatpush.msra.mxu0 %v825
    %1378 = vmatmul.f32.gmra.mxu0 %v1360
    %v1379 = vpop.f32.mrf.mxu0
    %v1380 = vadd.f32 0.0, %v1379
    %1381 = vdwg.mxu0
    %1382 = vmatpush.msra.mxu0 0.0
    %1383 = vmatpush.msra.mxu0 0.0
    %1384 = vmatpush.msra.mxu0 0.0
    %1385 = vmatpush.msra.mxu0 0.0
    %1386 = vmatpush.msra.mxu0 0.0
    %1387 = vmatpush.msra.mxu0 0.0
    %1388 = vmatpush.msra.mxu0 0.0
    %1389 = vmatpush.msra.mxu0 0.0
    %1390 = vmatpush.msra.mxu0 0.0
    %1391 = vmatpush.msra.mxu0 0.0
    %1392 = vmatpush.msra.mxu0 0.0
    %1393 = vmatpush.msra.mxu0 0.0
    %1394 = vmatpush.msra.mxu0 %v850
    %1395 = vmatpush.msra.mxu0 %v842
    %1396 = vmatpush.msra.mxu0 %v834
    %1397 = vmatpush.msra.mxu0 %v826
    %1398 = vmatmul.f32.gmra.mxu0 %v1360
    %v1399 = vpop.f32.mrf.mxu0
    %v1400 = vadd.f32 0.0, %v1399
    %1401 = vdwg.mxu0
    %1402 = vmatpush.msra.mxu0 0.0
    %1403 = vmatpush.msra.mxu0 0.0
    %1404 = vmatpush.msra.mxu0 0.0
    %1405 = vmatpush.msra.mxu0 0.0
    %1406 = vmatpush.msra.mxu0 0.0
    %1407 = vmatpush.msra.mxu0 0.0
    %1408 = vmatpush.msra.mxu0 0.0
    %1409 = vmatpush.msra.mxu0 0.0
    %1410 = vmatpush.msra.mxu0 0.0
    %1411 = vmatpush.msra.mxu0 0.0
    %1412 = vmatpush.msra.mxu0 0.0
    %1413 = vmatpush.msra.mxu0 0.0
    %1414 = vmatpush.msra.mxu0 %v851
    %1415 = vmatpush.msra.mxu0 %v843
    %1416 = vmatpush.msra.mxu0 %v835
    %1417 = vmatpush.msra.mxu0 %v827
    %1418 = vmatmul.f32.gmra.mxu0 %v1360
    %v1419 = vpop.f32.mrf.mxu0
    %v1420 = vadd.f32 0.0, %v1419
    %1421 = vdwg.mxu0
    %1422 = vmatpush.msra.mxu0 0.0
    %1423 = vmatpush.msra.mxu0 0.0
    %1424 = vmatpush.msra.mxu0 0.0
    %1425 = vmatpush.msra.mxu0 0.0
    %1426 = vmatpush.msra.mxu0 0.0
    %1427 = vmatpush.msra.mxu0 0.0
    %1428 = vmatpush.msra.mxu0 0.0
    %1429 = vmatpush.msra.mxu0 0.0
    %1430 = vmatpush.msra.mxu0 0.0
    %1431 = vmatpush.msra.mxu0 0.0
    %1432 = vmatpush.msra.mxu0 0.0
    %1433 = vmatpush.msra.mxu0 0.0
    %1434 = vmatpush.msra.mxu0 %v852
    %1435 = vmatpush.msra.mxu0 %v844
    %1436 = vmatpush.msra.mxu0 %v836
    %1437 = vmatpush.msra.mxu0 %v828
    %1438 = vmatmul.f32.gmra.mxu0 %v1360
    %v1439 = vpop.f32.mrf.mxu0
    %v1440 = vadd.f32 0.0, %v1439
    %1441 = vdwg.mxu0
    %1442 = vmatpush.msra.mxu0 0.0
    %1443 = vmatpush.msra.mxu0 0.0
    %1444 = vmatpush.msra.mxu0 0.0
    %1445 = vmatpush.msra.mxu0 0.0
    %1446 = vmatpush.msra.mxu0 0.0
    %1447 = vmatpush.msra.mxu0 0.0
    %1448 = vmatpush.msra.mxu0 0.0
    %1449 = vmatpush.msra.mxu0 0.0
    %1450 = vmatpush.msra.mxu0 0.0
    %1451 = vmatpush.msra.mxu0 0.0
    %1452 = vmatpush.msra.mxu0 0.0
    %1453 = vmatpush.msra.mxu0 0.0
    %1454 = vmatpush.msra.mxu0 %v853
    %1455 = vmatpush.msra.mxu0 %v845
    %1456 = vmatpush.msra.mxu0 %v837
    %1457 = vmatpush.msra.mxu0 %v829
    %1458 = vmatmul.f32.gmra.mxu0 %v1360
    %v1459 = vpop.f32.mrf.mxu0
    %v1460 = vadd.f32 0.0, %v1459
    %1461 = vdwg.mxu0
    %1462 = vmatpush.msra.mxu0 0.0
    %1463 = vmatpush.msra.mxu0 0.0
    %1464 = vmatpush.msra.mxu0 0.0
    %1465 = vmatpush.msra.mxu0 0.0
    %1466 = vmatpush.msra.mxu0 0.0
    %1467 = vmatpush.msra.mxu0 0.0
    %1468 = vmatpush.msra.mxu0 0.0
    %1469 = vmatpush.msra.mxu0 0.0
    %1470 = vmatpush.msra.mxu0 0.0
    %1471 = vmatpush.msra.mxu0 0.0
    %1472 = vmatpush.msra.mxu0 0.0
    %1473 = vmatpush.msra.mxu0 0.0
    %1474 = vmatpush.msra.mxu0 %v854
    %1475 = vmatpush.msra.mxu0 %v846
    %1476 = vmatpush.msra.mxu0 %v838
    %1477 = vmatpush.msra.mxu0 %v830
    %1478 = vmatmul.f32.gmra.mxu0 %v1360
    %v1479 = vpop.f32.mrf.mxu0
    %v1480 = vadd.f32 0.0, %v1479
    %1481 = vdwg.mxu0
    %1482 = vmatpush.msra.mxu0 0.0
    %1483 = vmatpush.msra.mxu0 0.0
    %1484 = vmatpush.msra.mxu0 0.0
    %1485 = vmatpush.msra.mxu0 0.0
    %1486 = vmatpush.msra.mxu0 0.0
    %1487 = vmatpush.msra.mxu0 0.0
    %1488 = vmatpush.msra.mxu0 0.0
    %1489 = vmatpush.msra.mxu0 0.0
    %1490 = vmatpush.msra.mxu0 0.0
    %1491 = vmatpush.msra.mxu0 0.0
    %1492 = vmatpush.msra.mxu0 0.0
    %1493 = vmatpush.msra.mxu0 0.0
    %1494 = vmatpush.msra.mxu0 %v855
    %1495 = vmatpush.msra.mxu0 %v847
    %1496 = vmatpush.msra.mxu0 %v839
    %1497 = vmatpush.msra.mxu0 %v831
    %1498 = vmatmul.f32.gmra.mxu0 %v1360
    %v1499 = vpop.f32.mrf.mxu0
    %v1500 = vadd.f32 0.0, %v1499
    %1501 = vdwg.mxu0
    %1502 = vmatpush.msra.mxu0 0.0
    %1503 = vmatpush.msra.mxu0 0.0
    %1504 = vmatpush.msra.mxu0 0.0
    %1505 = vmatpush.msra.mxu0 0.0
    %1506 = vmatpush.msra.mxu0 0.0
    %1507 = vmatpush.msra.mxu0 0.0
    %1508 = vmatpush.msra.mxu0 0.0
    %1509 = vmatpush.msra.mxu0 0.0
    %1510 = vmatpush.msra.mxu0 0.0
    %1511 = vmatpush.msra.mxu0 0.0
    %1512 = vmatpush.msra.mxu0 0.0
    %1513 = vmatpush.msra.mxu0 0.0
    %1514 = vmatpush.msra.mxu0 %v856
    %1515 = vmatpush.msra.mxu0 %v848
    %1516 = vmatpush.msra.mxu0 %v840
    %1517 = vmatpush.msra.mxu0 %v832
    %1518 = vmatmul.f32.gmra.mxu0 %v1360
    %v1519 = vpop.f32.mrf.mxu0
    %v1520 = vadd.f32 0.0, %v1519
    %1521 = vdwg.mxu0
    %v1523 = vsel %vm1358, %v1316, 0
    %1525 = vmatpush.msra.mxu0 0.0
    %1526 = vmatpush.msra.mxu0 0.0
    %1527 = vmatpush.msra.mxu0 0.0
    %1528 = vmatpush.msra.mxu0 0.0
    %1529 = vmatpush.msra.mxu0 0.0
    %1530 = vmatpush.msra.mxu0 0.0
    %1531 = vmatpush.msra.mxu0 0.0
    %1532 = vmatpush.msra.mxu0 0.0
    %1533 = vmatpush.msra.mxu0 0.0
    %1534 = vmatpush.msra.mxu0 0.0
    %1535 = vmatpush.msra.mxu0 0.0
    %1536 = vmatpush.msra.mxu0 0.0
    %1537 = vmatpush.msra.mxu0 %v817
    %1538 = vmatpush.msra.mxu0 %v809
    %1539 = vmatpush.msra.mxu0 %v801
    %1540 = vmatpush.msra.mxu0 %v793
    %1541 = vmatmul.f32.gmra.mxu0 %v1523
    %v1542 = vpop.f32.mrf.mxu0
    %v1543 = vadd.f32 %v1380, %v1542
    %1544 = vdwg.mxu0
    %1545 = vmatpush.msra.mxu0 0.0
    %1546 = vmatpush.msra.mxu0 0.0
    %1547 = vmatpush.msra.mxu0 0.0
    %1548 = vmatpush.msra.mxu0 0.0
    %1549 = vmatpush.msra.mxu0 0.0
    %1550 = vmatpush.msra.mxu0 0.0
    %1551 = vmatpush.msra.mxu0 0.0
    %1552 = vmatpush.msra.mxu0 0.0
    %1553 = vmatpush.msra.mxu0 0.0
    %1554 = vmatpush.msra.mxu0 0.0
    %1555 = vmatpush.msra.mxu0 0.0
    %1556 = vmatpush.msra.mxu0 0.0
    %1557 = vmatpush.msra.mxu0 %v818
    %1558 = vmatpush.msra.mxu0 %v810
    %1559 = vmatpush.msra.mxu0 %v802
    %1560 = vmatpush.msra.mxu0 %v794
    %1561 = vmatmul.f32.gmra.mxu0 %v1523
    %v1562 = vpop.f32.mrf.mxu0
    %v1563 = vadd.f32 %v1400, %v1562
    %1564 = vdwg.mxu0
    %1565 = vmatpush.msra.mxu0 0.0
    %1566 = vmatpush.msra.mxu0 0.0
    %1567 = vmatpush.msra.mxu0 0.0
    %1568 = vmatpush.msra.mxu0 0.0
    %1569 = vmatpush.msra.mxu0 0.0
    %1570 = vmatpush.msra.mxu0 0.0
    %1571 = vmatpush.msra.mxu0 0.0
    %1572 = vmatpush.msra.mxu0 0.0
    %1573 = vmatpush.msra.mxu0 0.0
    %1574 = vmatpush.msra.mxu0 0.0
    %1575 = vmatpush.msra.mxu0 0.0
    %1576 = vmatpush.msra.mxu0 0.0
    %1577 = vmatpush.msra.mxu0 %v819
    %1578 = vmatpush.msra.mxu0 %v811
    %1579 = vmatpush.msra.mxu0 %v803
    %1580 = vmatpush.msra.mxu0 %v795
    %1581 = vmatmul.f32.gmra.mxu0 %v1523
    %v1582 = vpop.f32.mrf.mxu0
    %v1583 = vadd.f32 %v1420, %v1582
    %1584 = vdwg.mxu0
    %1585 = vmatpush.msra.mxu0 0.0
    %1586 = vmatpush.msra.mxu0 0.0
    %1587 = vmatpush.msra.mxu0 0.0
    %1588 = vmatpush.msra.mxu0 0.0
    %1589 = vmatpush.msra.mxu0 0.0
    %1590 = vmatpush.msra.mxu0 0.0
    %1591 = vmatpush.msra.mxu0 0.0
    %1592 = vmatpush.msra.mxu0 0.0
    %1593 = vmatpush.msra.mxu0 0.0
    %1594 = vmatpush.msra.mxu0 0.0
    %1595 = vmatpush.msra.mxu0 0.0
    %1596 = vmatpush.msra.mxu0 0.0
    %1597 = vmatpush.msra.mxu0 %v820
    %1598 = vmatpush.msra.mxu0 %v812
    %1599 = vmatpush.msra.mxu0 %v804
    %1600 = vmatpush.msra.mxu0 %v796
    %1601 = vmatmul.f32.gmra.mxu0 %v1523
    %v1602 = vpop.f32.mrf.mxu0
    %v1603 = vadd.f32 %v1440, %v1602
    %1604 = vdwg.mxu0
    %1605 = vmatpush.msra.mxu0 0.0
    %1606 = vmatpush.msra.mxu0 0.0
    %1607 = vmatpush.msra.mxu0 0.0
    %1608 = vmatpush.msra.mxu0 0.0
    %1609 = vmatpush.msra.mxu0 0.0
    %1610 = vmatpush.msra.mxu0 0.0
    %1611 = vmatpush.msra.mxu0 0.0
    %1612 = vmatpush.msra.mxu0 0.0
    %1613 = vmatpush.msra.mxu0 0.0
    %1614 = vmatpush.msra.mxu0 0.0
    %1615 = vmatpush.msra.mxu0 0.0
    %1616 = vmatpush.msra.mxu0 0.0
    %1617 = vmatpush.msra.mxu0 %v821
    %1618 = vmatpush.msra.mxu0 %v813
    %1619 = vmatpush.msra.mxu0 %v805
    %1620 = vmatpush.msra.mxu0 %v797
    %1621 = vmatmul.f32.gmra.mxu0 %v1523
    %v1622 = vpop.f32.mrf.mxu0
    %v1623 = vadd.f32 %v1460, %v1622
    %1624 = vdwg.mxu0
    %1625 = vmatpush.msra.mxu0 0.0
    %1626 = vmatpush.msra.mxu0 0.0
    %1627 = vmatpush.msra.mxu0 0.0
    %1628 = vmatpush.msra.mxu0 0.0
    %1629 = vmatpush.msra.mxu0 0.0
    %1630 = vmatpush.msra.mxu0 0.0
    %1631 = vmatpush.msra.mxu0 0.0
    %1632 = vmatpush.msra.mxu0 0.0
    %1633 = vmatpush.msra.mxu0 0.0
    %1634 = vmatpush.msra.mxu0 0.0
    %1635 = vmatpush.msra.mxu0 0.0
    %1636 = vmatpush.msra.mxu0 0.0
    %1637 = vmatpush.msra.mxu0 %v822
    %1638 = vmatpush.msra.mxu0 %v814
    %1639 = vmatpush.msra.mxu0 %v806
    %1640 = vmatpush.msra.mxu0 %v798
    %1641 = vmatmul.f32.gmra.mxu0 %v1523
    %v1642 = vpop.f32.mrf.mxu0
    %v1643 = vadd.f32 %v1480, %v1642
    %1644 = vdwg.mxu0
    %1645 = vmatpush.msra.mxu0 0.0
    %1646 = vmatpush.msra.mxu0 0.0
    %1647 = vmatpush.msra.mxu0 0.0
    %1648 = vmatpush.msra.mxu0 0.0
    %1649 = vmatpush.msra.mxu0 0.0
    %1650 = vmatpush.msra.mxu0 0.0
    %1651 = vmatpush.msra.mxu0 0.0
    %1652 = vmatpush.msra.mxu0 0.0
    %1653 = vmatpush.msra.mxu0 0.0
    %1654 = vmatpush.msra.mxu0 0.0
    %1655 = vmatpush.msra.mxu0 0.0
    %1656 = vmatpush.msra.mxu0 0.0
    %1657 = vmatpush.msra.mxu0 %v823
    %1658 = vmatpush.msra.mxu0 %v815
    %1659 = vmatpush.msra.mxu0 %v807
    %1660 = vmatpush.msra.mxu0 %v799
    %1661 = vmatmul.f32.gmra.mxu0 %v1523
    %v1662 = vpop.f32.mrf.mxu0
    %v1663 = vadd.f32 %v1500, %v1662
    %1664 = vdwg.mxu0
    %1665 = vmatpush.msra.mxu0 0.0
    %1666 = vmatpush.msra.mxu0 0.0
    %1667 = vmatpush.msra.mxu0 0.0
    %1668 = vmatpush.msra.mxu0 0.0
    %1669 = vmatpush.msra.mxu0 0.0
    %1670 = vmatpush.msra.mxu0 0.0
    %1671 = vmatpush.msra.mxu0 0.0
    %1672 = vmatpush.msra.mxu0 0.0
    %1673 = vmatpush.msra.mxu0 0.0
    %1674 = vmatpush.msra.mxu0 0.0
    %1675 = vmatpush.msra.mxu0 0.0
    %1676 = vmatpush.msra.mxu0 0.0
    %1677 = vmatpush.msra.mxu0 %v824
    %1678 = vmatpush.msra.mxu0 %v816
    %1679 = vmatpush.msra.mxu0 %v808
    %1680 = vmatpush.msra.mxu0 %v800
    %1681 = vmatmul.f32.gmra.mxu0 %v1523
    %v1682 = vpop.f32.mrf.mxu0
    %v1683 = vadd.f32 %v1520, %v1682
    %1684 = vdwg.mxu0
    %1686 = vrot.lane.b32.xlu0 %v1341, 96
    %v1687 = vpop.permute.xlu0 %1686
    %v1689 = vmax.f32 %v1341, %v1687
    %1690 = vrot.lane.b32.xlu0 %v1341, 64
    %v1691 = vpop.permute.xlu0 %1690
    %v1693 = vmax.f32 %v1689, %v1691
    %1694 = vrot.lane.b32.xlu0 %v1341, 32
    %v1695 = vpop.permute.xlu0 %1694
    %v1697 = vmax.f32 %v1693, %v1695
    %v1698 = vmax.f32 %v1697, %v1342
    %v1700 = vsel %vm1358, %v1698, 0
    %1702 = vmatpush.msra.mxu0 0.0
    %1703 = vmatpush.msra.mxu0 0.0
    %1704 = vmatpush.msra.mxu0 0.0
    %1705 = vmatpush.msra.mxu0 0.0
    %1706 = vmatpush.msra.mxu0 0.0
    %1707 = vmatpush.msra.mxu0 0.0
    %1708 = vmatpush.msra.mxu0 0.0
    %1709 = vmatpush.msra.mxu0 0.0
    %1710 = vmatpush.msra.mxu0 0.0
    %1711 = vmatpush.msra.mxu0 0.0
    %1712 = vmatpush.msra.mxu0 0.0
    %1713 = vmatpush.msra.mxu0 0.0
    %1714 = vmatpush.msra.mxu0 %v881
    %1715 = vmatpush.msra.mxu0 %v873
    %1716 = vmatpush.msra.mxu0 %v865
    %1717 = vmatpush.msra.mxu0 %v857
    %1718 = vmatmul.f32.gmra.mxu0 %v1700
    %v1719 = vpop.f32.mrf.mxu0
    %v1720 = vadd.f32 0.0, %v1719
    %1721 = vdwg.mxu0
    %1722 = vmatpush.msra.mxu0 0.0
    %1723 = vmatpush.msra.mxu0 0.0
    %1724 = vmatpush.msra.mxu0 0.0
    %1725 = vmatpush.msra.mxu0 0.0
    %1726 = vmatpush.msra.mxu0 0.0
    %1727 = vmatpush.msra.mxu0 0.0
    %1728 = vmatpush.msra.mxu0 0.0
    %1729 = vmatpush.msra.mxu0 0.0
    %1730 = vmatpush.msra.mxu0 0.0
    %1731 = vmatpush.msra.mxu0 0.0
    %1732 = vmatpush.msra.mxu0 0.0
    %1733 = vmatpush.msra.mxu0 0.0
    %1734 = vmatpush.msra.mxu0 %v882
    %1735 = vmatpush.msra.mxu0 %v874
    %1736 = vmatpush.msra.mxu0 %v866
    %1737 = vmatpush.msra.mxu0 %v858
    %1738 = vmatmul.f32.gmra.mxu0 %v1700
    %v1739 = vpop.f32.mrf.mxu0
    %v1740 = vadd.f32 0.0, %v1739
    %1741 = vdwg.mxu0
    %1742 = vmatpush.msra.mxu0 0.0
    %1743 = vmatpush.msra.mxu0 0.0
    %1744 = vmatpush.msra.mxu0 0.0
    %1745 = vmatpush.msra.mxu0 0.0
    %1746 = vmatpush.msra.mxu0 0.0
    %1747 = vmatpush.msra.mxu0 0.0
    %1748 = vmatpush.msra.mxu0 0.0
    %1749 = vmatpush.msra.mxu0 0.0
    %1750 = vmatpush.msra.mxu0 0.0
    %1751 = vmatpush.msra.mxu0 0.0
    %1752 = vmatpush.msra.mxu0 0.0
    %1753 = vmatpush.msra.mxu0 0.0
    %1754 = vmatpush.msra.mxu0 %v883
    %1755 = vmatpush.msra.mxu0 %v875
    %1756 = vmatpush.msra.mxu0 %v867
    %1757 = vmatpush.msra.mxu0 %v859
    %1758 = vmatmul.f32.gmra.mxu0 %v1700
    %v1759 = vpop.f32.mrf.mxu0
    %v1760 = vadd.f32 0.0, %v1759
    %1761 = vdwg.mxu0
    %1762 = vmatpush.msra.mxu0 0.0
    %1763 = vmatpush.msra.mxu0 0.0
    %1764 = vmatpush.msra.mxu0 0.0
    %1765 = vmatpush.msra.mxu0 0.0
    %1766 = vmatpush.msra.mxu0 0.0
    %1767 = vmatpush.msra.mxu0 0.0
    %1768 = vmatpush.msra.mxu0 0.0
    %1769 = vmatpush.msra.mxu0 0.0
    %1770 = vmatpush.msra.mxu0 0.0
    %1771 = vmatpush.msra.mxu0 0.0
    %1772 = vmatpush.msra.mxu0 0.0
    %1773 = vmatpush.msra.mxu0 0.0
    %1774 = vmatpush.msra.mxu0 %v884
    %1775 = vmatpush.msra.mxu0 %v876
    %1776 = vmatpush.msra.mxu0 %v868
    %1777 = vmatpush.msra.mxu0 %v860
    %1778 = vmatmul.f32.gmra.mxu0 %v1700
    %v1779 = vpop.f32.mrf.mxu0
    %v1780 = vadd.f32 0.0, %v1779
    %1781 = vdwg.mxu0
    %1782 = vmatpush.msra.mxu0 0.0
    %1783 = vmatpush.msra.mxu0 0.0
    %1784 = vmatpush.msra.mxu0 0.0
    %1785 = vmatpush.msra.mxu0 0.0
    %1786 = vmatpush.msra.mxu0 0.0
    %1787 = vmatpush.msra.mxu0 0.0
    %1788 = vmatpush.msra.mxu0 0.0
    %1789 = vmatpush.msra.mxu0 0.0
    %1790 = vmatpush.msra.mxu0 0.0
    %1791 = vmatpush.msra.mxu0 0.0
    %1792 = vmatpush.msra.mxu0 0.0
    %1793 = vmatpush.msra.mxu0 0.0
    %1794 = vmatpush.msra.mxu0 %v885
    %1795 = vmatpush.msra.mxu0 %v877
    %1796 = vmatpush.msra.mxu0 %v869
    %1797 = vmatpush.msra.mxu0 %v861
    %1798 = vmatmul.f32.gmra.mxu0 %v1700
    %v1799 = vpop.f32.mrf.mxu0
    %v1800 = vadd.f32 0.0, %v1799
    %1801 = vdwg.mxu0
    %1802 = vmatpush.msra.mxu0 0.0
    %1803 = vmatpush.msra.mxu0 0.0
    %1804 = vmatpush.msra.mxu0 0.0
    %1805 = vmatpush.msra.mxu0 0.0
    %1806 = vmatpush.msra.mxu0 0.0
    %1807 = vmatpush.msra.mxu0 0.0
    %1808 = vmatpush.msra.mxu0 0.0
    %1809 = vmatpush.msra.mxu0 0.0
    %1810 = vmatpush.msra.mxu0 0.0
    %1811 = vmatpush.msra.mxu0 0.0
    %1812 = vmatpush.msra.mxu0 0.0
    %1813 = vmatpush.msra.mxu0 0.0
    %1814 = vmatpush.msra.mxu0 %v886
    %1815 = vmatpush.msra.mxu0 %v878
    %1816 = vmatpush.msra.mxu0 %v870
    %1817 = vmatpush.msra.mxu0 %v862
    %1818 = vmatmul.f32.gmra.mxu0 %v1700
    %v1819 = vpop.f32.mrf.mxu0
    %v1820 = vadd.f32 0.0, %v1819
    %1821 = vdwg.mxu0
    %1822 = vmatpush.msra.mxu0 0.0
    %1823 = vmatpush.msra.mxu0 0.0
    %1824 = vmatpush.msra.mxu0 0.0
    %1825 = vmatpush.msra.mxu0 0.0
    %1826 = vmatpush.msra.mxu0 0.0
    %1827 = vmatpush.msra.mxu0 0.0
    %1828 = vmatpush.msra.mxu0 0.0
    %1829 = vmatpush.msra.mxu0 0.0
    %1830 = vmatpush.msra.mxu0 0.0
    %1831 = vmatpush.msra.mxu0 0.0
    %1832 = vmatpush.msra.mxu0 0.0
    %1833 = vmatpush.msra.mxu0 0.0
    %1834 = vmatpush.msra.mxu0 %v887
    %1835 = vmatpush.msra.mxu0 %v879
    %1836 = vmatpush.msra.mxu0 %v871
    %1837 = vmatpush.msra.mxu0 %v863
    %1838 = vmatmul.f32.gmra.mxu0 %v1700
    %v1839 = vpop.f32.mrf.mxu0
    %v1840 = vadd.f32 0.0, %v1839
    %1841 = vdwg.mxu0
    %1842 = vmatpush.msra.mxu0 0.0
    %1843 = vmatpush.msra.mxu0 0.0
    %1844 = vmatpush.msra.mxu0 0.0
    %1845 = vmatpush.msra.mxu0 0.0
    %1846 = vmatpush.msra.mxu0 0.0
    %1847 = vmatpush.msra.mxu0 0.0
    %1848 = vmatpush.msra.mxu0 0.0
    %1849 = vmatpush.msra.mxu0 0.0
    %1850 = vmatpush.msra.mxu0 0.0
    %1851 = vmatpush.msra.mxu0 0.0
    %1852 = vmatpush.msra.mxu0 0.0
    %1853 = vmatpush.msra.mxu0 0.0
    %1854 = vmatpush.msra.mxu0 %v888
    %1855 = vmatpush.msra.mxu0 %v880
    %1856 = vmatpush.msra.mxu0 %v872
    %1857 = vmatpush.msra.mxu0 %v864
    %1858 = vmatmul.f32.gmra.mxu0 %v1700
    %v1859 = vpop.f32.mrf.mxu0
    %v1860 = vadd.f32 0.0, %v1859
    %1861 = vdwg.mxu0
    %v1862 = vadd.f32 %v1543, %v1720
    %v1863 = vadd.f32 %v1563, %v1740
    %v1864 = vadd.f32 %v1583, %v1760
    %v1865 = vadd.f32 %v1603, %v1780
    %v1866 = vadd.f32 %v1623, %v1800
    %v1867 = vadd.f32 %v1643, %v1820
    %v1868 = vadd.f32 %v1663, %v1840
    %v1869 = vadd.f32 %v1683, %v1860
    %1871 = vrot.lane.b32.xlu0 %v1327, 96
    %v1872 = vpop.permute.xlu0 %1871
    %v1874 = vmax.f32 %v1327, %v1872
    %1875 = vrot.lane.b32.xlu0 %v1327, 64
    %v1876 = vpop.permute.xlu0 %1875
    %v1878 = vmax.f32 %v1874, %v1876
    %1880 = vrot.lane.b32.xlu0 %v1328, 32
    %v1881 = vpop.permute.xlu0 %1880
    %v1883 = vmax.f32 %v1878, %v1881
    %v1884 = vmax.f32 %v1883, %v1328
    %1886 = vrot.lane.b32.xlu0 %v1884, 96
    %v1887 = vpop.permute.xlu0 %1886
    %v1888 = vsel %vm1358, %v1887, 0
    %1890 = vmatpush.msra.mxu0 0.0
    %1891 = vmatpush.msra.mxu0 0.0
    %1892 = vmatpush.msra.mxu0 0.0
    %1893 = vmatpush.msra.mxu0 0.0
    %1894 = vmatpush.msra.mxu0 0.0
    %1895 = vmatpush.msra.mxu0 0.0
    %1896 = vmatpush.msra.mxu0 0.0
    %1897 = vmatpush.msra.mxu0 0.0
    %1898 = vmatpush.msra.mxu0 0.0
    %1899 = vmatpush.msra.mxu0 0.0
    %1900 = vmatpush.msra.mxu0 0.0
    %1901 = vmatpush.msra.mxu0 0.0
    %1902 = vmatpush.msra.mxu0 %v913
    %1903 = vmatpush.msra.mxu0 %v905
    %1904 = vmatpush.msra.mxu0 %v897
    %1905 = vmatpush.msra.mxu0 %v889
    %1906 = vmatmul.f32.gmra.mxu0 %v1888
    %v1907 = vpop.f32.mrf.mxu0
    %v1908 = vadd.f32 0.0, %v1907
    %1909 = vdwg.mxu0
    %1910 = vmatpush.msra.mxu0 0.0
    %1911 = vmatpush.msra.mxu0 0.0
    %1912 = vmatpush.msra.mxu0 0.0
    %1913 = vmatpush.msra.mxu0 0.0
    %1914 = vmatpush.msra.mxu0 0.0
    %1915 = vmatpush.msra.mxu0 0.0
    %1916 = vmatpush.msra.mxu0 0.0
    %1917 = vmatpush.msra.mxu0 0.0
    %1918 = vmatpush.msra.mxu0 0.0
    %1919 = vmatpush.msra.mxu0 0.0
    %1920 = vmatpush.msra.mxu0 0.0
    %1921 = vmatpush.msra.mxu0 0.0
    %1922 = vmatpush.msra.mxu0 %v914
    %1923 = vmatpush.msra.mxu0 %v906
    %1924 = vmatpush.msra.mxu0 %v898
    %1925 = vmatpush.msra.mxu0 %v890
    %1926 = vmatmul.f32.gmra.mxu0 %v1888
    %v1927 = vpop.f32.mrf.mxu0
    %v1928 = vadd.f32 0.0, %v1927
    %1929 = vdwg.mxu0
    %1930 = vmatpush.msra.mxu0 0.0
    %1931 = vmatpush.msra.mxu0 0.0
    %1932 = vmatpush.msra.mxu0 0.0
    %1933 = vmatpush.msra.mxu0 0.0
    %1934 = vmatpush.msra.mxu0 0.0
    %1935 = vmatpush.msra.mxu0 0.0
    %1936 = vmatpush.msra.mxu0 0.0
    %1937 = vmatpush.msra.mxu0 0.0
    %1938 = vmatpush.msra.mxu0 0.0
    %1939 = vmatpush.msra.mxu0 0.0
    %1940 = vmatpush.msra.mxu0 0.0
    %1941 = vmatpush.msra.mxu0 0.0
    %1942 = vmatpush.msra.mxu0 %v915
    %1943 = vmatpush.msra.mxu0 %v907
    %1944 = vmatpush.msra.mxu0 %v899
    %1945 = vmatpush.msra.mxu0 %v891
    %1946 = vmatmul.f32.gmra.mxu0 %v1888
    %v1947 = vpop.f32.mrf.mxu0
    %v1948 = vadd.f32 0.0, %v1947
    %1949 = vdwg.mxu0
    %1950 = vmatpush.msra.mxu0 0.0
    %1951 = vmatpush.msra.mxu0 0.0
    %1952 = vmatpush.msra.mxu0 0.0
    %1953 = vmatpush.msra.mxu0 0.0
    %1954 = vmatpush.msra.mxu0 0.0
    %1955 = vmatpush.msra.mxu0 0.0
    %1956 = vmatpush.msra.mxu0 0.0
    %1957 = vmatpush.msra.mxu0 0.0
    %1958 = vmatpush.msra.mxu0 0.0
    %1959 = vmatpush.msra.mxu0 0.0
    %1960 = vmatpush.msra.mxu0 0.0
    %1961 = vmatpush.msra.mxu0 0.0
    %1962 = vmatpush.msra.mxu0 %v916
    %1963 = vmatpush.msra.mxu0 %v908
    %1964 = vmatpush.msra.mxu0 %v900
    %1965 = vmatpush.msra.mxu0 %v892
    %1966 = vmatmul.f32.gmra.mxu0 %v1888
    %v1967 = vpop.f32.mrf.mxu0
    %v1968 = vadd.f32 0.0, %v1967
    %1969 = vdwg.mxu0
    %1970 = vmatpush.msra.mxu0 0.0
    %1971 = vmatpush.msra.mxu0 0.0
    %1972 = vmatpush.msra.mxu0 0.0
    %1973 = vmatpush.msra.mxu0 0.0
    %1974 = vmatpush.msra.mxu0 0.0
    %1975 = vmatpush.msra.mxu0 0.0
    %1976 = vmatpush.msra.mxu0 0.0
    %1977 = vmatpush.msra.mxu0 0.0
    %1978 = vmatpush.msra.mxu0 0.0
    %1979 = vmatpush.msra.mxu0 0.0
    %1980 = vmatpush.msra.mxu0 0.0
    %1981 = vmatpush.msra.mxu0 0.0
    %1982 = vmatpush.msra.mxu0 %v917
    %1983 = vmatpush.msra.mxu0 %v909
    %1984 = vmatpush.msra.mxu0 %v901
    %1985 = vmatpush.msra.mxu0 %v893
    %1986 = vmatmul.f32.gmra.mxu0 %v1888
    %v1987 = vpop.f32.mrf.mxu0
    %v1988 = vadd.f32 0.0, %v1987
    %1989 = vdwg.mxu0
    %1990 = vmatpush.msra.mxu0 0.0
    %1991 = vmatpush.msra.mxu0 0.0
    %1992 = vmatpush.msra.mxu0 0.0
    %1993 = vmatpush.msra.mxu0 0.0
    %1994 = vmatpush.msra.mxu0 0.0
    %1995 = vmatpush.msra.mxu0 0.0
    %1996 = vmatpush.msra.mxu0 0.0
    %1997 = vmatpush.msra.mxu0 0.0
    %1998 = vmatpush.msra.mxu0 0.0
    %1999 = vmatpush.msra.mxu0 0.0
    %2000 = vmatpush.msra.mxu0 0.0
    %2001 = vmatpush.msra.mxu0 0.0
    %2002 = vmatpush.msra.mxu0 %v918
    %2003 = vmatpush.msra.mxu0 %v910
    %2004 = vmatpush.msra.mxu0 %v902
    %2005 = vmatpush.msra.mxu0 %v894
    %2006 = vmatmul.f32.gmra.mxu0 %v1888
    %v2007 = vpop.f32.mrf.mxu0
    %v2008 = vadd.f32 0.0, %v2007
    %2009 = vdwg.mxu0
    %2010 = vmatpush.msra.mxu0 0.0
    %2011 = vmatpush.msra.mxu0 0.0
    %2012 = vmatpush.msra.mxu0 0.0
    %2013 = vmatpush.msra.mxu0 0.0
    %2014 = vmatpush.msra.mxu0 0.0
    %2015 = vmatpush.msra.mxu0 0.0
    %2016 = vmatpush.msra.mxu0 0.0
    %2017 = vmatpush.msra.mxu0 0.0
    %2018 = vmatpush.msra.mxu0 0.0
    %2019 = vmatpush.msra.mxu0 0.0
    %2020 = vmatpush.msra.mxu0 0.0
    %2021 = vmatpush.msra.mxu0 0.0
    %2022 = vmatpush.msra.mxu0 %v919
    %2023 = vmatpush.msra.mxu0 %v911
    %2024 = vmatpush.msra.mxu0 %v903
    %2025 = vmatpush.msra.mxu0 %v895
    %2026 = vmatmul.f32.gmra.mxu0 %v1888
    %v2027 = vpop.f32.mrf.mxu0
    %v2028 = vadd.f32 0.0, %v2027
    %2029 = vdwg.mxu0
    %2030 = vmatpush.msra.mxu0 0.0
    %2031 = vmatpush.msra.mxu0 0.0
    %2032 = vmatpush.msra.mxu0 0.0
    %2033 = vmatpush.msra.mxu0 0.0
    %2034 = vmatpush.msra.mxu0 0.0
    %2035 = vmatpush.msra.mxu0 0.0
    %2036 = vmatpush.msra.mxu0 0.0
    %2037 = vmatpush.msra.mxu0 0.0
    %2038 = vmatpush.msra.mxu0 0.0
    %2039 = vmatpush.msra.mxu0 0.0
    %2040 = vmatpush.msra.mxu0 0.0
    %2041 = vmatpush.msra.mxu0 0.0
    %2042 = vmatpush.msra.mxu0 %v920
    %2043 = vmatpush.msra.mxu0 %v912
    %2044 = vmatpush.msra.mxu0 %v904
    %2045 = vmatpush.msra.mxu0 %v896
    %2046 = vmatmul.f32.gmra.mxu0 %v1888
    %v2047 = vpop.f32.mrf.mxu0
    %v2048 = vadd.f32 0.0, %v2047
    %2049 = vdwg.mxu0
    %v2050 = vadd.f32 %v1862, %v1908
    %v2051 = vadd.f32 %v1863, %v1928
    %v2052 = vadd.f32 %v1864, %v1948
    %v2053 = vadd.f32 %v1865, %v1968
    %v2054 = vadd.f32 %v1866, %v1988
    %v2055 = vadd.f32 %v1867, %v2008
    %v2056 = vadd.f32 %v1868, %v2028
    %v2057 = vadd.f32 %v1869, %v2048
    %2059 = vrot.lane.b32.xlu0 %v1342, 96
    %v2060 = vpop.permute.xlu0 %2059
    %v2062 = vmax.f32 %v1342, %v2060
    %2063 = vrot.lane.b32.xlu0 %v1342, 64
    %v2064 = vpop.permute.xlu0 %2063
    %v2066 = vmax.f32 %v2062, %v2064
    %2068 = vrot.lane.b32.xlu0 %v1343, 32
    %v2069 = vpop.permute.xlu0 %2068
    %v2071 = vmax.f32 %v2066, %v2069
    %v2072 = vmax.f32 %v2071, %v1343
    %2074 = vrot.lane.b32.xlu0 %v2072, 96
    %v2075 = vpop.permute.xlu0 %2074
    %v2076 = vsel %vm1358, %v2075, 0
    %2078 = vmatpush.msra.mxu0 0.0
    %2079 = vmatpush.msra.mxu0 0.0
    %2080 = vmatpush.msra.mxu0 0.0
    %2081 = vmatpush.msra.mxu0 0.0
    %2082 = vmatpush.msra.mxu0 0.0
    %2083 = vmatpush.msra.mxu0 0.0
    %2084 = vmatpush.msra.mxu0 0.0
    %2085 = vmatpush.msra.mxu0 0.0
    %2086 = vmatpush.msra.mxu0 0.0
    %2087 = vmatpush.msra.mxu0 0.0
    %2088 = vmatpush.msra.mxu0 0.0
    %2089 = vmatpush.msra.mxu0 0.0
    %2090 = vmatpush.msra.mxu0 %v945
    %2091 = vmatpush.msra.mxu0 %v937
    %2092 = vmatpush.msra.mxu0 %v929
    %2093 = vmatpush.msra.mxu0 %v921
    %2094 = vmatmul.f32.gmra.mxu0 %v2076
    %v2095 = vpop.f32.mrf.mxu0
    %v2096 = vadd.f32 0.0, %v2095
    %2097 = vdwg.mxu0
    %2098 = vmatpush.msra.mxu0 0.0
    %2099 = vmatpush.msra.mxu0 0.0
    %2100 = vmatpush.msra.mxu0 0.0
    %2101 = vmatpush.msra.mxu0 0.0
    %2102 = vmatpush.msra.mxu0 0.0
    %2103 = vmatpush.msra.mxu0 0.0
    %2104 = vmatpush.msra.mxu0 0.0
    %2105 = vmatpush.msra.mxu0 0.0
    %2106 = vmatpush.msra.mxu0 0.0
    %2107 = vmatpush.msra.mxu0 0.0
    %2108 = vmatpush.msra.mxu0 0.0
    %2109 = vmatpush.msra.mxu0 0.0
    %2110 = vmatpush.msra.mxu0 %v946
    %2111 = vmatpush.msra.mxu0 %v938
    %2112 = vmatpush.msra.mxu0 %v930
    %2113 = vmatpush.msra.mxu0 %v922
    %2114 = vmatmul.f32.gmra.mxu0 %v2076
    %v2115 = vpop.f32.mrf.mxu0
    %v2116 = vadd.f32 0.0, %v2115
    %2117 = vdwg.mxu0
    %2118 = vmatpush.msra.mxu0 0.0
    %2119 = vmatpush.msra.mxu0 0.0
    %2120 = vmatpush.msra.mxu0 0.0
    %2121 = vmatpush.msra.mxu0 0.0
    %2122 = vmatpush.msra.mxu0 0.0
    %2123 = vmatpush.msra.mxu0 0.0
    %2124 = vmatpush.msra.mxu0 0.0
    %2125 = vmatpush.msra.mxu0 0.0
    %2126 = vmatpush.msra.mxu0 0.0
    %2127 = vmatpush.msra.mxu0 0.0
    %2128 = vmatpush.msra.mxu0 0.0
    %2129 = vmatpush.msra.mxu0 0.0
    %2130 = vmatpush.msra.mxu0 %v947
    %2131 = vmatpush.msra.mxu0 %v939
    %2132 = vmatpush.msra.mxu0 %v931
    %2133 = vmatpush.msra.mxu0 %v923
    %2134 = vmatmul.f32.gmra.mxu0 %v2076
    %v2135 = vpop.f32.mrf.mxu0
    %v2136 = vadd.f32 0.0, %v2135
    %2137 = vdwg.mxu0
    %2138 = vmatpush.msra.mxu0 0.0
    %2139 = vmatpush.msra.mxu0 0.0
    %2140 = vmatpush.msra.mxu0 0.0
    %2141 = vmatpush.msra.mxu0 0.0
    %2142 = vmatpush.msra.mxu0 0.0
    %2143 = vmatpush.msra.mxu0 0.0
    %2144 = vmatpush.msra.mxu0 0.0
    %2145 = vmatpush.msra.mxu0 0.0
    %2146 = vmatpush.msra.mxu0 0.0
    %2147 = vmatpush.msra.mxu0 0.0
    %2148 = vmatpush.msra.mxu0 0.0
    %2149 = vmatpush.msra.mxu0 0.0
    %2150 = vmatpush.msra.mxu0 %v948
    %2151 = vmatpush.msra.mxu0 %v940
    %2152 = vmatpush.msra.mxu0 %v932
    %2153 = vmatpush.msra.mxu0 %v924
    %2154 = vmatmul.f32.gmra.mxu0 %v2076
    %v2155 = vpop.f32.mrf.mxu0
    %v2156 = vadd.f32 0.0, %v2155
    %2157 = vdwg.mxu0
    %2158 = vmatpush.msra.mxu0 0.0
    %2159 = vmatpush.msra.mxu0 0.0
    %2160 = vmatpush.msra.mxu0 0.0
    %2161 = vmatpush.msra.mxu0 0.0
    %2162 = vmatpush.msra.mxu0 0.0
    %2163 = vmatpush.msra.mxu0 0.0
    %2164 = vmatpush.msra.mxu0 0.0
    %2165 = vmatpush.msra.mxu0 0.0
    %2166 = vmatpush.msra.mxu0 0.0
    %2167 = vmatpush.msra.mxu0 0.0
    %2168 = vmatpush.msra.mxu0 0.0
    %2169 = vmatpush.msra.mxu0 0.0
    %2170 = vmatpush.msra.mxu0 %v949
    %2171 = vmatpush.msra.mxu0 %v941
    %2172 = vmatpush.msra.mxu0 %v933
    %2173 = vmatpush.msra.mxu0 %v925
    %2174 = vmatmul.f32.gmra.mxu0 %v2076
    %v2175 = vpop.f32.mrf.mxu0
    %v2176 = vadd.f32 0.0, %v2175
    %2177 = vdwg.mxu0
    %2178 = vmatpush.msra.mxu0 0.0
    %2179 = vmatpush.msra.mxu0 0.0
    %2180 = vmatpush.msra.mxu0 0.0
    %2181 = vmatpush.msra.mxu0 0.0
    %2182 = vmatpush.msra.mxu0 0.0
    %2183 = vmatpush.msra.mxu0 0.0
    %2184 = vmatpush.msra.mxu0 0.0
    %2185 = vmatpush.msra.mxu0 0.0
    %2186 = vmatpush.msra.mxu0 0.0
    %2187 = vmatpush.msra.mxu0 0.0
    %2188 = vmatpush.msra.mxu0 0.0
    %2189 = vmatpush.msra.mxu0 0.0
    %2190 = vmatpush.msra.mxu0 %v950
    %2191 = vmatpush.msra.mxu0 %v942
    %2192 = vmatpush.msra.mxu0 %v934
    %2193 = vmatpush.msra.mxu0 %v926
    %2194 = vmatmul.f32.gmra.mxu0 %v2076
    %v2195 = vpop.f32.mrf.mxu0
    %v2196 = vadd.f32 0.0, %v2195
    %2197 = vdwg.mxu0
    %2198 = vmatpush.msra.mxu0 0.0
    %2199 = vmatpush.msra.mxu0 0.0
    %2200 = vmatpush.msra.mxu0 0.0
    %2201 = vmatpush.msra.mxu0 0.0
    %2202 = vmatpush.msra.mxu0 0.0
    %2203 = vmatpush.msra.mxu0 0.0
    %2204 = vmatpush.msra.mxu0 0.0
    %2205 = vmatpush.msra.mxu0 0.0
    %2206 = vmatpush.msra.mxu0 0.0
    %2207 = vmatpush.msra.mxu0 0.0
    %2208 = vmatpush.msra.mxu0 0.0
    %2209 = vmatpush.msra.mxu0 0.0
    %2210 = vmatpush.msra.mxu0 %v951
    %2211 = vmatpush.msra.mxu0 %v943
    %2212 = vmatpush.msra.mxu0 %v935
    %2213 = vmatpush.msra.mxu0 %v927
    %2214 = vmatmul.f32.gmra.mxu0 %v2076
    %v2215 = vpop.f32.mrf.mxu0
    %v2216 = vadd.f32 0.0, %v2215
    %2217 = vdwg.mxu0
    %2218 = vmatpush.msra.mxu0 0.0
    %2219 = vmatpush.msra.mxu0 0.0
    %2220 = vmatpush.msra.mxu0 0.0
    %2221 = vmatpush.msra.mxu0 0.0
    %2222 = vmatpush.msra.mxu0 0.0
    %2223 = vmatpush.msra.mxu0 0.0
    %2224 = vmatpush.msra.mxu0 0.0
    %2225 = vmatpush.msra.mxu0 0.0
    %2226 = vmatpush.msra.mxu0 0.0
    %2227 = vmatpush.msra.mxu0 0.0
    %2228 = vmatpush.msra.mxu0 0.0
    %2229 = vmatpush.msra.mxu0 0.0
    %2230 = vmatpush.msra.mxu0 %v952
    %2231 = vmatpush.msra.mxu0 %v944
    %2232 = vmatpush.msra.mxu0 %v936
    %2233 = vmatpush.msra.mxu0 %v928
    %2234 = vmatmul.f32.gmra.mxu0 %v2076
    %v2235 = vpop.f32.mrf.mxu0
    %v2236 = vadd.f32 0.0, %v2235
    %2237 = vdwg.mxu0
    %v2238 = vadd.f32 %v2050, %v2096
    %v2239 = vadd.f32 %v2051, %v2116
    %v2240 = vadd.f32 %v2052, %v2136
    %v2241 = vadd.f32 %v2053, %v2156
    %v2242 = vadd.f32 %v2054, %v2176
    %v2243 = vadd.f32 %v2055, %v2196
    %v2244 = vadd.f32 %v2056, %v2216
    %v2245 = vadd.f32 %v2057, %v2236
    %v2246 = vsel %vm1280, %v447, %v1262
    %v2247 = vsel %vm1280, %v507, %v1263
    %v2248 = vsel %vm1280, %v567, %v1264
    %v2249 = vrot.slane %v1250, 1
    %v2250 = vrot.slane %v1251, 1
    %v2251 = vrot.slane %v1252, 1
    %v2255 = vrot.slane %v1250, 4
    %v2256 = vrot.slane %v1251, 4
    %v2257 = vrot.slane %v1252, 4
    %v2261 = vsel %vm1280, %v2249, %v2255
    %v2262 = vsel %vm1280, %v2250, %v2256
    %v2263 = vsel %vm1280, %v2251, %v2257
    %v2264 = vrot.slane %v447, 6
    %v2265 = vrot.slane %v507, 6
    %v2266 = vrot.slane %v567, 6
    %v2270 = vsel %vm1280, %v1262, %v2264
    %v2271 = vsel %vm1280, %v1263, %v2265
    %v2272 = vsel %vm1280, %v1264, %v2266
    %2274 = vrot.lane.b32.xlu0 %v2246, 96
    %v2275 = vpop.permute.xlu0 %2274
    %v2277 = vmax.f32 %v2246, %v2275
    %2278 = vrot.lane.b32.xlu0 %v2246, 64
    %v2279 = vpop.permute.xlu0 %2278
    %v2281 = vmax.f32 %v2277, %v2279
    %v2283 = vsel %vm1358, %v2281, 0
    %2285 = vmatpush.msra.mxu0 0.0
    %2286 = vmatpush.msra.mxu0 0.0
    %2287 = vmatpush.msra.mxu0 0.0
    %2288 = vmatpush.msra.mxu0 0.0
    %2289 = vmatpush.msra.mxu0 0.0
    %2290 = vmatpush.msra.mxu0 0.0
    %2291 = vmatpush.msra.mxu0 0.0
    %2292 = vmatpush.msra.mxu0 0.0
    %2293 = vmatpush.msra.mxu0 0.0
    %2294 = vmatpush.msra.mxu0 0.0
    %2295 = vmatpush.msra.mxu0 0.0
    %2296 = vmatpush.msra.mxu0 0.0
    %2297 = vmatpush.msra.mxu0 %v977
    %2298 = vmatpush.msra.mxu0 %v969
    %2299 = vmatpush.msra.mxu0 %v961
    %2300 = vmatpush.msra.mxu0 %v953
    %2301 = vmatmul.f32.gmra.mxu0 %v2283
    %v2302 = vpop.f32.mrf.mxu0
    %v2303 = vadd.f32 0.0, %v2302
    %2304 = vdwg.mxu0
    %2305 = vmatpush.msra.mxu0 0.0
    %2306 = vmatpush.msra.mxu0 0.0
    %2307 = vmatpush.msra.mxu0 0.0
    %2308 = vmatpush.msra.mxu0 0.0
    %2309 = vmatpush.msra.mxu0 0.0
    %2310 = vmatpush.msra.mxu0 0.0
    %2311 = vmatpush.msra.mxu0 0.0
    %2312 = vmatpush.msra.mxu0 0.0
    %2313 = vmatpush.msra.mxu0 0.0
    %2314 = vmatpush.msra.mxu0 0.0
    %2315 = vmatpush.msra.mxu0 0.0
    %2316 = vmatpush.msra.mxu0 0.0
    %2317 = vmatpush.msra.mxu0 %v978
    %2318 = vmatpush.msra.mxu0 %v970
    %2319 = vmatpush.msra.mxu0 %v962
    %2320 = vmatpush.msra.mxu0 %v954
    %2321 = vmatmul.f32.gmra.mxu0 %v2283
    %v2322 = vpop.f32.mrf.mxu0
    %v2323 = vadd.f32 0.0, %v2322
    %2324 = vdwg.mxu0
    %2325 = vmatpush.msra.mxu0 0.0
    %2326 = vmatpush.msra.mxu0 0.0
    %2327 = vmatpush.msra.mxu0 0.0
    %2328 = vmatpush.msra.mxu0 0.0
    %2329 = vmatpush.msra.mxu0 0.0
    %2330 = vmatpush.msra.mxu0 0.0
    %2331 = vmatpush.msra.mxu0 0.0
    %2332 = vmatpush.msra.mxu0 0.0
    %2333 = vmatpush.msra.mxu0 0.0
    %2334 = vmatpush.msra.mxu0 0.0
    %2335 = vmatpush.msra.mxu0 0.0
    %2336 = vmatpush.msra.mxu0 0.0
    %2337 = vmatpush.msra.mxu0 %v979
    %2338 = vmatpush.msra.mxu0 %v971
    %2339 = vmatpush.msra.mxu0 %v963
    %2340 = vmatpush.msra.mxu0 %v955
    %2341 = vmatmul.f32.gmra.mxu0 %v2283
    %v2342 = vpop.f32.mrf.mxu0
    %v2343 = vadd.f32 0.0, %v2342
    %2344 = vdwg.mxu0
    %2345 = vmatpush.msra.mxu0 0.0
    %2346 = vmatpush.msra.mxu0 0.0
    %2347 = vmatpush.msra.mxu0 0.0
    %2348 = vmatpush.msra.mxu0 0.0
    %2349 = vmatpush.msra.mxu0 0.0
    %2350 = vmatpush.msra.mxu0 0.0
    %2351 = vmatpush.msra.mxu0 0.0
    %2352 = vmatpush.msra.mxu0 0.0
    %2353 = vmatpush.msra.mxu0 0.0
    %2354 = vmatpush.msra.mxu0 0.0
    %2355 = vmatpush.msra.mxu0 0.0
    %2356 = vmatpush.msra.mxu0 0.0
    %2357 = vmatpush.msra.mxu0 %v980
    %2358 = vmatpush.msra.mxu0 %v972
    %2359 = vmatpush.msra.mxu0 %v964
    %2360 = vmatpush.msra.mxu0 %v956
    %2361 = vmatmul.f32.gmra.mxu0 %v2283
    %v2362 = vpop.f32.mrf.mxu0
    %v2363 = vadd.f32 0.0, %v2362
    %2364 = vdwg.mxu0
    %2365 = vmatpush.msra.mxu0 0.0
    %2366 = vmatpush.msra.mxu0 0.0
    %2367 = vmatpush.msra.mxu0 0.0
    %2368 = vmatpush.msra.mxu0 0.0
    %2369 = vmatpush.msra.mxu0 0.0
    %2370 = vmatpush.msra.mxu0 0.0
    %2371 = vmatpush.msra.mxu0 0.0
    %2372 = vmatpush.msra.mxu0 0.0
    %2373 = vmatpush.msra.mxu0 0.0
    %2374 = vmatpush.msra.mxu0 0.0
    %2375 = vmatpush.msra.mxu0 0.0
    %2376 = vmatpush.msra.mxu0 0.0
    %2377 = vmatpush.msra.mxu0 %v981
    %2378 = vmatpush.msra.mxu0 %v973
    %2379 = vmatpush.msra.mxu0 %v965
    %2380 = vmatpush.msra.mxu0 %v957
    %2381 = vmatmul.f32.gmra.mxu0 %v2283
    %v2382 = vpop.f32.mrf.mxu0
    %v2383 = vadd.f32 0.0, %v2382
    %2384 = vdwg.mxu0
    %2385 = vmatpush.msra.mxu0 0.0
    %2386 = vmatpush.msra.mxu0 0.0
    %2387 = vmatpush.msra.mxu0 0.0
    %2388 = vmatpush.msra.mxu0 0.0
    %2389 = vmatpush.msra.mxu0 0.0
    %2390 = vmatpush.msra.mxu0 0.0
    %2391 = vmatpush.msra.mxu0 0.0
    %2392 = vmatpush.msra.mxu0 0.0
    %2393 = vmatpush.msra.mxu0 0.0
    %2394 = vmatpush.msra.mxu0 0.0
    %2395 = vmatpush.msra.mxu0 0.0
    %2396 = vmatpush.msra.mxu0 0.0
    %2397 = vmatpush.msra.mxu0 %v982
    %2398 = vmatpush.msra.mxu0 %v974
    %2399 = vmatpush.msra.mxu0 %v966
    %2400 = vmatpush.msra.mxu0 %v958
    %2401 = vmatmul.f32.gmra.mxu0 %v2283
    %v2402 = vpop.f32.mrf.mxu0
    %v2403 = vadd.f32 0.0, %v2402
    %2404 = vdwg.mxu0
    %2405 = vmatpush.msra.mxu0 0.0
    %2406 = vmatpush.msra.mxu0 0.0
    %2407 = vmatpush.msra.mxu0 0.0
    %2408 = vmatpush.msra.mxu0 0.0
    %2409 = vmatpush.msra.mxu0 0.0
    %2410 = vmatpush.msra.mxu0 0.0
    %2411 = vmatpush.msra.mxu0 0.0
    %2412 = vmatpush.msra.mxu0 0.0
    %2413 = vmatpush.msra.mxu0 0.0
    %2414 = vmatpush.msra.mxu0 0.0
    %2415 = vmatpush.msra.mxu0 0.0
    %2416 = vmatpush.msra.mxu0 0.0
    %2417 = vmatpush.msra.mxu0 %v983
    %2418 = vmatpush.msra.mxu0 %v975
    %2419 = vmatpush.msra.mxu0 %v967
    %2420 = vmatpush.msra.mxu0 %v959
    %2421 = vmatmul.f32.gmra.mxu0 %v2283
    %v2422 = vpop.f32.mrf.mxu0
    %v2423 = vadd.f32 0.0, %v2422
    %2424 = vdwg.mxu0
    %2425 = vmatpush.msra.mxu0 0.0
    %2426 = vmatpush.msra.mxu0 0.0
    %2427 = vmatpush.msra.mxu0 0.0
    %2428 = vmatpush.msra.mxu0 0.0
    %2429 = vmatpush.msra.mxu0 0.0
    %2430 = vmatpush.msra.mxu0 0.0
    %2431 = vmatpush.msra.mxu0 0.0
    %2432 = vmatpush.msra.mxu0 0.0
    %2433 = vmatpush.msra.mxu0 0.0
    %2434 = vmatpush.msra.mxu0 0.0
    %2435 = vmatpush.msra.mxu0 0.0
    %2436 = vmatpush.msra.mxu0 0.0
    %2437 = vmatpush.msra.mxu0 %v984
    %2438 = vmatpush.msra.mxu0 %v976
    %2439 = vmatpush.msra.mxu0 %v968
    %2440 = vmatpush.msra.mxu0 %v960
    %2441 = vmatmul.f32.gmra.mxu0 %v2283
    %v2442 = vpop.f32.mrf.mxu0
    %v2443 = vadd.f32 0.0, %v2442
    %2444 = vdwg.mxu0
    %v2445 = vadd.f32 %v2238, %v2303
    %v2446 = vadd.f32 %v2239, %v2323
    %v2447 = vadd.f32 %v2240, %v2343
    %v2448 = vadd.f32 %v2241, %v2363
    %v2449 = vadd.f32 %v2242, %v2383
    %v2450 = vadd.f32 %v2243, %v2403
    %v2451 = vadd.f32 %v2244, %v2423
    %v2452 = vadd.f32 %v2245, %v2443
    %2454 = vrot.lane.b32.xlu0 %v2261, 96
    %v2455 = vpop.permute.xlu0 %2454
    %v2457 = vmax.f32 %v2261, %v2455
    %2458 = vrot.lane.b32.xlu0 %v2261, 64
    %v2459 = vpop.permute.xlu0 %2458
    %v2461 = vmax.f32 %v2457, %v2459
    %v2463 = vsel %vm1358, %v2461, 0
    %2465 = vmatpush.msra.mxu0 0.0
    %2466 = vmatpush.msra.mxu0 0.0
    %2467 = vmatpush.msra.mxu0 0.0
    %2468 = vmatpush.msra.mxu0 0.0
    %2469 = vmatpush.msra.mxu0 0.0
    %2470 = vmatpush.msra.mxu0 0.0
    %2471 = vmatpush.msra.mxu0 0.0
    %2472 = vmatpush.msra.mxu0 0.0
    %2473 = vmatpush.msra.mxu0 0.0
    %2474 = vmatpush.msra.mxu0 0.0
    %2475 = vmatpush.msra.mxu0 0.0
    %2476 = vmatpush.msra.mxu0 0.0
    %2477 = vmatpush.msra.mxu0 %v1009
    %2478 = vmatpush.msra.mxu0 %v1001
    %2479 = vmatpush.msra.mxu0 %v993
    %2480 = vmatpush.msra.mxu0 %v985
    %2481 = vmatmul.f32.gmra.mxu0 %v2463
    %v2482 = vpop.f32.mrf.mxu0
    %v2483 = vadd.f32 0.0, %v2482
    %2484 = vdwg.mxu0
    %2485 = vmatpush.msra.mxu0 0.0
    %2486 = vmatpush.msra.mxu0 0.0
    %2487 = vmatpush.msra.mxu0 0.0
    %2488 = vmatpush.msra.mxu0 0.0
    %2489 = vmatpush.msra.mxu0 0.0
    %2490 = vmatpush.msra.mxu0 0.0
    %2491 = vmatpush.msra.mxu0 0.0
    %2492 = vmatpush.msra.mxu0 0.0
    %2493 = vmatpush.msra.mxu0 0.0
    %2494 = vmatpush.msra.mxu0 0.0
    %2495 = vmatpush.msra.mxu0 0.0
    %2496 = vmatpush.msra.mxu0 0.0
    %2497 = vmatpush.msra.mxu0 %v1010
    %2498 = vmatpush.msra.mxu0 %v1002
    %2499 = vmatpush.msra.mxu0 %v994
    %2500 = vmatpush.msra.mxu0 %v986
    %2501 = vmatmul.f32.gmra.mxu0 %v2463
    %v2502 = vpop.f32.mrf.mxu0
    %v2503 = vadd.f32 0.0, %v2502
    %2504 = vdwg.mxu0
    %2505 = vmatpush.msra.mxu0 0.0
    %2506 = vmatpush.msra.mxu0 0.0
    %2507 = vmatpush.msra.mxu0 0.0
    %2508 = vmatpush.msra.mxu0 0.0
    %2509 = vmatpush.msra.mxu0 0.0
    %2510 = vmatpush.msra.mxu0 0.0
    %2511 = vmatpush.msra.mxu0 0.0
    %2512 = vmatpush.msra.mxu0 0.0
    %2513 = vmatpush.msra.mxu0 0.0
    %2514 = vmatpush.msra.mxu0 0.0
    %2515 = vmatpush.msra.mxu0 0.0
    %2516 = vmatpush.msra.mxu0 0.0
    %2517 = vmatpush.msra.mxu0 %v1011
    %2518 = vmatpush.msra.mxu0 %v1003
    %2519 = vmatpush.msra.mxu0 %v995
    %2520 = vmatpush.msra.mxu0 %v987
    %2521 = vmatmul.f32.gmra.mxu0 %v2463
    %v2522 = vpop.f32.mrf.mxu0
    %v2523 = vadd.f32 0.0, %v2522
    %2524 = vdwg.mxu0
    %2525 = vmatpush.msra.mxu0 0.0
    %2526 = vmatpush.msra.mxu0 0.0
    %2527 = vmatpush.msra.mxu0 0.0
    %2528 = vmatpush.msra.mxu0 0.0
    %2529 = vmatpush.msra.mxu0 0.0
    %2530 = vmatpush.msra.mxu0 0.0
    %2531 = vmatpush.msra.mxu0 0.0
    %2532 = vmatpush.msra.mxu0 0.0
    %2533 = vmatpush.msra.mxu0 0.0
    %2534 = vmatpush.msra.mxu0 0.0
    %2535 = vmatpush.msra.mxu0 0.0
    %2536 = vmatpush.msra.mxu0 0.0
    %2537 = vmatpush.msra.mxu0 %v1012
    %2538 = vmatpush.msra.mxu0 %v1004
    %2539 = vmatpush.msra.mxu0 %v996
    %2540 = vmatpush.msra.mxu0 %v988
    %2541 = vmatmul.f32.gmra.mxu0 %v2463
    %v2542 = vpop.f32.mrf.mxu0
    %v2543 = vadd.f32 0.0, %v2542
    %2544 = vdwg.mxu0
    %2545 = vmatpush.msra.mxu0 0.0
    %2546 = vmatpush.msra.mxu0 0.0
    %2547 = vmatpush.msra.mxu0 0.0
    %2548 = vmatpush.msra.mxu0 0.0
    %2549 = vmatpush.msra.mxu0 0.0
    %2550 = vmatpush.msra.mxu0 0.0
    %2551 = vmatpush.msra.mxu0 0.0
    %2552 = vmatpush.msra.mxu0 0.0
    %2553 = vmatpush.msra.mxu0 0.0
    %2554 = vmatpush.msra.mxu0 0.0
    %2555 = vmatpush.msra.mxu0 0.0
    %2556 = vmatpush.msra.mxu0 0.0
    %2557 = vmatpush.msra.mxu0 %v1013
    %2558 = vmatpush.msra.mxu0 %v1005
    %2559 = vmatpush.msra.mxu0 %v997
    %2560 = vmatpush.msra.mxu0 %v989
    %2561 = vmatmul.f32.gmra.mxu0 %v2463
    %v2562 = vpop.f32.mrf.mxu0
    %v2563 = vadd.f32 0.0, %v2562
    %2564 = vdwg.mxu0
    %2565 = vmatpush.msra.mxu0 0.0
    %2566 = vmatpush.msra.mxu0 0.0
    %2567 = vmatpush.msra.mxu0 0.0
    %2568 = vmatpush.msra.mxu0 0.0
    %2569 = vmatpush.msra.mxu0 0.0
    %2570 = vmatpush.msra.mxu0 0.0
    %2571 = vmatpush.msra.mxu0 0.0
    %2572 = vmatpush.msra.mxu0 0.0
    %2573 = vmatpush.msra.mxu0 0.0
    %2574 = vmatpush.msra.mxu0 0.0
    %2575 = vmatpush.msra.mxu0 0.0
    %2576 = vmatpush.msra.mxu0 0.0
    %2577 = vmatpush.msra.mxu0 %v1014
    %2578 = vmatpush.msra.mxu0 %v1006
    %2579 = vmatpush.msra.mxu0 %v998
    %2580 = vmatpush.msra.mxu0 %v990
    %2581 = vmatmul.f32.gmra.mxu0 %v2463
    %v2582 = vpop.f32.mrf.mxu0
    %v2583 = vadd.f32 0.0, %v2582
    %2584 = vdwg.mxu0
    %2585 = vmatpush.msra.mxu0 0.0
    %2586 = vmatpush.msra.mxu0 0.0
    %2587 = vmatpush.msra.mxu0 0.0
    %2588 = vmatpush.msra.mxu0 0.0
    %2589 = vmatpush.msra.mxu0 0.0
    %2590 = vmatpush.msra.mxu0 0.0
    %2591 = vmatpush.msra.mxu0 0.0
    %2592 = vmatpush.msra.mxu0 0.0
    %2593 = vmatpush.msra.mxu0 0.0
    %2594 = vmatpush.msra.mxu0 0.0
    %2595 = vmatpush.msra.mxu0 0.0
    %2596 = vmatpush.msra.mxu0 0.0
    %2597 = vmatpush.msra.mxu0 %v1015
    %2598 = vmatpush.msra.mxu0 %v1007
    %2599 = vmatpush.msra.mxu0 %v999
    %2600 = vmatpush.msra.mxu0 %v991
    %2601 = vmatmul.f32.gmra.mxu0 %v2463
    %v2602 = vpop.f32.mrf.mxu0
    %v2603 = vadd.f32 0.0, %v2602
    %2604 = vdwg.mxu0
    %2605 = vmatpush.msra.mxu0 0.0
    %2606 = vmatpush.msra.mxu0 0.0
    %2607 = vmatpush.msra.mxu0 0.0
    %2608 = vmatpush.msra.mxu0 0.0
    %2609 = vmatpush.msra.mxu0 0.0
    %2610 = vmatpush.msra.mxu0 0.0
    %2611 = vmatpush.msra.mxu0 0.0
    %2612 = vmatpush.msra.mxu0 0.0
    %2613 = vmatpush.msra.mxu0 0.0
    %2614 = vmatpush.msra.mxu0 0.0
    %2615 = vmatpush.msra.mxu0 0.0
    %2616 = vmatpush.msra.mxu0 0.0
    %2617 = vmatpush.msra.mxu0 %v1016
    %2618 = vmatpush.msra.mxu0 %v1008
    %2619 = vmatpush.msra.mxu0 %v1000
    %2620 = vmatpush.msra.mxu0 %v992
    %2621 = vmatmul.f32.gmra.mxu0 %v2463
    %v2622 = vpop.f32.mrf.mxu0
    %v2623 = vadd.f32 0.0, %v2622
    %2624 = vdwg.mxu0
    %v2625 = vadd.f32 %v2445, %v2483
    %v2626 = vadd.f32 %v2446, %v2503
    %v2627 = vadd.f32 %v2447, %v2523
    %v2628 = vadd.f32 %v2448, %v2543
    %v2629 = vadd.f32 %v2449, %v2563
    %v2630 = vadd.f32 %v2450, %v2583
    %v2631 = vadd.f32 %v2451, %v2603
    %v2632 = vadd.f32 %v2452, %v2623
    %2634 = vrot.lane.b32.xlu0 %v2270, 96
    %v2635 = vpop.permute.xlu0 %2634
    %v2637 = vmax.f32 %v2270, %v2635
    %2638 = vrot.lane.b32.xlu0 %v2270, 64
    %v2639 = vpop.permute.xlu0 %2638
    %v2641 = vmax.f32 %v2637, %v2639
    %v2643 = vsel %vm1358, %v2641, 0
    %2645 = vmatpush.msra.mxu0 0.0
    %2646 = vmatpush.msra.mxu0 0.0
    %2647 = vmatpush.msra.mxu0 0.0
    %2648 = vmatpush.msra.mxu0 0.0
    %2649 = vmatpush.msra.mxu0 0.0
    %2650 = vmatpush.msra.mxu0 0.0
    %2651 = vmatpush.msra.mxu0 0.0
    %2652 = vmatpush.msra.mxu0 0.0
    %2653 = vmatpush.msra.mxu0 0.0
    %2654 = vmatpush.msra.mxu0 0.0
    %2655 = vmatpush.msra.mxu0 0.0
    %2656 = vmatpush.msra.mxu0 0.0
    %2657 = vmatpush.msra.mxu0 %v1041
    %2658 = vmatpush.msra.mxu0 %v1033
    %2659 = vmatpush.msra.mxu0 %v1025
    %2660 = vmatpush.msra.mxu0 %v1017
    %2661 = vmatmul.f32.gmra.mxu0 %v2643
    %v2662 = vpop.f32.mrf.mxu0
    %v2663 = vadd.f32 0.0, %v2662
    %2664 = vdwg.mxu0
    %2665 = vmatpush.msra.mxu0 0.0
    %2666 = vmatpush.msra.mxu0 0.0
    %2667 = vmatpush.msra.mxu0 0.0
    %2668 = vmatpush.msra.mxu0 0.0
    %2669 = vmatpush.msra.mxu0 0.0
    %2670 = vmatpush.msra.mxu0 0.0
    %2671 = vmatpush.msra.mxu0 0.0
    %2672 = vmatpush.msra.mxu0 0.0
    %2673 = vmatpush.msra.mxu0 0.0
    %2674 = vmatpush.msra.mxu0 0.0
    %2675 = vmatpush.msra.mxu0 0.0
    %2676 = vmatpush.msra.mxu0 0.0
    %2677 = vmatpush.msra.mxu0 %v1042
    %2678 = vmatpush.msra.mxu0 %v1034
    %2679 = vmatpush.msra.mxu0 %v1026
    %2680 = vmatpush.msra.mxu0 %v1018
    %2681 = vmatmul.f32.gmra.mxu0 %v2643
    %v2682 = vpop.f32.mrf.mxu0
    %v2683 = vadd.f32 0.0, %v2682
    %2684 = vdwg.mxu0
    %2685 = vmatpush.msra.mxu0 0.0
    %2686 = vmatpush.msra.mxu0 0.0
    %2687 = vmatpush.msra.mxu0 0.0
    %2688 = vmatpush.msra.mxu0 0.0
    %2689 = vmatpush.msra.mxu0 0.0
    %2690 = vmatpush.msra.mxu0 0.0
    %2691 = vmatpush.msra.mxu0 0.0
    %2692 = vmatpush.msra.mxu0 0.0
    %2693 = vmatpush.msra.mxu0 0.0
    %2694 = vmatpush.msra.mxu0 0.0
    %2695 = vmatpush.msra.mxu0 0.0
    %2696 = vmatpush.msra.mxu0 0.0
    %2697 = vmatpush.msra.mxu0 %v1043
    %2698 = vmatpush.msra.mxu0 %v1035
    %2699 = vmatpush.msra.mxu0 %v1027
    %2700 = vmatpush.msra.mxu0 %v1019
    %2701 = vmatmul.f32.gmra.mxu0 %v2643
    %v2702 = vpop.f32.mrf.mxu0
    %v2703 = vadd.f32 0.0, %v2702
    %2704 = vdwg.mxu0
    %2705 = vmatpush.msra.mxu0 0.0
    %2706 = vmatpush.msra.mxu0 0.0
    %2707 = vmatpush.msra.mxu0 0.0
    %2708 = vmatpush.msra.mxu0 0.0
    %2709 = vmatpush.msra.mxu0 0.0
    %2710 = vmatpush.msra.mxu0 0.0
    %2711 = vmatpush.msra.mxu0 0.0
    %2712 = vmatpush.msra.mxu0 0.0
    %2713 = vmatpush.msra.mxu0 0.0
    %2714 = vmatpush.msra.mxu0 0.0
    %2715 = vmatpush.msra.mxu0 0.0
    %2716 = vmatpush.msra.mxu0 0.0
    %2717 = vmatpush.msra.mxu0 %v1044
    %2718 = vmatpush.msra.mxu0 %v1036
    %2719 = vmatpush.msra.mxu0 %v1028
    %2720 = vmatpush.msra.mxu0 %v1020
    %2721 = vmatmul.f32.gmra.mxu0 %v2643
    %v2722 = vpop.f32.mrf.mxu0
    %v2723 = vadd.f32 0.0, %v2722
    %2724 = vdwg.mxu0
    %2725 = vmatpush.msra.mxu0 0.0
    %2726 = vmatpush.msra.mxu0 0.0
    %2727 = vmatpush.msra.mxu0 0.0
    %2728 = vmatpush.msra.mxu0 0.0
    %2729 = vmatpush.msra.mxu0 0.0
    %2730 = vmatpush.msra.mxu0 0.0
    %2731 = vmatpush.msra.mxu0 0.0
    %2732 = vmatpush.msra.mxu0 0.0
    %2733 = vmatpush.msra.mxu0 0.0
    %2734 = vmatpush.msra.mxu0 0.0
    %2735 = vmatpush.msra.mxu0 0.0
    %2736 = vmatpush.msra.mxu0 0.0
    %2737 = vmatpush.msra.mxu0 %v1045
    %2738 = vmatpush.msra.mxu0 %v1037
    %2739 = vmatpush.msra.mxu0 %v1029
    %2740 = vmatpush.msra.mxu0 %v1021
    %2741 = vmatmul.f32.gmra.mxu0 %v2643
    %v2742 = vpop.f32.mrf.mxu0
    %v2743 = vadd.f32 0.0, %v2742
    %2744 = vdwg.mxu0
    %2745 = vmatpush.msra.mxu0 0.0
    %2746 = vmatpush.msra.mxu0 0.0
    %2747 = vmatpush.msra.mxu0 0.0
    %2748 = vmatpush.msra.mxu0 0.0
    %2749 = vmatpush.msra.mxu0 0.0
    %2750 = vmatpush.msra.mxu0 0.0
    %2751 = vmatpush.msra.mxu0 0.0
    %2752 = vmatpush.msra.mxu0 0.0
    %2753 = vmatpush.msra.mxu0 0.0
    %2754 = vmatpush.msra.mxu0 0.0
    %2755 = vmatpush.msra.mxu0 0.0
    %2756 = vmatpush.msra.mxu0 0.0
    %2757 = vmatpush.msra.mxu0 %v1046
    %2758 = vmatpush.msra.mxu0 %v1038
    %2759 = vmatpush.msra.mxu0 %v1030
    %2760 = vmatpush.msra.mxu0 %v1022
    %2761 = vmatmul.f32.gmra.mxu0 %v2643
    %v2762 = vpop.f32.mrf.mxu0
    %v2763 = vadd.f32 0.0, %v2762
    %2764 = vdwg.mxu0
    %2765 = vmatpush.msra.mxu0 0.0
    %2766 = vmatpush.msra.mxu0 0.0
    %2767 = vmatpush.msra.mxu0 0.0
    %2768 = vmatpush.msra.mxu0 0.0
    %2769 = vmatpush.msra.mxu0 0.0
    %2770 = vmatpush.msra.mxu0 0.0
    %2771 = vmatpush.msra.mxu0 0.0
    %2772 = vmatpush.msra.mxu0 0.0
    %2773 = vmatpush.msra.mxu0 0.0
    %2774 = vmatpush.msra.mxu0 0.0
    %2775 = vmatpush.msra.mxu0 0.0
    %2776 = vmatpush.msra.mxu0 0.0
    %2777 = vmatpush.msra.mxu0 %v1047
    %2778 = vmatpush.msra.mxu0 %v1039
    %2779 = vmatpush.msra.mxu0 %v1031
    %2780 = vmatpush.msra.mxu0 %v1023
    %2781 = vmatmul.f32.gmra.mxu0 %v2643
    %v2782 = vpop.f32.mrf.mxu0
    %v2783 = vadd.f32 0.0, %v2782
    %2784 = vdwg.mxu0
    %2785 = vmatpush.msra.mxu0 0.0
    %2786 = vmatpush.msra.mxu0 0.0
    %2787 = vmatpush.msra.mxu0 0.0
    %2788 = vmatpush.msra.mxu0 0.0
    %2789 = vmatpush.msra.mxu0 0.0
    %2790 = vmatpush.msra.mxu0 0.0
    %2791 = vmatpush.msra.mxu0 0.0
    %2792 = vmatpush.msra.mxu0 0.0
    %2793 = vmatpush.msra.mxu0 0.0
    %2794 = vmatpush.msra.mxu0 0.0
    %2795 = vmatpush.msra.mxu0 0.0
    %2796 = vmatpush.msra.mxu0 0.0
    %2797 = vmatpush.msra.mxu0 %v1048
    %2798 = vmatpush.msra.mxu0 %v1040
    %2799 = vmatpush.msra.mxu0 %v1032
    %2800 = vmatpush.msra.mxu0 %v1024
    %2801 = vmatmul.f32.gmra.mxu0 %v2643
    %v2802 = vpop.f32.mrf.mxu0
    %v2803 = vadd.f32 0.0, %v2802
    %2804 = vdwg.mxu0
    %v2805 = vadd.f32 %v2625, %v2663
    %v2806 = vadd.f32 %v2626, %v2683
    %v2807 = vadd.f32 %v2627, %v2703
    %v2808 = vadd.f32 %v2628, %v2723
    %v2809 = vadd.f32 %v2629, %v2743
    %v2810 = vadd.f32 %v2630, %v2763
    %v2811 = vadd.f32 %v2631, %v2783
    %v2812 = vadd.f32 %v2632, %v2803
    %2814 = vrot.lane.b32.xlu0 %v2247, 96
    %v2815 = vpop.permute.xlu0 %2814
    %v2817 = vmax.f32 %v2246, %v2815
    %2818 = vrot.lane.b32.xlu0 %v2247, 64
    %v2819 = vpop.permute.xlu0 %2818
    %v2821 = vmax.f32 %v2817, %v2819
    %2822 = vrot.lane.b32.xlu0 %v2247, 32
    %v2823 = vpop.permute.xlu0 %2822
    %v2825 = vmax.f32 %v2821, %v2823
    %2827 = vrot.lane.b32.xlu0 %v2825, 32
    %v2828 = vpop.permute.xlu0 %2827
    %v2829 = vsel %vm1358, %v2828, 0
    %2831 = vmatpush.msra.mxu0 0.0
    %2832 = vmatpush.msra.mxu0 0.0
    %2833 = vmatpush.msra.mxu0 0.0
    %2834 = vmatpush.msra.mxu0 0.0
    %2835 = vmatpush.msra.mxu0 0.0
    %2836 = vmatpush.msra.mxu0 0.0
    %2837 = vmatpush.msra.mxu0 0.0
    %2838 = vmatpush.msra.mxu0 0.0
    %2839 = vmatpush.msra.mxu0 0.0
    %2840 = vmatpush.msra.mxu0 0.0
    %2841 = vmatpush.msra.mxu0 0.0
    %2842 = vmatpush.msra.mxu0 0.0
    %2843 = vmatpush.msra.mxu0 %v1073
    %2844 = vmatpush.msra.mxu0 %v1065
    %2845 = vmatpush.msra.mxu0 %v1057
    %2846 = vmatpush.msra.mxu0 %v1049
    %2847 = vmatmul.f32.gmra.mxu0 %v2829
    %v2848 = vpop.f32.mrf.mxu0
    %v2849 = vadd.f32 0.0, %v2848
    %2850 = vdwg.mxu0
    %2851 = vmatpush.msra.mxu0 0.0
    %2852 = vmatpush.msra.mxu0 0.0
    %2853 = vmatpush.msra.mxu0 0.0
    %2854 = vmatpush.msra.mxu0 0.0
    %2855 = vmatpush.msra.mxu0 0.0
    %2856 = vmatpush.msra.mxu0 0.0
    %2857 = vmatpush.msra.mxu0 0.0
    %2858 = vmatpush.msra.mxu0 0.0
    %2859 = vmatpush.msra.mxu0 0.0
    %2860 = vmatpush.msra.mxu0 0.0
    %2861 = vmatpush.msra.mxu0 0.0
    %2862 = vmatpush.msra.mxu0 0.0
    %2863 = vmatpush.msra.mxu0 %v1074
    %2864 = vmatpush.msra.mxu0 %v1066
    %2865 = vmatpush.msra.mxu0 %v1058
    %2866 = vmatpush.msra.mxu0 %v1050
    %2867 = vmatmul.f32.gmra.mxu0 %v2829
    %v2868 = vpop.f32.mrf.mxu0
    %v2869 = vadd.f32 0.0, %v2868
    %2870 = vdwg.mxu0
    %2871 = vmatpush.msra.mxu0 0.0
    %2872 = vmatpush.msra.mxu0 0.0
    %2873 = vmatpush.msra.mxu0 0.0
    %2874 = vmatpush.msra.mxu0 0.0
    %2875 = vmatpush.msra.mxu0 0.0
    %2876 = vmatpush.msra.mxu0 0.0
    %2877 = vmatpush.msra.mxu0 0.0
    %2878 = vmatpush.msra.mxu0 0.0
    %2879 = vmatpush.msra.mxu0 0.0
    %2880 = vmatpush.msra.mxu0 0.0
    %2881 = vmatpush.msra.mxu0 0.0
    %2882 = vmatpush.msra.mxu0 0.0
    %2883 = vmatpush.msra.mxu0 %v1075
    %2884 = vmatpush.msra.mxu0 %v1067
    %2885 = vmatpush.msra.mxu0 %v1059
    %2886 = vmatpush.msra.mxu0 %v1051
    %2887 = vmatmul.f32.gmra.mxu0 %v2829
    %v2888 = vpop.f32.mrf.mxu0
    %v2889 = vadd.f32 0.0, %v2888
    %2890 = vdwg.mxu0
    %2891 = vmatpush.msra.mxu0 0.0
    %2892 = vmatpush.msra.mxu0 0.0
    %2893 = vmatpush.msra.mxu0 0.0
    %2894 = vmatpush.msra.mxu0 0.0
    %2895 = vmatpush.msra.mxu0 0.0
    %2896 = vmatpush.msra.mxu0 0.0
    %2897 = vmatpush.msra.mxu0 0.0
    %2898 = vmatpush.msra.mxu0 0.0
    %2899 = vmatpush.msra.mxu0 0.0
    %2900 = vmatpush.msra.mxu0 0.0
    %2901 = vmatpush.msra.mxu0 0.0
    %2902 = vmatpush.msra.mxu0 0.0
    %2903 = vmatpush.msra.mxu0 %v1076
    %2904 = vmatpush.msra.mxu0 %v1068
    %2905 = vmatpush.msra.mxu0 %v1060
    %2906 = vmatpush.msra.mxu0 %v1052
    %2907 = vmatmul.f32.gmra.mxu0 %v2829
    %v2908 = vpop.f32.mrf.mxu0
    %v2909 = vadd.f32 0.0, %v2908
    %2910 = vdwg.mxu0
    %2911 = vmatpush.msra.mxu0 0.0
    %2912 = vmatpush.msra.mxu0 0.0
    %2913 = vmatpush.msra.mxu0 0.0
    %2914 = vmatpush.msra.mxu0 0.0
    %2915 = vmatpush.msra.mxu0 0.0
    %2916 = vmatpush.msra.mxu0 0.0
    %2917 = vmatpush.msra.mxu0 0.0
    %2918 = vmatpush.msra.mxu0 0.0
    %2919 = vmatpush.msra.mxu0 0.0
    %2920 = vmatpush.msra.mxu0 0.0
    %2921 = vmatpush.msra.mxu0 0.0
    %2922 = vmatpush.msra.mxu0 0.0
    %2923 = vmatpush.msra.mxu0 %v1077
    %2924 = vmatpush.msra.mxu0 %v1069
    %2925 = vmatpush.msra.mxu0 %v1061
    %2926 = vmatpush.msra.mxu0 %v1053
    %2927 = vmatmul.f32.gmra.mxu0 %v2829
    %v2928 = vpop.f32.mrf.mxu0
    %v2929 = vadd.f32 0.0, %v2928
    %2930 = vdwg.mxu0
    %2931 = vmatpush.msra.mxu0 0.0
    %2932 = vmatpush.msra.mxu0 0.0
    %2933 = vmatpush.msra.mxu0 0.0
    %2934 = vmatpush.msra.mxu0 0.0
    %2935 = vmatpush.msra.mxu0 0.0
    %2936 = vmatpush.msra.mxu0 0.0
    %2937 = vmatpush.msra.mxu0 0.0
    %2938 = vmatpush.msra.mxu0 0.0
    %2939 = vmatpush.msra.mxu0 0.0
    %2940 = vmatpush.msra.mxu0 0.0
    %2941 = vmatpush.msra.mxu0 0.0
    %2942 = vmatpush.msra.mxu0 0.0
    %2943 = vmatpush.msra.mxu0 %v1078
    %2944 = vmatpush.msra.mxu0 %v1070
    %2945 = vmatpush.msra.mxu0 %v1062
    %2946 = vmatpush.msra.mxu0 %v1054
    %2947 = vmatmul.f32.gmra.mxu0 %v2829
    %v2948 = vpop.f32.mrf.mxu0
    %v2949 = vadd.f32 0.0, %v2948
    %2950 = vdwg.mxu0
    %2951 = vmatpush.msra.mxu0 0.0
    %2952 = vmatpush.msra.mxu0 0.0
    %2953 = vmatpush.msra.mxu0 0.0
    %2954 = vmatpush.msra.mxu0 0.0
    %2955 = vmatpush.msra.mxu0 0.0
    %2956 = vmatpush.msra.mxu0 0.0
    %2957 = vmatpush.msra.mxu0 0.0
    %2958 = vmatpush.msra.mxu0 0.0
    %2959 = vmatpush.msra.mxu0 0.0
    %2960 = vmatpush.msra.mxu0 0.0
    %2961 = vmatpush.msra.mxu0 0.0
    %2962 = vmatpush.msra.mxu0 0.0
    %2963 = vmatpush.msra.mxu0 %v1079
    %2964 = vmatpush.msra.mxu0 %v1071
    %2965 = vmatpush.msra.mxu0 %v1063
    %2966 = vmatpush.msra.mxu0 %v1055
    %2967 = vmatmul.f32.gmra.mxu0 %v2829
    %v2968 = vpop.f32.mrf.mxu0
    %v2969 = vadd.f32 0.0, %v2968
    %2970 = vdwg.mxu0
    %2971 = vmatpush.msra.mxu0 0.0
    %2972 = vmatpush.msra.mxu0 0.0
    %2973 = vmatpush.msra.mxu0 0.0
    %2974 = vmatpush.msra.mxu0 0.0
    %2975 = vmatpush.msra.mxu0 0.0
    %2976 = vmatpush.msra.mxu0 0.0
    %2977 = vmatpush.msra.mxu0 0.0
    %2978 = vmatpush.msra.mxu0 0.0
    %2979 = vmatpush.msra.mxu0 0.0
    %2980 = vmatpush.msra.mxu0 0.0
    %2981 = vmatpush.msra.mxu0 0.0
    %2982 = vmatpush.msra.mxu0 0.0
    %2983 = vmatpush.msra.mxu0 %v1080
    %2984 = vmatpush.msra.mxu0 %v1072
    %2985 = vmatpush.msra.mxu0 %v1064
    %2986 = vmatpush.msra.mxu0 %v1056
    %2987 = vmatmul.f32.gmra.mxu0 %v2829
    %v2988 = vpop.f32.mrf.mxu0
    %v2989 = vadd.f32 0.0, %v2988
    %2990 = vdwg.mxu0
    %v2991 = vadd.f32 %v2805, %v2849
    %v2992 = vadd.f32 %v2806, %v2869
    %v2993 = vadd.f32 %v2807, %v2889
    %v2994 = vadd.f32 %v2808, %v2909
    %v2995 = vadd.f32 %v2809, %v2929
    %v2996 = vadd.f32 %v2810, %v2949
    %v2997 = vadd.f32 %v2811, %v2969
    %v2998 = vadd.f32 %v2812, %v2989
    %3000 = vrot.lane.b32.xlu0 %v2262, 96
    %v3001 = vpop.permute.xlu0 %3000
    %v3003 = vmax.f32 %v2261, %v3001
    %3004 = vrot.lane.b32.xlu0 %v2262, 64
    %v3005 = vpop.permute.xlu0 %3004
    %v3007 = vmax.f32 %v3003, %v3005
    %3008 = vrot.lane.b32.xlu0 %v2262, 32
    %v3009 = vpop.permute.xlu0 %3008
    %v3011 = vmax.f32 %v3007, %v3009
    %3013 = vrot.lane.b32.xlu0 %v3011, 32
    %v3014 = vpop.permute.xlu0 %3013
    %v3015 = vsel %vm1358, %v3014, 0
    %3017 = vmatpush.msra.mxu0 0.0
    %3018 = vmatpush.msra.mxu0 0.0
    %3019 = vmatpush.msra.mxu0 0.0
    %3020 = vmatpush.msra.mxu0 0.0
    %3021 = vmatpush.msra.mxu0 0.0
    %3022 = vmatpush.msra.mxu0 0.0
    %3023 = vmatpush.msra.mxu0 0.0
    %3024 = vmatpush.msra.mxu0 0.0
    %3025 = vmatpush.msra.mxu0 0.0
    %3026 = vmatpush.msra.mxu0 0.0
    %3027 = vmatpush.msra.mxu0 0.0
    %3028 = vmatpush.msra.mxu0 0.0
    %3029 = vmatpush.msra.mxu0 %v1105
    %3030 = vmatpush.msra.mxu0 %v1097
    %3031 = vmatpush.msra.mxu0 %v1089
    %3032 = vmatpush.msra.mxu0 %v1081
    %3033 = vmatmul.f32.gmra.mxu0 %v3015
    %v3034 = vpop.f32.mrf.mxu0
    %v3035 = vadd.f32 0.0, %v3034
    %3036 = vdwg.mxu0
    %3037 = vmatpush.msra.mxu0 0.0
    %3038 = vmatpush.msra.mxu0 0.0
    %3039 = vmatpush.msra.mxu0 0.0
    %3040 = vmatpush.msra.mxu0 0.0
    %3041 = vmatpush.msra.mxu0 0.0
    %3042 = vmatpush.msra.mxu0 0.0
    %3043 = vmatpush.msra.mxu0 0.0
    %3044 = vmatpush.msra.mxu0 0.0
    %3045 = vmatpush.msra.mxu0 0.0
    %3046 = vmatpush.msra.mxu0 0.0
    %3047 = vmatpush.msra.mxu0 0.0
    %3048 = vmatpush.msra.mxu0 0.0
    %3049 = vmatpush.msra.mxu0 %v1106
    %3050 = vmatpush.msra.mxu0 %v1098
    %3051 = vmatpush.msra.mxu0 %v1090
    %3052 = vmatpush.msra.mxu0 %v1082
    %3053 = vmatmul.f32.gmra.mxu0 %v3015
    %v3054 = vpop.f32.mrf.mxu0
    %v3055 = vadd.f32 0.0, %v3054
    %3056 = vdwg.mxu0
    %3057 = vmatpush.msra.mxu0 0.0
    %3058 = vmatpush.msra.mxu0 0.0
    %3059 = vmatpush.msra.mxu0 0.0
    %3060 = vmatpush.msra.mxu0 0.0
    %3061 = vmatpush.msra.mxu0 0.0
    %3062 = vmatpush.msra.mxu0 0.0
    %3063 = vmatpush.msra.mxu0 0.0
    %3064 = vmatpush.msra.mxu0 0.0
    %3065 = vmatpush.msra.mxu0 0.0
    %3066 = vmatpush.msra.mxu0 0.0
    %3067 = vmatpush.msra.mxu0 0.0
    %3068 = vmatpush.msra.mxu0 0.0
    %3069 = vmatpush.msra.mxu0 %v1107
    %3070 = vmatpush.msra.mxu0 %v1099
    %3071 = vmatpush.msra.mxu0 %v1091
    %3072 = vmatpush.msra.mxu0 %v1083
    %3073 = vmatmul.f32.gmra.mxu0 %v3015
    %v3074 = vpop.f32.mrf.mxu0
    %v3075 = vadd.f32 0.0, %v3074
    %3076 = vdwg.mxu0
    %3077 = vmatpush.msra.mxu0 0.0
    %3078 = vmatpush.msra.mxu0 0.0
    %3079 = vmatpush.msra.mxu0 0.0
    %3080 = vmatpush.msra.mxu0 0.0
    %3081 = vmatpush.msra.mxu0 0.0
    %3082 = vmatpush.msra.mxu0 0.0
    %3083 = vmatpush.msra.mxu0 0.0
    %3084 = vmatpush.msra.mxu0 0.0
    %3085 = vmatpush.msra.mxu0 0.0
    %3086 = vmatpush.msra.mxu0 0.0
    %3087 = vmatpush.msra.mxu0 0.0
    %3088 = vmatpush.msra.mxu0 0.0
    %3089 = vmatpush.msra.mxu0 %v1108
    %3090 = vmatpush.msra.mxu0 %v1100
    %3091 = vmatpush.msra.mxu0 %v1092
    %3092 = vmatpush.msra.mxu0 %v1084
    %3093 = vmatmul.f32.gmra.mxu0 %v3015
    %v3094 = vpop.f32.mrf.mxu0
    %v3095 = vadd.f32 0.0, %v3094
    %3096 = vdwg.mxu0
    %3097 = vmatpush.msra.mxu0 0.0
    %3098 = vmatpush.msra.mxu0 0.0
    %3099 = vmatpush.msra.mxu0 0.0
    %3100 = vmatpush.msra.mxu0 0.0
    %3101 = vmatpush.msra.mxu0 0.0
    %3102 = vmatpush.msra.mxu0 0.0
    %3103 = vmatpush.msra.mxu0 0.0
    %3104 = vmatpush.msra.mxu0 0.0
    %3105 = vmatpush.msra.mxu0 0.0
    %3106 = vmatpush.msra.mxu0 0.0
    %3107 = vmatpush.msra.mxu0 0.0
    %3108 = vmatpush.msra.mxu0 0.0
    %3109 = vmatpush.msra.mxu0 %v1109
    %3110 = vmatpush.msra.mxu0 %v1101
    %3111 = vmatpush.msra.mxu0 %v1093
    %3112 = vmatpush.msra.mxu0 %v1085
    %3113 = vmatmul.f32.gmra.mxu0 %v3015
    %v3114 = vpop.f32.mrf.mxu0
    %v3115 = vadd.f32 0.0, %v3114
    %3116 = vdwg.mxu0
    %3117 = vmatpush.msra.mxu0 0.0
    %3118 = vmatpush.msra.mxu0 0.0
    %3119 = vmatpush.msra.mxu0 0.0
    %3120 = vmatpush.msra.mxu0 0.0
    %3121 = vmatpush.msra.mxu0 0.0
    %3122 = vmatpush.msra.mxu0 0.0
    %3123 = vmatpush.msra.mxu0 0.0
    %3124 = vmatpush.msra.mxu0 0.0
    %3125 = vmatpush.msra.mxu0 0.0
    %3126 = vmatpush.msra.mxu0 0.0
    %3127 = vmatpush.msra.mxu0 0.0
    %3128 = vmatpush.msra.mxu0 0.0
    %3129 = vmatpush.msra.mxu0 %v1110
    %3130 = vmatpush.msra.mxu0 %v1102
    %3131 = vmatpush.msra.mxu0 %v1094
    %3132 = vmatpush.msra.mxu0 %v1086
    %3133 = vmatmul.f32.gmra.mxu0 %v3015
    %v3134 = vpop.f32.mrf.mxu0
    %v3135 = vadd.f32 0.0, %v3134
    %3136 = vdwg.mxu0
    %3137 = vmatpush.msra.mxu0 0.0
    %3138 = vmatpush.msra.mxu0 0.0
    %3139 = vmatpush.msra.mxu0 0.0
    %3140 = vmatpush.msra.mxu0 0.0
    %3141 = vmatpush.msra.mxu0 0.0
    %3142 = vmatpush.msra.mxu0 0.0
    %3143 = vmatpush.msra.mxu0 0.0
    %3144 = vmatpush.msra.mxu0 0.0
    %3145 = vmatpush.msra.mxu0 0.0
    %3146 = vmatpush.msra.mxu0 0.0
    %3147 = vmatpush.msra.mxu0 0.0
    %3148 = vmatpush.msra.mxu0 0.0
    %3149 = vmatpush.msra.mxu0 %v1111
    %3150 = vmatpush.msra.mxu0 %v1103
    %3151 = vmatpush.msra.mxu0 %v1095
    %3152 = vmatpush.msra.mxu0 %v1087
    %3153 = vmatmul.f32.gmra.mxu0 %v3015
    %v3154 = vpop.f32.mrf.mxu0
    %v3155 = vadd.f32 0.0, %v3154
    %3156 = vdwg.mxu0
    %3157 = vmatpush.msra.mxu0 0.0
    %3158 = vmatpush.msra.mxu0 0.0
    %3159 = vmatpush.msra.mxu0 0.0
    %3160 = vmatpush.msra.mxu0 0.0
    %3161 = vmatpush.msra.mxu0 0.0
    %3162 = vmatpush.msra.mxu0 0.0
    %3163 = vmatpush.msra.mxu0 0.0
    %3164 = vmatpush.msra.mxu0 0.0
    %3165 = vmatpush.msra.mxu0 0.0
    %3166 = vmatpush.msra.mxu0 0.0
    %3167 = vmatpush.msra.mxu0 0.0
    %3168 = vmatpush.msra.mxu0 0.0
    %3169 = vmatpush.msra.mxu0 %v1112
    %3170 = vmatpush.msra.mxu0 %v1104
    %3171 = vmatpush.msra.mxu0 %v1096
    %3172 = vmatpush.msra.mxu0 %v1088
    %3173 = vmatmul.f32.gmra.mxu0 %v3015
    %v3174 = vpop.f32.mrf.mxu0
    %v3175 = vadd.f32 0.0, %v3174
    %3176 = vdwg.mxu0
    %v3177 = vadd.f32 %v2991, %v3035
    %v3178 = vadd.f32 %v2992, %v3055
    %v3179 = vadd.f32 %v2993, %v3075
    %v3180 = vadd.f32 %v2994, %v3095
    %v3181 = vadd.f32 %v2995, %v3115
    %v3182 = vadd.f32 %v2996, %v3135
    %v3183 = vadd.f32 %v2997, %v3155
    %v3184 = vadd.f32 %v2998, %v3175
    %3186 = vrot.lane.b32.xlu0 %v2271, 96
    %v3187 = vpop.permute.xlu0 %3186
    %v3189 = vmax.f32 %v2270, %v3187
    %3190 = vrot.lane.b32.xlu0 %v2271, 64
    %v3191 = vpop.permute.xlu0 %3190
    %v3193 = vmax.f32 %v3189, %v3191
    %3194 = vrot.lane.b32.xlu0 %v2271, 32
    %v3195 = vpop.permute.xlu0 %3194
    %v3197 = vmax.f32 %v3193, %v3195
    %3199 = vrot.lane.b32.xlu0 %v3197, 32
    %v3200 = vpop.permute.xlu0 %3199
    %v3201 = vsel %vm1358, %v3200, 0
    %3203 = vmatpush.msra.mxu0 0.0
    %3204 = vmatpush.msra.mxu0 0.0
    %3205 = vmatpush.msra.mxu0 0.0
    %3206 = vmatpush.msra.mxu0 0.0
    %3207 = vmatpush.msra.mxu0 0.0
    %3208 = vmatpush.msra.mxu0 0.0
    %3209 = vmatpush.msra.mxu0 0.0
    %3210 = vmatpush.msra.mxu0 0.0
    %3211 = vmatpush.msra.mxu0 0.0
    %3212 = vmatpush.msra.mxu0 0.0
    %3213 = vmatpush.msra.mxu0 0.0
    %3214 = vmatpush.msra.mxu0 0.0
    %3215 = vmatpush.msra.mxu0 %v1137
    %3216 = vmatpush.msra.mxu0 %v1129
    %3217 = vmatpush.msra.mxu0 %v1121
    %3218 = vmatpush.msra.mxu0 %v1113
    %3219 = vmatmul.f32.gmra.mxu0 %v3201
    %v3220 = vpop.f32.mrf.mxu0
    %v3221 = vadd.f32 0.0, %v3220
    %3222 = vdwg.mxu0
    %3223 = vmatpush.msra.mxu0 0.0
    %3224 = vmatpush.msra.mxu0 0.0
    %3225 = vmatpush.msra.mxu0 0.0
    %3226 = vmatpush.msra.mxu0 0.0
    %3227 = vmatpush.msra.mxu0 0.0
    %3228 = vmatpush.msra.mxu0 0.0
    %3229 = vmatpush.msra.mxu0 0.0
    %3230 = vmatpush.msra.mxu0 0.0
    %3231 = vmatpush.msra.mxu0 0.0
    %3232 = vmatpush.msra.mxu0 0.0
    %3233 = vmatpush.msra.mxu0 0.0
    %3234 = vmatpush.msra.mxu0 0.0
    %3235 = vmatpush.msra.mxu0 %v1138
    %3236 = vmatpush.msra.mxu0 %v1130
    %3237 = vmatpush.msra.mxu0 %v1122
    %3238 = vmatpush.msra.mxu0 %v1114
    %3239 = vmatmul.f32.gmra.mxu0 %v3201
    %v3240 = vpop.f32.mrf.mxu0
    %v3241 = vadd.f32 0.0, %v3240
    %3242 = vdwg.mxu0
    %3243 = vmatpush.msra.mxu0 0.0
    %3244 = vmatpush.msra.mxu0 0.0
    %3245 = vmatpush.msra.mxu0 0.0
    %3246 = vmatpush.msra.mxu0 0.0
    %3247 = vmatpush.msra.mxu0 0.0
    %3248 = vmatpush.msra.mxu0 0.0
    %3249 = vmatpush.msra.mxu0 0.0
    %3250 = vmatpush.msra.mxu0 0.0
    %3251 = vmatpush.msra.mxu0 0.0
    %3252 = vmatpush.msra.mxu0 0.0
    %3253 = vmatpush.msra.mxu0 0.0
    %3254 = vmatpush.msra.mxu0 0.0
    %3255 = vmatpush.msra.mxu0 %v1139
    %3256 = vmatpush.msra.mxu0 %v1131
    %3257 = vmatpush.msra.mxu0 %v1123
    %3258 = vmatpush.msra.mxu0 %v1115
    %3259 = vmatmul.f32.gmra.mxu0 %v3201
    %v3260 = vpop.f32.mrf.mxu0
    %v3261 = vadd.f32 0.0, %v3260
    %3262 = vdwg.mxu0
    %3263 = vmatpush.msra.mxu0 0.0
    %3264 = vmatpush.msra.mxu0 0.0
    %3265 = vmatpush.msra.mxu0 0.0
    %3266 = vmatpush.msra.mxu0 0.0
    %3267 = vmatpush.msra.mxu0 0.0
    %3268 = vmatpush.msra.mxu0 0.0
    %3269 = vmatpush.msra.mxu0 0.0
    %3270 = vmatpush.msra.mxu0 0.0
    %3271 = vmatpush.msra.mxu0 0.0
    %3272 = vmatpush.msra.mxu0 0.0
    %3273 = vmatpush.msra.mxu0 0.0
    %3274 = vmatpush.msra.mxu0 0.0
    %3275 = vmatpush.msra.mxu0 %v1140
    %3276 = vmatpush.msra.mxu0 %v1132
    %3277 = vmatpush.msra.mxu0 %v1124
    %3278 = vmatpush.msra.mxu0 %v1116
    %3279 = vmatmul.f32.gmra.mxu0 %v3201
    %v3280 = vpop.f32.mrf.mxu0
    %v3281 = vadd.f32 0.0, %v3280
    %3282 = vdwg.mxu0
    %3283 = vmatpush.msra.mxu0 0.0
    %3284 = vmatpush.msra.mxu0 0.0
    %3285 = vmatpush.msra.mxu0 0.0
    %3286 = vmatpush.msra.mxu0 0.0
    %3287 = vmatpush.msra.mxu0 0.0
    %3288 = vmatpush.msra.mxu0 0.0
    %3289 = vmatpush.msra.mxu0 0.0
    %3290 = vmatpush.msra.mxu0 0.0
    %3291 = vmatpush.msra.mxu0 0.0
    %3292 = vmatpush.msra.mxu0 0.0
    %3293 = vmatpush.msra.mxu0 0.0
    %3294 = vmatpush.msra.mxu0 0.0
    %3295 = vmatpush.msra.mxu0 %v1141
    %3296 = vmatpush.msra.mxu0 %v1133
    %3297 = vmatpush.msra.mxu0 %v1125
    %3298 = vmatpush.msra.mxu0 %v1117
    %3299 = vmatmul.f32.gmra.mxu0 %v3201
    %v3300 = vpop.f32.mrf.mxu0
    %v3301 = vadd.f32 0.0, %v3300
    %3302 = vdwg.mxu0
    %3303 = vmatpush.msra.mxu0 0.0
    %3304 = vmatpush.msra.mxu0 0.0
    %3305 = vmatpush.msra.mxu0 0.0
    %3306 = vmatpush.msra.mxu0 0.0
    %3307 = vmatpush.msra.mxu0 0.0
    %3308 = vmatpush.msra.mxu0 0.0
    %3309 = vmatpush.msra.mxu0 0.0
    %3310 = vmatpush.msra.mxu0 0.0
    %3311 = vmatpush.msra.mxu0 0.0
    %3312 = vmatpush.msra.mxu0 0.0
    %3313 = vmatpush.msra.mxu0 0.0
    %3314 = vmatpush.msra.mxu0 0.0
    %3315 = vmatpush.msra.mxu0 %v1142
    %3316 = vmatpush.msra.mxu0 %v1134
    %3317 = vmatpush.msra.mxu0 %v1126
    %3318 = vmatpush.msra.mxu0 %v1118
    %3319 = vmatmul.f32.gmra.mxu0 %v3201
    %v3320 = vpop.f32.mrf.mxu0
    %v3321 = vadd.f32 0.0, %v3320
    %3322 = vdwg.mxu0
    %3323 = vmatpush.msra.mxu0 0.0
    %3324 = vmatpush.msra.mxu0 0.0
    %3325 = vmatpush.msra.mxu0 0.0
    %3326 = vmatpush.msra.mxu0 0.0
    %3327 = vmatpush.msra.mxu0 0.0
    %3328 = vmatpush.msra.mxu0 0.0
    %3329 = vmatpush.msra.mxu0 0.0
    %3330 = vmatpush.msra.mxu0 0.0
    %3331 = vmatpush.msra.mxu0 0.0
    %3332 = vmatpush.msra.mxu0 0.0
    %3333 = vmatpush.msra.mxu0 0.0
    %3334 = vmatpush.msra.mxu0 0.0
    %3335 = vmatpush.msra.mxu0 %v1143
    %3336 = vmatpush.msra.mxu0 %v1135
    %3337 = vmatpush.msra.mxu0 %v1127
    %3338 = vmatpush.msra.mxu0 %v1119
    %3339 = vmatmul.f32.gmra.mxu0 %v3201
    %v3340 = vpop.f32.mrf.mxu0
    %v3341 = vadd.f32 0.0, %v3340
    %3342 = vdwg.mxu0
    %3343 = vmatpush.msra.mxu0 0.0
    %3344 = vmatpush.msra.mxu0 0.0
    %3345 = vmatpush.msra.mxu0 0.0
    %3346 = vmatpush.msra.mxu0 0.0
    %3347 = vmatpush.msra.mxu0 0.0
    %3348 = vmatpush.msra.mxu0 0.0
    %3349 = vmatpush.msra.mxu0 0.0
    %3350 = vmatpush.msra.mxu0 0.0
    %3351 = vmatpush.msra.mxu0 0.0
    %3352 = vmatpush.msra.mxu0 0.0
    %3353 = vmatpush.msra.mxu0 0.0
    %3354 = vmatpush.msra.mxu0 0.0
    %3355 = vmatpush.msra.mxu0 %v1144
    %3356 = vmatpush.msra.mxu0 %v1136
    %3357 = vmatpush.msra.mxu0 %v1128
    %3358 = vmatpush.msra.mxu0 %v1120
    %3359 = vmatmul.f32.gmra.mxu0 %v3201
    %v3360 = vpop.f32.mrf.mxu0
    %v3361 = vadd.f32 0.0, %v3360
    %3362 = vdwg.mxu0
    %v3363 = vadd.f32 %v3177, %v3221
    %v3364 = vadd.f32 %v3178, %v3241
    %v3365 = vadd.f32 %v3179, %v3261
    %v3366 = vadd.f32 %v3180, %v3281
    %v3367 = vadd.f32 %v3181, %v3301
    %v3368 = vadd.f32 %v3182, %v3321
    %v3369 = vadd.f32 %v3183, %v3341
    %v3370 = vadd.f32 %v3184, %v3361
    %3372 = vrot.lane.b32.xlu0 %v2248, 96
    %v3373 = vpop.permute.xlu0 %3372
    %v3375 = vmax.f32 %v2247, %v3373
    %3376 = vrot.lane.b32.xlu0 %v2248, 64
    %v3377 = vpop.permute.xlu0 %3376
    %v3379 = vmax.f32 %v3375, %v3377
    %3381 = vrot.lane.b32.xlu0 %v3379, 32
    %v3382 = vpop.permute.xlu0 %3381
    %v3383 = vsel %vm1358, %v3382, 0
    %3385 = vmatpush.msra.mxu0 0.0
    %3386 = vmatpush.msra.mxu0 0.0
    %3387 = vmatpush.msra.mxu0 0.0
    %3388 = vmatpush.msra.mxu0 0.0
    %3389 = vmatpush.msra.mxu0 0.0
    %3390 = vmatpush.msra.mxu0 0.0
    %3391 = vmatpush.msra.mxu0 0.0
    %3392 = vmatpush.msra.mxu0 0.0
    %3393 = vmatpush.msra.mxu0 0.0
    %3394 = vmatpush.msra.mxu0 0.0
    %3395 = vmatpush.msra.mxu0 0.0
    %3396 = vmatpush.msra.mxu0 0.0
    %3397 = vmatpush.msra.mxu0 %v1169
    %3398 = vmatpush.msra.mxu0 %v1161
    %3399 = vmatpush.msra.mxu0 %v1153
    %3400 = vmatpush.msra.mxu0 %v1145
    %3401 = vmatmul.f32.gmra.mxu0 %v3383
    %v3402 = vpop.f32.mrf.mxu0
    %v3403 = vadd.f32 0.0, %v3402
    %3404 = vdwg.mxu0
    %3405 = vmatpush.msra.mxu0 0.0
    %3406 = vmatpush.msra.mxu0 0.0
    %3407 = vmatpush.msra.mxu0 0.0
    %3408 = vmatpush.msra.mxu0 0.0
    %3409 = vmatpush.msra.mxu0 0.0
    %3410 = vmatpush.msra.mxu0 0.0
    %3411 = vmatpush.msra.mxu0 0.0
    %3412 = vmatpush.msra.mxu0 0.0
    %3413 = vmatpush.msra.mxu0 0.0
    %3414 = vmatpush.msra.mxu0 0.0
    %3415 = vmatpush.msra.mxu0 0.0
    %3416 = vmatpush.msra.mxu0 0.0
    %3417 = vmatpush.msra.mxu0 %v1170
    %3418 = vmatpush.msra.mxu0 %v1162
    %3419 = vmatpush.msra.mxu0 %v1154
    %3420 = vmatpush.msra.mxu0 %v1146
    %3421 = vmatmul.f32.gmra.mxu0 %v3383
    %v3422 = vpop.f32.mrf.mxu0
    %v3423 = vadd.f32 0.0, %v3422
    %3424 = vdwg.mxu0
    %3425 = vmatpush.msra.mxu0 0.0
    %3426 = vmatpush.msra.mxu0 0.0
    %3427 = vmatpush.msra.mxu0 0.0
    %3428 = vmatpush.msra.mxu0 0.0
    %3429 = vmatpush.msra.mxu0 0.0
    %3430 = vmatpush.msra.mxu0 0.0
    %3431 = vmatpush.msra.mxu0 0.0
    %3432 = vmatpush.msra.mxu0 0.0
    %3433 = vmatpush.msra.mxu0 0.0
    %3434 = vmatpush.msra.mxu0 0.0
    %3435 = vmatpush.msra.mxu0 0.0
    %3436 = vmatpush.msra.mxu0 0.0
    %3437 = vmatpush.msra.mxu0 %v1171
    %3438 = vmatpush.msra.mxu0 %v1163
    %3439 = vmatpush.msra.mxu0 %v1155
    %3440 = vmatpush.msra.mxu0 %v1147
    %3441 = vmatmul.f32.gmra.mxu0 %v3383
    %v3442 = vpop.f32.mrf.mxu0
    %v3443 = vadd.f32 0.0, %v3442
    %3444 = vdwg.mxu0
    %3445 = vmatpush.msra.mxu0 0.0
    %3446 = vmatpush.msra.mxu0 0.0
    %3447 = vmatpush.msra.mxu0 0.0
    %3448 = vmatpush.msra.mxu0 0.0
    %3449 = vmatpush.msra.mxu0 0.0
    %3450 = vmatpush.msra.mxu0 0.0
    %3451 = vmatpush.msra.mxu0 0.0
    %3452 = vmatpush.msra.mxu0 0.0
    %3453 = vmatpush.msra.mxu0 0.0
    %3454 = vmatpush.msra.mxu0 0.0
    %3455 = vmatpush.msra.mxu0 0.0
    %3456 = vmatpush.msra.mxu0 0.0
    %3457 = vmatpush.msra.mxu0 %v1172
    %3458 = vmatpush.msra.mxu0 %v1164
    %3459 = vmatpush.msra.mxu0 %v1156
    %3460 = vmatpush.msra.mxu0 %v1148
    %3461 = vmatmul.f32.gmra.mxu0 %v3383
    %v3462 = vpop.f32.mrf.mxu0
    %v3463 = vadd.f32 0.0, %v3462
    %3464 = vdwg.mxu0
    %3465 = vmatpush.msra.mxu0 0.0
    %3466 = vmatpush.msra.mxu0 0.0
    %3467 = vmatpush.msra.mxu0 0.0
    %3468 = vmatpush.msra.mxu0 0.0
    %3469 = vmatpush.msra.mxu0 0.0
    %3470 = vmatpush.msra.mxu0 0.0
    %3471 = vmatpush.msra.mxu0 0.0
    %3472 = vmatpush.msra.mxu0 0.0
    %3473 = vmatpush.msra.mxu0 0.0
    %3474 = vmatpush.msra.mxu0 0.0
    %3475 = vmatpush.msra.mxu0 0.0
    %3476 = vmatpush.msra.mxu0 0.0
    %3477 = vmatpush.msra.mxu0 %v1173
    %3478 = vmatpush.msra.mxu0 %v1165
    %3479 = vmatpush.msra.mxu0 %v1157
    %3480 = vmatpush.msra.mxu0 %v1149
    %3481 = vmatmul.f32.gmra.mxu0 %v3383
    %v3482 = vpop.f32.mrf.mxu0
    %v3483 = vadd.f32 0.0, %v3482
    %3484 = vdwg.mxu0
    %3485 = vmatpush.msra.mxu0 0.0
    %3486 = vmatpush.msra.mxu0 0.0
    %3487 = vmatpush.msra.mxu0 0.0
    %3488 = vmatpush.msra.mxu0 0.0
    %3489 = vmatpush.msra.mxu0 0.0
    %3490 = vmatpush.msra.mxu0 0.0
    %3491 = vmatpush.msra.mxu0 0.0
    %3492 = vmatpush.msra.mxu0 0.0
    %3493 = vmatpush.msra.mxu0 0.0
    %3494 = vmatpush.msra.mxu0 0.0
    %3495 = vmatpush.msra.mxu0 0.0
    %3496 = vmatpush.msra.mxu0 0.0
    %3497 = vmatpush.msra.mxu0 %v1174
    %3498 = vmatpush.msra.mxu0 %v1166
    %3499 = vmatpush.msra.mxu0 %v1158
    %3500 = vmatpush.msra.mxu0 %v1150
    %3501 = vmatmul.f32.gmra.mxu0 %v3383
    %v3502 = vpop.f32.mrf.mxu0
    %v3503 = vadd.f32 0.0, %v3502
    %3504 = vdwg.mxu0
    %3505 = vmatpush.msra.mxu0 0.0
    %3506 = vmatpush.msra.mxu0 0.0
    %3507 = vmatpush.msra.mxu0 0.0
    %3508 = vmatpush.msra.mxu0 0.0
    %3509 = vmatpush.msra.mxu0 0.0
    %3510 = vmatpush.msra.mxu0 0.0
    %3511 = vmatpush.msra.mxu0 0.0
    %3512 = vmatpush.msra.mxu0 0.0
    %3513 = vmatpush.msra.mxu0 0.0
    %3514 = vmatpush.msra.mxu0 0.0
    %3515 = vmatpush.msra.mxu0 0.0
    %3516 = vmatpush.msra.mxu0 0.0
    %3517 = vmatpush.msra.mxu0 %v1175
    %3518 = vmatpush.msra.mxu0 %v1167
    %3519 = vmatpush.msra.mxu0 %v1159
    %3520 = vmatpush.msra.mxu0 %v1151
    %3521 = vmatmul.f32.gmra.mxu0 %v3383
    %v3522 = vpop.f32.mrf.mxu0
    %v3523 = vadd.f32 0.0, %v3522
    %3524 = vdwg.mxu0
    %3525 = vmatpush.msra.mxu0 0.0
    %3526 = vmatpush.msra.mxu0 0.0
    %3527 = vmatpush.msra.mxu0 0.0
    %3528 = vmatpush.msra.mxu0 0.0
    %3529 = vmatpush.msra.mxu0 0.0
    %3530 = vmatpush.msra.mxu0 0.0
    %3531 = vmatpush.msra.mxu0 0.0
    %3532 = vmatpush.msra.mxu0 0.0
    %3533 = vmatpush.msra.mxu0 0.0
    %3534 = vmatpush.msra.mxu0 0.0
    %3535 = vmatpush.msra.mxu0 0.0
    %3536 = vmatpush.msra.mxu0 0.0
    %3537 = vmatpush.msra.mxu0 %v1176
    %3538 = vmatpush.msra.mxu0 %v1168
    %3539 = vmatpush.msra.mxu0 %v1160
    %3540 = vmatpush.msra.mxu0 %v1152
    %3541 = vmatmul.f32.gmra.mxu0 %v3383
    %v3542 = vpop.f32.mrf.mxu0
    %v3543 = vadd.f32 0.0, %v3542
    %3544 = vdwg.mxu0
    %v3545 = vadd.f32 %v3363, %v3403
    %v3546 = vadd.f32 %v3364, %v3423
    %v3547 = vadd.f32 %v3365, %v3443
    %v3548 = vadd.f32 %v3366, %v3463
    %v3549 = vadd.f32 %v3367, %v3483
    %v3550 = vadd.f32 %v3368, %v3503
    %v3551 = vadd.f32 %v3369, %v3523
    %v3552 = vadd.f32 %v3370, %v3543
    %3554 = vrot.lane.b32.xlu0 %v2263, 96
    %v3555 = vpop.permute.xlu0 %3554
    %v3557 = vmax.f32 %v2262, %v3555
    %3558 = vrot.lane.b32.xlu0 %v2263, 64
    %v3559 = vpop.permute.xlu0 %3558
    %v3561 = vmax.f32 %v3557, %v3559
    %3563 = vrot.lane.b32.xlu0 %v3561, 32
    %v3564 = vpop.permute.xlu0 %3563
    %v3565 = vsel %vm1358, %v3564, 0
    %3567 = vmatpush.msra.mxu0 0.0
    %3568 = vmatpush.msra.mxu0 0.0
    %3569 = vmatpush.msra.mxu0 0.0
    %3570 = vmatpush.msra.mxu0 0.0
    %3571 = vmatpush.msra.mxu0 0.0
    %3572 = vmatpush.msra.mxu0 0.0
    %3573 = vmatpush.msra.mxu0 0.0
    %3574 = vmatpush.msra.mxu0 0.0
    %3575 = vmatpush.msra.mxu0 0.0
    %3576 = vmatpush.msra.mxu0 0.0
    %3577 = vmatpush.msra.mxu0 0.0
    %3578 = vmatpush.msra.mxu0 0.0
    %3579 = vmatpush.msra.mxu0 %v1201
    %3580 = vmatpush.msra.mxu0 %v1193
    %3581 = vmatpush.msra.mxu0 %v1185
    %3582 = vmatpush.msra.mxu0 %v1177
    %3583 = vmatmul.f32.gmra.mxu0 %v3565
    %v3584 = vpop.f32.mrf.mxu0
    %v3585 = vadd.f32 0.0, %v3584
    %3586 = vdwg.mxu0
    %3587 = vmatpush.msra.mxu0 0.0
    %3588 = vmatpush.msra.mxu0 0.0
    %3589 = vmatpush.msra.mxu0 0.0
    %3590 = vmatpush.msra.mxu0 0.0
    %3591 = vmatpush.msra.mxu0 0.0
    %3592 = vmatpush.msra.mxu0 0.0
    %3593 = vmatpush.msra.mxu0 0.0
    %3594 = vmatpush.msra.mxu0 0.0
    %3595 = vmatpush.msra.mxu0 0.0
    %3596 = vmatpush.msra.mxu0 0.0
    %3597 = vmatpush.msra.mxu0 0.0
    %3598 = vmatpush.msra.mxu0 0.0
    %3599 = vmatpush.msra.mxu0 %v1202
    %3600 = vmatpush.msra.mxu0 %v1194
    %3601 = vmatpush.msra.mxu0 %v1186
    %3602 = vmatpush.msra.mxu0 %v1178
    %3603 = vmatmul.f32.gmra.mxu0 %v3565
    %v3604 = vpop.f32.mrf.mxu0
    %v3605 = vadd.f32 0.0, %v3604
    %3606 = vdwg.mxu0
    %3607 = vmatpush.msra.mxu0 0.0
    %3608 = vmatpush.msra.mxu0 0.0
    %3609 = vmatpush.msra.mxu0 0.0
    %3610 = vmatpush.msra.mxu0 0.0
    %3611 = vmatpush.msra.mxu0 0.0
    %3612 = vmatpush.msra.mxu0 0.0
    %3613 = vmatpush.msra.mxu0 0.0
    %3614 = vmatpush.msra.mxu0 0.0
    %3615 = vmatpush.msra.mxu0 0.0
    %3616 = vmatpush.msra.mxu0 0.0
    %3617 = vmatpush.msra.mxu0 0.0
    %3618 = vmatpush.msra.mxu0 0.0
    %3619 = vmatpush.msra.mxu0 %v1203
    %3620 = vmatpush.msra.mxu0 %v1195
    %3621 = vmatpush.msra.mxu0 %v1187
    %3622 = vmatpush.msra.mxu0 %v1179
    %3623 = vmatmul.f32.gmra.mxu0 %v3565
    %v3624 = vpop.f32.mrf.mxu0
    %v3625 = vadd.f32 0.0, %v3624
    %3626 = vdwg.mxu0
    %3627 = vmatpush.msra.mxu0 0.0
    %3628 = vmatpush.msra.mxu0 0.0
    %3629 = vmatpush.msra.mxu0 0.0
    %3630 = vmatpush.msra.mxu0 0.0
    %3631 = vmatpush.msra.mxu0 0.0
    %3632 = vmatpush.msra.mxu0 0.0
    %3633 = vmatpush.msra.mxu0 0.0
    %3634 = vmatpush.msra.mxu0 0.0
    %3635 = vmatpush.msra.mxu0 0.0
    %3636 = vmatpush.msra.mxu0 0.0
    %3637 = vmatpush.msra.mxu0 0.0
    %3638 = vmatpush.msra.mxu0 0.0
    %3639 = vmatpush.msra.mxu0 %v1204
    %3640 = vmatpush.msra.mxu0 %v1196
    %3641 = vmatpush.msra.mxu0 %v1188
    %3642 = vmatpush.msra.mxu0 %v1180
    %3643 = vmatmul.f32.gmra.mxu0 %v3565
    %v3644 = vpop.f32.mrf.mxu0
    %v3645 = vadd.f32 0.0, %v3644
    %3646 = vdwg.mxu0
    %3647 = vmatpush.msra.mxu0 0.0
    %3648 = vmatpush.msra.mxu0 0.0
    %3649 = vmatpush.msra.mxu0 0.0
    %3650 = vmatpush.msra.mxu0 0.0
    %3651 = vmatpush.msra.mxu0 0.0
    %3652 = vmatpush.msra.mxu0 0.0
    %3653 = vmatpush.msra.mxu0 0.0
    %3654 = vmatpush.msra.mxu0 0.0
    %3655 = vmatpush.msra.mxu0 0.0
    %3656 = vmatpush.msra.mxu0 0.0
    %3657 = vmatpush.msra.mxu0 0.0
    %3658 = vmatpush.msra.mxu0 0.0
    %3659 = vmatpush.msra.mxu0 %v1205
    %3660 = vmatpush.msra.mxu0 %v1197
    %3661 = vmatpush.msra.mxu0 %v1189
    %3662 = vmatpush.msra.mxu0 %v1181
    %3663 = vmatmul.f32.gmra.mxu0 %v3565
    %v3664 = vpop.f32.mrf.mxu0
    %v3665 = vadd.f32 0.0, %v3664
    %3666 = vdwg.mxu0
    %3667 = vmatpush.msra.mxu0 0.0
    %3668 = vmatpush.msra.mxu0 0.0
    %3669 = vmatpush.msra.mxu0 0.0
    %3670 = vmatpush.msra.mxu0 0.0
    %3671 = vmatpush.msra.mxu0 0.0
    %3672 = vmatpush.msra.mxu0 0.0
    %3673 = vmatpush.msra.mxu0 0.0
    %3674 = vmatpush.msra.mxu0 0.0
    %3675 = vmatpush.msra.mxu0 0.0
    %3676 = vmatpush.msra.mxu0 0.0
    %3677 = vmatpush.msra.mxu0 0.0
    %3678 = vmatpush.msra.mxu0 0.0
    %3679 = vmatpush.msra.mxu0 %v1206
    %3680 = vmatpush.msra.mxu0 %v1198
    %3681 = vmatpush.msra.mxu0 %v1190
    %3682 = vmatpush.msra.mxu0 %v1182
    %3683 = vmatmul.f32.gmra.mxu0 %v3565
    %v3684 = vpop.f32.mrf.mxu0
    %v3685 = vadd.f32 0.0, %v3684
    %3686 = vdwg.mxu0
    %3687 = vmatpush.msra.mxu0 0.0
    %3688 = vmatpush.msra.mxu0 0.0
    %3689 = vmatpush.msra.mxu0 0.0
    %3690 = vmatpush.msra.mxu0 0.0
    %3691 = vmatpush.msra.mxu0 0.0
    %3692 = vmatpush.msra.mxu0 0.0
    %3693 = vmatpush.msra.mxu0 0.0
    %3694 = vmatpush.msra.mxu0 0.0
    %3695 = vmatpush.msra.mxu0 0.0
    %3696 = vmatpush.msra.mxu0 0.0
    %3697 = vmatpush.msra.mxu0 0.0
    %3698 = vmatpush.msra.mxu0 0.0
    %3699 = vmatpush.msra.mxu0 %v1207
    %3700 = vmatpush.msra.mxu0 %v1199
    %3701 = vmatpush.msra.mxu0 %v1191
    %3702 = vmatpush.msra.mxu0 %v1183
    %3703 = vmatmul.f32.gmra.mxu0 %v3565
    %v3704 = vpop.f32.mrf.mxu0
    %v3705 = vadd.f32 0.0, %v3704
    %3706 = vdwg.mxu0
    %3707 = vmatpush.msra.mxu0 0.0
    %3708 = vmatpush.msra.mxu0 0.0
    %3709 = vmatpush.msra.mxu0 0.0
    %3710 = vmatpush.msra.mxu0 0.0
    %3711 = vmatpush.msra.mxu0 0.0
    %3712 = vmatpush.msra.mxu0 0.0
    %3713 = vmatpush.msra.mxu0 0.0
    %3714 = vmatpush.msra.mxu0 0.0
    %3715 = vmatpush.msra.mxu0 0.0
    %3716 = vmatpush.msra.mxu0 0.0
    %3717 = vmatpush.msra.mxu0 0.0
    %3718 = vmatpush.msra.mxu0 0.0
    %3719 = vmatpush.msra.mxu0 %v1208
    %3720 = vmatpush.msra.mxu0 %v1200
    %3721 = vmatpush.msra.mxu0 %v1192
    %3722 = vmatpush.msra.mxu0 %v1184
    %3723 = vmatmul.f32.gmra.mxu0 %v3565
    %v3724 = vpop.f32.mrf.mxu0
    %v3725 = vadd.f32 0.0, %v3724
    %3726 = vdwg.mxu0
    %v3727 = vadd.f32 %v3545, %v3585
    %v3728 = vadd.f32 %v3546, %v3605
    %v3729 = vadd.f32 %v3547, %v3625
    %v3730 = vadd.f32 %v3548, %v3645
    %v3731 = vadd.f32 %v3549, %v3665
    %v3732 = vadd.f32 %v3550, %v3685
    %v3733 = vadd.f32 %v3551, %v3705
    %v3734 = vadd.f32 %v3552, %v3725
    %3736 = vrot.lane.b32.xlu0 %v2272, 96
    %v3737 = vpop.permute.xlu0 %3736
    %v3739 = vmax.f32 %v2271, %v3737
    %3740 = vrot.lane.b32.xlu0 %v2272, 64
    %v3741 = vpop.permute.xlu0 %3740
    %v3743 = vmax.f32 %v3739, %v3741
    %3745 = vrot.lane.b32.xlu0 %v3743, 32
    %v3746 = vpop.permute.xlu0 %3745
    %v3747 = vsel %vm1358, %v3746, 0
    %3749 = vmatpush.msra.mxu0 0.0
    %3750 = vmatpush.msra.mxu0 0.0
    %3751 = vmatpush.msra.mxu0 0.0
    %3752 = vmatpush.msra.mxu0 0.0
    %3753 = vmatpush.msra.mxu0 0.0
    %3754 = vmatpush.msra.mxu0 0.0
    %3755 = vmatpush.msra.mxu0 0.0
    %3756 = vmatpush.msra.mxu0 0.0
    %3757 = vmatpush.msra.mxu0 0.0
    %3758 = vmatpush.msra.mxu0 0.0
    %3759 = vmatpush.msra.mxu0 0.0
    %3760 = vmatpush.msra.mxu0 0.0
    %3761 = vmatpush.msra.mxu0 %v1233
    %3762 = vmatpush.msra.mxu0 %v1225
    %3763 = vmatpush.msra.mxu0 %v1217
    %3764 = vmatpush.msra.mxu0 %v1209
    %3765 = vmatmul.f32.gmra.mxu0 %v3747
    %v3766 = vpop.f32.mrf.mxu0
    %v3767 = vadd.f32 0.0, %v3766
    %3768 = vdwg.mxu0
    %3769 = vmatpush.msra.mxu0 0.0
    %3770 = vmatpush.msra.mxu0 0.0
    %3771 = vmatpush.msra.mxu0 0.0
    %3772 = vmatpush.msra.mxu0 0.0
    %3773 = vmatpush.msra.mxu0 0.0
    %3774 = vmatpush.msra.mxu0 0.0
    %3775 = vmatpush.msra.mxu0 0.0
    %3776 = vmatpush.msra.mxu0 0.0
    %3777 = vmatpush.msra.mxu0 0.0
    %3778 = vmatpush.msra.mxu0 0.0
    %3779 = vmatpush.msra.mxu0 0.0
    %3780 = vmatpush.msra.mxu0 0.0
    %3781 = vmatpush.msra.mxu0 %v1234
    %3782 = vmatpush.msra.mxu0 %v1226
    %3783 = vmatpush.msra.mxu0 %v1218
    %3784 = vmatpush.msra.mxu0 %v1210
    %3785 = vmatmul.f32.gmra.mxu0 %v3747
    %v3786 = vpop.f32.mrf.mxu0
    %v3787 = vadd.f32 0.0, %v3786
    %3788 = vdwg.mxu0
    %3789 = vmatpush.msra.mxu0 0.0
    %3790 = vmatpush.msra.mxu0 0.0
    %3791 = vmatpush.msra.mxu0 0.0
    %3792 = vmatpush.msra.mxu0 0.0
    %3793 = vmatpush.msra.mxu0 0.0
    %3794 = vmatpush.msra.mxu0 0.0
    %3795 = vmatpush.msra.mxu0 0.0
    %3796 = vmatpush.msra.mxu0 0.0
    %3797 = vmatpush.msra.mxu0 0.0
    %3798 = vmatpush.msra.mxu0 0.0
    %3799 = vmatpush.msra.mxu0 0.0
    %3800 = vmatpush.msra.mxu0 0.0
    %3801 = vmatpush.msra.mxu0 %v1235
    %3802 = vmatpush.msra.mxu0 %v1227
    %3803 = vmatpush.msra.mxu0 %v1219
    %3804 = vmatpush.msra.mxu0 %v1211
    %3805 = vmatmul.f32.gmra.mxu0 %v3747
    %v3806 = vpop.f32.mrf.mxu0
    %v3807 = vadd.f32 0.0, %v3806
    %3808 = vdwg.mxu0
    %3809 = vmatpush.msra.mxu0 0.0
    %3810 = vmatpush.msra.mxu0 0.0
    %3811 = vmatpush.msra.mxu0 0.0
    %3812 = vmatpush.msra.mxu0 0.0
    %3813 = vmatpush.msra.mxu0 0.0
    %3814 = vmatpush.msra.mxu0 0.0
    %3815 = vmatpush.msra.mxu0 0.0
    %3816 = vmatpush.msra.mxu0 0.0
    %3817 = vmatpush.msra.mxu0 0.0
    %3818 = vmatpush.msra.mxu0 0.0
    %3819 = vmatpush.msra.mxu0 0.0
    %3820 = vmatpush.msra.mxu0 0.0
    %3821 = vmatpush.msra.mxu0 %v1236
    %3822 = vmatpush.msra.mxu0 %v1228
    %3823 = vmatpush.msra.mxu0 %v1220
    %3824 = vmatpush.msra.mxu0 %v1212
    %3825 = vmatmul.f32.gmra.mxu0 %v3747
    %v3826 = vpop.f32.mrf.mxu0
    %v3827 = vadd.f32 0.0, %v3826
    %3828 = vdwg.mxu0
    %3829 = vmatpush.msra.mxu0 0.0
    %3830 = vmatpush.msra.mxu0 0.0
    %3831 = vmatpush.msra.mxu0 0.0
    %3832 = vmatpush.msra.mxu0 0.0
    %3833 = vmatpush.msra.mxu0 0.0
    %3834 = vmatpush.msra.mxu0 0.0
    %3835 = vmatpush.msra.mxu0 0.0
    %3836 = vmatpush.msra.mxu0 0.0
    %3837 = vmatpush.msra.mxu0 0.0
    %3838 = vmatpush.msra.mxu0 0.0
    %3839 = vmatpush.msra.mxu0 0.0
    %3840 = vmatpush.msra.mxu0 0.0
    %3841 = vmatpush.msra.mxu0 %v1237
    %3842 = vmatpush.msra.mxu0 %v1229
    %3843 = vmatpush.msra.mxu0 %v1221
    %3844 = vmatpush.msra.mxu0 %v1213
    %3845 = vmatmul.f32.gmra.mxu0 %v3747
    %v3846 = vpop.f32.mrf.mxu0
    %v3847 = vadd.f32 0.0, %v3846
    %3848 = vdwg.mxu0
    %3849 = vmatpush.msra.mxu0 0.0
    %3850 = vmatpush.msra.mxu0 0.0
    %3851 = vmatpush.msra.mxu0 0.0
    %3852 = vmatpush.msra.mxu0 0.0
    %3853 = vmatpush.msra.mxu0 0.0
    %3854 = vmatpush.msra.mxu0 0.0
    %3855 = vmatpush.msra.mxu0 0.0
    %3856 = vmatpush.msra.mxu0 0.0
    %3857 = vmatpush.msra.mxu0 0.0
    %3858 = vmatpush.msra.mxu0 0.0
    %3859 = vmatpush.msra.mxu0 0.0
    %3860 = vmatpush.msra.mxu0 0.0
    %3861 = vmatpush.msra.mxu0 %v1238
    %3862 = vmatpush.msra.mxu0 %v1230
    %3863 = vmatpush.msra.mxu0 %v1222
    %3864 = vmatpush.msra.mxu0 %v1214
    %3865 = vmatmul.f32.gmra.mxu0 %v3747
    %v3866 = vpop.f32.mrf.mxu0
    %v3867 = vadd.f32 0.0, %v3866
    %3868 = vdwg.mxu0
    %3869 = vmatpush.msra.mxu0 0.0
    %3870 = vmatpush.msra.mxu0 0.0
    %3871 = vmatpush.msra.mxu0 0.0
    %3872 = vmatpush.msra.mxu0 0.0
    %3873 = vmatpush.msra.mxu0 0.0
    %3874 = vmatpush.msra.mxu0 0.0
    %3875 = vmatpush.msra.mxu0 0.0
    %3876 = vmatpush.msra.mxu0 0.0
    %3877 = vmatpush.msra.mxu0 0.0
    %3878 = vmatpush.msra.mxu0 0.0
    %3879 = vmatpush.msra.mxu0 0.0
    %3880 = vmatpush.msra.mxu0 0.0
    %3881 = vmatpush.msra.mxu0 %v1239
    %3882 = vmatpush.msra.mxu0 %v1231
    %3883 = vmatpush.msra.mxu0 %v1223
    %3884 = vmatpush.msra.mxu0 %v1215
    %3885 = vmatmul.f32.gmra.mxu0 %v3747
    %v3886 = vpop.f32.mrf.mxu0
    %v3887 = vadd.f32 0.0, %v3886
    %3888 = vdwg.mxu0
    %3889 = vmatpush.msra.mxu0 0.0
    %3890 = vmatpush.msra.mxu0 0.0
    %3891 = vmatpush.msra.mxu0 0.0
    %3892 = vmatpush.msra.mxu0 0.0
    %3893 = vmatpush.msra.mxu0 0.0
    %3894 = vmatpush.msra.mxu0 0.0
    %3895 = vmatpush.msra.mxu0 0.0
    %3896 = vmatpush.msra.mxu0 0.0
    %3897 = vmatpush.msra.mxu0 0.0
    %3898 = vmatpush.msra.mxu0 0.0
    %3899 = vmatpush.msra.mxu0 0.0
    %3900 = vmatpush.msra.mxu0 0.0
    %3901 = vmatpush.msra.mxu0 %v1240
    %3902 = vmatpush.msra.mxu0 %v1232
    %3903 = vmatpush.msra.mxu0 %v1224
    %3904 = vmatpush.msra.mxu0 %v1216
    %3905 = vmatmul.f32.gmra.mxu0 %v3747
    %v3906 = vpop.f32.mrf.mxu0
    %v3907 = vadd.f32 0.0, %v3906
    %3908 = vdwg.mxu0
    %v3909 = vadd.f32 %v3727, %v3767
    %v3910 = vadd.f32 %v3728, %v3787
    %v3911 = vadd.f32 %v3729, %v3807
    %v3912 = vadd.f32 %v3730, %v3827
    %v3913 = vadd.f32 %v3731, %v3847
    %v3914 = vadd.f32 %v3732, %v3867
    %v3915 = vadd.f32 %v3733, %v3887
    %v3916 = vadd.f32 %v3734, %v3907
    %v3917 = vld [vmem:[%s6] sm:$0xff]
    %v3919 = vperm.slane %v3917, 0
    %v3920 = vperm.slane %v3917, 1
    %v3921 = vperm.slane %v3917, 2
    %v3922 = vperm.slane %v3917, 3
    %v3923 = vperm.slane %v3917, 4
    %v3924 = vperm.slane %v3917, 5
    %v3925 = vperm.slane %v3917, 6
    %v3926 = vperm.slane %v3917, 7
    %v3935 = vadd.f32 %v3909, %v3919
    %v3936 = vadd.f32 %v3910, %v3920
    %v3937 = vadd.f32 %v3911, %v3921
    %v3938 = vadd.f32 %v3912, %v3922
    %v3939 = vadd.f32 %v3913, %v3923
    %v3940 = vadd.f32 %v3914, %v3924
    %v3941 = vadd.f32 %v3915, %v3925
    %v3942 = vadd.f32 %v3916, %v3926
    %v3943 = vld [vmem:[%s7] sm:$0xff]
    %v3944 = vld [vmem:[%s7 + $0x8] sm:$0xff]
    %v3945 = vld [vmem:[%s7 + $0x10] sm:$0xff]
    %v3946 = vld [vmem:[%s7 + $0x18] sm:$0xff]
    %v3947 = vld [vmem:[%s7 + $0x20] sm:$0xff]
    %v3948 = vld [vmem:[%s7 + $0x28] sm:$0xff]
    %v3949 = vld [vmem:[%s7 + $0x30] sm:$0xff]
    %v3950 = vld [vmem:[%s7 + $0x38] sm:$0xff]
    %v3951 = vld [vmem:[%s7 + $0x40] sm:$0xff]
    %v3952 = vld [vmem:[%s7 + $0x48] sm:$0xff]
    %v3953 = vld [vmem:[%s7 + $0x50] sm:$0xff]
    %v3954 = vld [vmem:[%s7 + $0x58] sm:$0xff]
    %v3955 = vld [vmem:[%s7 + $0x60] sm:$0xff]
    %v3956 = vld [vmem:[%s7 + $0x68] sm:$0xff]
    %v3957 = vld [vmem:[%s7 + $0x70] sm:$0xff]
    %v3958 = vld [vmem:[%s7 + $0x78] sm:$0xff]
    %v3959 = vld [vmem:[%s7 + $0x80] sm:$0xff]
    %v3960 = vld [vmem:[%s7 + $0x88] sm:$0xff]
    %v3961 = vld [vmem:[%s7 + $0x90] sm:$0xff]
    %v3962 = vld [vmem:[%s7 + $0x98] sm:$0xff]
    %v3963 = vld [vmem:[%s7 + $0xa0] sm:$0xff]
    %v3964 = vld [vmem:[%s7 + $0xa8] sm:$0xff]
    %v3965 = vld [vmem:[%s7 + $0xb0] sm:$0xff]
    %v3966 = vld [vmem:[%s7 + $0xb8] sm:$0xff]
    %v3967 = vld [vmem:[%s7 + $0xc0] sm:$0xff]
    %v3968 = vld [vmem:[%s7 + $0xc8] sm:$0xff]
    %v3969 = vld [vmem:[%s7 + $0xd0] sm:$0xff]
    %v3970 = vld [vmem:[%s7 + $0xd8] sm:$0xff]
    %v3971 = vld [vmem:[%s7 + $0xe0] sm:$0xff]
    %v3972 = vld [vmem:[%s7 + $0xe8] sm:$0xff]
    %v3973 = vld [vmem:[%s7 + $0xf0] sm:$0xff]
    %v3974 = vld [vmem:[%s7 + $0xf8] sm:$0xff]
    %v3975 = vld [vmem:[%s7 + $0x100] sm:$0xff]
    %v3976 = vld [vmem:[%s7 + $0x108] sm:$0xff]
    %v3977 = vld [vmem:[%s7 + $0x110] sm:$0xff]
    %v3978 = vld [vmem:[%s7 + $0x118] sm:$0xff]
    %v3979 = vld [vmem:[%s7 + $0x120] sm:$0xff]
    %v3980 = vld [vmem:[%s7 + $0x128] sm:$0xff]
    %v3981 = vld [vmem:[%s7 + $0x130] sm:$0xff]
    %v3982 = vld [vmem:[%s7 + $0x138] sm:$0xff]
    %v3983 = vld [vmem:[%s7 + $0x140] sm:$0xff]
    %v3984 = vld [vmem:[%s7 + $0x148] sm:$0xff]
    %v3985 = vld [vmem:[%s7 + $0x150] sm:$0xff]
    %v3986 = vld [vmem:[%s7 + $0x158] sm:$0xff]
    %v3987 = vld [vmem:[%s7 + $0x160] sm:$0xff]
    %v3988 = vld [vmem:[%s7 + $0x168] sm:$0xff]
    %v3989 = vld [vmem:[%s7 + $0x170] sm:$0xff]
    %v3990 = vld [vmem:[%s7 + $0x178] sm:$0xff]
    %v3991 = vld [vmem:[%s7 + $0x180] sm:$0xff]
    %v3992 = vld [vmem:[%s7 + $0x188] sm:$0xff]
    %v3993 = vld [vmem:[%s7 + $0x190] sm:$0xff]
    %v3994 = vld [vmem:[%s7 + $0x198] sm:$0xff]
    %v3995 = vld [vmem:[%s7 + $0x1a0] sm:$0xff]
    %v3996 = vld [vmem:[%s7 + $0x1a8] sm:$0xff]
    %v3997 = vld [vmem:[%s7 + $0x1b0] sm:$0xff]
    %v3998 = vld [vmem:[%s7 + $0x1b8] sm:$0xff]
    %v3999 = vld [vmem:[%s7 + $0x1c0] sm:$0xff]
    %v4000 = vld [vmem:[%s7 + $0x1c8] sm:$0xff]
    %v4001 = vld [vmem:[%s7 + $0x1d0] sm:$0xff]
    %v4002 = vld [vmem:[%s7 + $0x1d8] sm:$0xff]
    %v4003 = vld [vmem:[%s7 + $0x1e0] sm:$0xff]
    %v4004 = vld [vmem:[%s7 + $0x1e8] sm:$0xff]
    %v4005 = vld [vmem:[%s7 + $0x1f0] sm:$0xff]
    %v4006 = vld [vmem:[%s7 + $0x1f8] sm:$0xff]
    %v4007 = vld [vmem:[%s7 + $0x200] sm:$0xff]
    %v4008 = vld [vmem:[%s7 + $0x208] sm:$0xff]
    %v4009 = vld [vmem:[%s7 + $0x210] sm:$0xff]
    %v4010 = vld [vmem:[%s7 + $0x218] sm:$0xff]
    %v4011 = vld [vmem:[%s7 + $0x220] sm:$0xff]
    %v4012 = vld [vmem:[%s7 + $0x228] sm:$0xff]
    %v4013 = vld [vmem:[%s7 + $0x230] sm:$0xff]
    %v4014 = vld [vmem:[%s7 + $0x238] sm:$0xff]
    %v4015 = vld [vmem:[%s7 + $0x240] sm:$0xff]
    %v4016 = vld [vmem:[%s7 + $0x248] sm:$0xff]
    %v4017 = vld [vmem:[%s7 + $0x250] sm:$0xff]
    %v4018 = vld [vmem:[%s7 + $0x258] sm:$0xff]
    %v4019 = vld [vmem:[%s7 + $0x260] sm:$0xff]
    %v4020 = vld [vmem:[%s7 + $0x268] sm:$0xff]
    %v4021 = vld [vmem:[%s7 + $0x270] sm:$0xff]
    %v4022 = vld [vmem:[%s7 + $0x278] sm:$0xff]
    %v4023 = vld [vmem:[%s7 + $0x280] sm:$0xff]
    %v4024 = vld [vmem:[%s7 + $0x288] sm:$0xff]
    %v4025 = vld [vmem:[%s7 + $0x290] sm:$0xff]
    %v4026 = vld [vmem:[%s7 + $0x298] sm:$0xff]
    %v4027 = vld [vmem:[%s7 + $0x2a0] sm:$0xff]
    %v4028 = vld [vmem:[%s7 + $0x2a8] sm:$0xff]
    %v4029 = vld [vmem:[%s7 + $0x2b0] sm:$0xff]
    %v4030 = vld [vmem:[%s7 + $0x2b8] sm:$0xff]
    %v4031 = vld [vmem:[%s7 + $0x2c0] sm:$0xff]
    %v4032 = vld [vmem:[%s7 + $0x2c8] sm:$0xff]
    %v4033 = vld [vmem:[%s7 + $0x2d0] sm:$0xff]
    %v4034 = vld [vmem:[%s7 + $0x2d8] sm:$0xff]
    %v4035 = vld [vmem:[%s7 + $0x2e0] sm:$0xff]
    %v4036 = vld [vmem:[%s7 + $0x2e8] sm:$0xff]
    %v4037 = vld [vmem:[%s7 + $0x2f0] sm:$0xff]
    %v4038 = vld [vmem:[%s7 + $0x2f8] sm:$0xff]
    %v4039 = vld [vmem:[%s7 + $0x300] sm:$0xff]
    %v4040 = vld [vmem:[%s7 + $0x308] sm:$0xff]
    %v4041 = vld [vmem:[%s7 + $0x310] sm:$0xff]
    %v4042 = vld [vmem:[%s7 + $0x318] sm:$0xff]
    %v4043 = vld [vmem:[%s7 + $0x320] sm:$0xff]
    %v4044 = vld [vmem:[%s7 + $0x328] sm:$0xff]
    %v4045 = vld [vmem:[%s7 + $0x330] sm:$0xff]
    %v4046 = vld [vmem:[%s7 + $0x338] sm:$0xff]
    %v4047 = vld [vmem:[%s7 + $0x340] sm:$0xff]
    %v4048 = vld [vmem:[%s7 + $0x348] sm:$0xff]
    %v4049 = vld [vmem:[%s7 + $0x350] sm:$0xff]
    %v4050 = vld [vmem:[%s7 + $0x358] sm:$0xff]
    %v4051 = vld [vmem:[%s7 + $0x360] sm:$0xff]
    %v4052 = vld [vmem:[%s7 + $0x368] sm:$0xff]
    %v4053 = vld [vmem:[%s7 + $0x370] sm:$0xff]
    %v4054 = vld [vmem:[%s7 + $0x378] sm:$0xff]
    %v4055 = vld [vmem:[%s7 + $0x380] sm:$0xff]
    %v4056 = vld [vmem:[%s7 + $0x388] sm:$0xff]
    %v4057 = vld [vmem:[%s7 + $0x390] sm:$0xff]
    %v4058 = vld [vmem:[%s7 + $0x398] sm:$0xff]
    %v4059 = vld [vmem:[%s7 + $0x3a0] sm:$0xff]
    %v4060 = vld [vmem:[%s7 + $0x3a8] sm:$0xff]
    %v4061 = vld [vmem:[%s7 + $0x3b0] sm:$0xff]
    %v4062 = vld [vmem:[%s7 + $0x3b8] sm:$0xff]
    %v4063 = vld [vmem:[%s7 + $0x3c0] sm:$0xff]
    %v4064 = vld [vmem:[%s7 + $0x3c8] sm:$0xff]
    %v4065 = vld [vmem:[%s7 + $0x3d0] sm:$0xff]
    %v4066 = vld [vmem:[%s7 + $0x3d8] sm:$0xff]
    %v4067 = vld [vmem:[%s7 + $0x3e0] sm:$0xff]
    %v4068 = vld [vmem:[%s7 + $0x3e8] sm:$0xff]
    %v4069 = vld [vmem:[%s7 + $0x3f0] sm:$0xff]
    %v4070 = vld [vmem:[%s7 + $0x3f8] sm:$0xff]
    %v4071 = vld [vmem:[%s8] sm:$0x1]
    %v4073 = vperm.slane %v4071, 0
    %4075 = vmatpush.msra.mxu0 %v3958
    %4076 = vmatpush.msra.mxu0 %v3957
    %4077 = vmatpush.msra.mxu0 %v3956
    %4078 = vmatpush.msra.mxu0 %v3955
    %4079 = vmatpush.msra.mxu0 %v3954
    %4080 = vmatpush.msra.mxu0 %v3953
    %4081 = vmatpush.msra.mxu0 %v3952
    %4082 = vmatpush.msra.mxu0 %v3951
    %4083 = vmatpush.msra.mxu0 %v3950
    %4084 = vmatpush.msra.mxu0 %v3949
    %4085 = vmatpush.msra.mxu0 %v3948
    %4086 = vmatpush.msra.mxu0 %v3947
    %4087 = vmatpush.msra.mxu0 %v3946
    %4088 = vmatpush.msra.mxu0 %v3945
    %4089 = vmatpush.msra.mxu0 %v3944
    %4090 = vmatpush.msra.mxu0 %v3943
    %4091 = vmatmul.f32.gmra.mxu0 %v3935
    %v4092 = vpop.f32.mrf.mxu0
    %v4093 = vadd.f32 %v4073, %v4092
    %4094 = vdwg.mxu0
    %4095 = vmatpush.msra.mxu0 %v3974
    %4096 = vmatpush.msra.mxu0 %v3973
    %4097 = vmatpush.msra.mxu0 %v3972
    %4098 = vmatpush.msra.mxu0 %v3971
    %4099 = vmatpush.msra.mxu0 %v3970
    %4100 = vmatpush.msra.mxu0 %v3969
    %4101 = vmatpush.msra.mxu0 %v3968
    %4102 = vmatpush.msra.mxu0 %v3967
    %4103 = vmatpush.msra.mxu0 %v3966
    %4104 = vmatpush.msra.mxu0 %v3965
    %4105 = vmatpush.msra.mxu0 %v3964
    %4106 = vmatpush.msra.mxu0 %v3963
    %4107 = vmatpush.msra.mxu0 %v3962
    %4108 = vmatpush.msra.mxu0 %v3961
    %4109 = vmatpush.msra.mxu0 %v3960
    %4110 = vmatpush.msra.mxu0 %v3959
    %4111 = vmatmul.f32.gmra.mxu0 %v3936
    %v4112 = vpop.f32.mrf.mxu0
    %v4113 = vadd.f32 %v4093, %v4112
    %4114 = vdwg.mxu0
    %4115 = vmatpush.msra.mxu0 %v3990
    %4116 = vmatpush.msra.mxu0 %v3989
    %4117 = vmatpush.msra.mxu0 %v3988
    %4118 = vmatpush.msra.mxu0 %v3987
    %4119 = vmatpush.msra.mxu0 %v3986
    %4120 = vmatpush.msra.mxu0 %v3985
    %4121 = vmatpush.msra.mxu0 %v3984
    %4122 = vmatpush.msra.mxu0 %v3983
    %4123 = vmatpush.msra.mxu0 %v3982
    %4124 = vmatpush.msra.mxu0 %v3981
    %4125 = vmatpush.msra.mxu0 %v3980
    %4126 = vmatpush.msra.mxu0 %v3979
    %4127 = vmatpush.msra.mxu0 %v3978
    %4128 = vmatpush.msra.mxu0 %v3977
    %4129 = vmatpush.msra.mxu0 %v3976
    %4130 = vmatpush.msra.mxu0 %v3975
    %4131 = vmatmul.f32.gmra.mxu0 %v3937
    %v4132 = vpop.f32.mrf.mxu0
    %v4133 = vadd.f32 %v4113, %v4132
    %4134 = vdwg.mxu0
    %4135 = vmatpush.msra.mxu0 %v4006
    %4136 = vmatpush.msra.mxu0 %v4005
    %4137 = vmatpush.msra.mxu0 %v4004
    %4138 = vmatpush.msra.mxu0 %v4003
    %4139 = vmatpush.msra.mxu0 %v4002
    %4140 = vmatpush.msra.mxu0 %v4001
    %4141 = vmatpush.msra.mxu0 %v4000
    %4142 = vmatpush.msra.mxu0 %v3999
    %4143 = vmatpush.msra.mxu0 %v3998
    %4144 = vmatpush.msra.mxu0 %v3997
    %4145 = vmatpush.msra.mxu0 %v3996
    %4146 = vmatpush.msra.mxu0 %v3995
    %4147 = vmatpush.msra.mxu0 %v3994
    %4148 = vmatpush.msra.mxu0 %v3993
    %4149 = vmatpush.msra.mxu0 %v3992
    %4150 = vmatpush.msra.mxu0 %v3991
    %4151 = vmatmul.f32.gmra.mxu0 %v3938
    %v4152 = vpop.f32.mrf.mxu0
    %v4153 = vadd.f32 %v4133, %v4152
    %4154 = vdwg.mxu0
    %4155 = vmatpush.msra.mxu0 %v4022
    %4156 = vmatpush.msra.mxu0 %v4021
    %4157 = vmatpush.msra.mxu0 %v4020
    %4158 = vmatpush.msra.mxu0 %v4019
    %4159 = vmatpush.msra.mxu0 %v4018
    %4160 = vmatpush.msra.mxu0 %v4017
    %4161 = vmatpush.msra.mxu0 %v4016
    %4162 = vmatpush.msra.mxu0 %v4015
    %4163 = vmatpush.msra.mxu0 %v4014
    %4164 = vmatpush.msra.mxu0 %v4013
    %4165 = vmatpush.msra.mxu0 %v4012
    %4166 = vmatpush.msra.mxu0 %v4011
    %4167 = vmatpush.msra.mxu0 %v4010
    %4168 = vmatpush.msra.mxu0 %v4009
    %4169 = vmatpush.msra.mxu0 %v4008
    %4170 = vmatpush.msra.mxu0 %v4007
    %4171 = vmatmul.f32.gmra.mxu0 %v3939
    %v4172 = vpop.f32.mrf.mxu0
    %v4173 = vadd.f32 %v4153, %v4172
    %4174 = vdwg.mxu0
    %4175 = vmatpush.msra.mxu0 %v4038
    %4176 = vmatpush.msra.mxu0 %v4037
    %4177 = vmatpush.msra.mxu0 %v4036
    %4178 = vmatpush.msra.mxu0 %v4035
    %4179 = vmatpush.msra.mxu0 %v4034
    %4180 = vmatpush.msra.mxu0 %v4033
    %4181 = vmatpush.msra.mxu0 %v4032
    %4182 = vmatpush.msra.mxu0 %v4031
    %4183 = vmatpush.msra.mxu0 %v4030
    %4184 = vmatpush.msra.mxu0 %v4029
    %4185 = vmatpush.msra.mxu0 %v4028
    %4186 = vmatpush.msra.mxu0 %v4027
    %4187 = vmatpush.msra.mxu0 %v4026
    %4188 = vmatpush.msra.mxu0 %v4025
    %4189 = vmatpush.msra.mxu0 %v4024
    %4190 = vmatpush.msra.mxu0 %v4023
    %4191 = vmatmul.f32.gmra.mxu0 %v3940
    %v4192 = vpop.f32.mrf.mxu0
    %v4193 = vadd.f32 %v4173, %v4192
    %4194 = vdwg.mxu0
    %4195 = vmatpush.msra.mxu0 %v4054
    %4196 = vmatpush.msra.mxu0 %v4053
    %4197 = vmatpush.msra.mxu0 %v4052
    %4198 = vmatpush.msra.mxu0 %v4051
    %4199 = vmatpush.msra.mxu0 %v4050
    %4200 = vmatpush.msra.mxu0 %v4049
    %4201 = vmatpush.msra.mxu0 %v4048
    %4202 = vmatpush.msra.mxu0 %v4047
    %4203 = vmatpush.msra.mxu0 %v4046
    %4204 = vmatpush.msra.mxu0 %v4045
    %4205 = vmatpush.msra.mxu0 %v4044
    %4206 = vmatpush.msra.mxu0 %v4043
    %4207 = vmatpush.msra.mxu0 %v4042
    %4208 = vmatpush.msra.mxu0 %v4041
    %4209 = vmatpush.msra.mxu0 %v4040
    %4210 = vmatpush.msra.mxu0 %v4039
    %4211 = vmatmul.f32.gmra.mxu0 %v3941
    %v4212 = vpop.f32.mrf.mxu0
    %v4213 = vadd.f32 %v4193, %v4212
    %4214 = vdwg.mxu0
    %4215 = vmatpush.msra.mxu0 %v4070
    %4216 = vmatpush.msra.mxu0 %v4069
    %4217 = vmatpush.msra.mxu0 %v4068
    %4218 = vmatpush.msra.mxu0 %v4067
    %4219 = vmatpush.msra.mxu0 %v4066
    %4220 = vmatpush.msra.mxu0 %v4065
    %4221 = vmatpush.msra.mxu0 %v4064
    %4222 = vmatpush.msra.mxu0 %v4063
    %4223 = vmatpush.msra.mxu0 %v4062
    %4224 = vmatpush.msra.mxu0 %v4061
    %4225 = vmatpush.msra.mxu0 %v4060
    %4226 = vmatpush.msra.mxu0 %v4059
    %4227 = vmatpush.msra.mxu0 %v4058
    %4228 = vmatpush.msra.mxu0 %v4057
    %4229 = vmatpush.msra.mxu0 %v4056
    %4230 = vmatpush.msra.mxu0 %v4055
    %4231 = vmatmul.f32.gmra.mxu0 %v3942
    %v4232 = vpop.f32.mrf.mxu0
    %v4233 = vadd.f32 %v4213, %v4232
    %4234 = vdwg.mxu0
    %vm4235 = vcmask 33792
    %4236 = vst.msk [vmem:[#allocation5] sm:$0x3] %vm4235, %v4233
    // Predicated region
    $region42: #{_lambda_.1} parent=1 // pred_check
      _
    $region43: #{_lambda_.1} parent=1 // pred_check_branch
      %4238 = sbr.rel (0) target = $region45
    $region44: #{_lambda_.1} parent=1 // pred_region
      %4240 = vsyncadd [#allocation4], 0
      %s4242 = sshll.u32 [#allocation5], 4
      %s4243 = int_to_ptr.vmem [resolvable:$true] %s4242
      %s4244 = sshll.u32 %s9, 4
      %s4245 = int_to_ptr.hbm [resolvable:$true] %s4244
      %4247 = dma.vmem_to_hbm [thread:$0]  %s4243, 32, %s4245, [#allocation4]
    $region45: #{_lambda_.1} parent=1 // pred_fallthru
      _
    // Predicated region
    $region46: #{_lambda_.1} parent=1 // pred_check
      _
    $region47: #{_lambda_.1} parent=1 // pred_check_branch
      %4249 = sbr.rel (0) target = $region49
    $region48: #{_lambda_.1} parent=1 // pred_region
      %4251 = dma.done [#allocation4], 32
    $region49: #{_lambda_.1} parent=1 // pred_fallthru
      _
    %4252 = vsyncpa [#allocation3], 1
    %4253 = vsyncpa [#allocation4], 1

</llo_original>
